<compile_context>
chip_gen: v7x
topology: tpu7x:2x2x1
jax: 0.10.0
libtpu: 0.0.40
codegen_flags: <defaults>
</compile_context>

<pallas_src>
import functools

import jax
import jax.numpy as jnp
from jax.experimental import pallas as pl
from jax.experimental.pallas import tpu as pltpu

EPS = 1e-5
LANE = 128
TILE_M = 512          # 128-row tiles leave the mem-bound pipeline ~3x under roofline
TILE_N = 512
BF16 = jnp.bfloat16
VMEM_LIMIT = 64 * 1024 * 1024


def _rup(x, d):
    return -(-x // d) * d


# ----------------------------------------------------------------------------
# Pallas kernels
# ----------------------------------------------------------------------------
def _mm_bn_kernel(x_ref, w_ref, s_ref, b_ref, o_ref, *, relu):
    """One (tm, tn) tile: (tm, K) @ (K, tn) * scale + bias [, ReLU]."""
    acc = jnp.dot(x_ref[...], w_ref[...], preferred_element_type=jnp.float32)
    y = acc * s_ref[...] + b_ref[...]
    if relu:
        y = jnp.maximum(y, 0.0)
    o_ref[...] = y.astype(o_ref.dtype)


def _conv3x3_bn_relu_kernel(x_ref, w_ref, s_ref, b_ref, o_ref, *, stride, ho, wo_p):
    """3x3 conv for one image: 9 statically-unrolled shifted-window matmuls.

    x_ref: (s, s, Hg, Wg, Cp) space-to-batch view of the spatially padded input.
    w_ref: (3, 3, Cp, Co).  Accumulation is f32 in registers (no HBM im2col).
    """
    cp = x_ref.shape[-1]
    acc = jnp.zeros((ho * wo_p, o_ref.shape[-1]), jnp.float32)
    for dy in range(3):
        py, gy = dy % stride, dy // stride
        for dx in range(3):
            px, gx = dx % stride, dx // stride
            win = x_ref[py, px, gy:gy + ho, gx:gx + wo_p, :]
            acc = acc + jnp.dot(win.reshape(ho * wo_p, cp), w_ref[dy, dx],
                                preferred_element_type=jnp.float32)
    y = jnp.maximum(acc * s_ref[...] + b_ref[...], 0.0)
    o_ref[...] = y.astype(o_ref.dtype)


def _conv3_res_kernel(y2_ref, w3_ref, s3_ref, b3_ref, *rest, proj, ho, wo):
    """conv3(1x1)+bn3 fused with the shortcut (projection conv+bn or identity),
    the residual add and the final ReLU — single HBM write of the output."""
    o_ref = rest[-1]
    acc = jnp.dot(y2_ref[...], w3_ref[...], preferred_element_type=jnp.float32)
    acc = acc * s3_ref[...] + b3_ref[...]
    if proj:
        xs_ref, ws_ref, ss_ref, bs_ref = rest[:4]
        lhs = xs_ref[...].reshape(ho * wo, xs_ref.shape[-1])
        sc = jnp.dot(lhs, ws_ref[...], preferred_element_type=jnp.float32)
        sc = sc * ss_ref[...] + bs_ref[...]
    else:
        sc = rest[0][...].astype(jnp.float32)
    o_ref[...] = jnp.maximum(acc + sc, 0.0).astype(o_ref.dtype)


# ----------------------------------------------------------------------------
# Pallas wrappers
# ----------------------------------------------------------------------------
def _pick_tile_n(n):
    for t in (TILE_N, 256, LANE):
        if t <= n and n % t == 0:
            return t
    return n


def fused_matmul_bn(x2d, w2d, scale, bias, *, relu, out_dtype):
    """y = relu?( (x2d @ w2d) * scale + bias );  x2d: (M, K) bf16, w2d: (K, N) bf16."""
    m, k = x2d.shape
    n = w2d.shape[1]
    tm = min(TILE_M, _rup(m, 8))
    tn = _pick_tile_n(n)
    mp = _rup(m, tm)
    if mp != m:                                    # never hit at these shapes
        x2d = jnp.pad(x2d, ((0, mp - m), (0, 0)))
    cost = pl.CostEstimate(flops=2 * mp * k * n, transcendentals=0,
                           bytes_accessed=mp * k * 2 + k * n * 2 + mp * n * 2)
    out = pl.pallas_call(
        functools.partial(_mm_bn_kernel, relu=relu),
        out_shape=jax.ShapeDtypeStruct((mp, n), out_dtype),
        grid=(mp // tm, n // tn),
        in_specs=[
            pl.BlockSpec((tm, k), lambda i, j: (i, 0)),
            pl.BlockSpec((k, tn), lambda i, j: (0, j)),
            pl.BlockSpec((1, tn), lambda i, j: (0, j)),
            pl.BlockSpec((1, tn), lambda i, j: (0, j)),
        ],
        out_specs=pl.BlockSpec((tm, tn), lambda i, j: (i, j)),
        compiler_params=pltpu.CompilerParams(
            dimension_semantics=("parallel", "parallel"),
            vmem_limit_bytes=VMEM_LIMIT),
        cost_estimate=cost,
    )(x2d, w2d, scale, bias)
    return out[:m] if mp != m else out


def _space_to_batch(y1, stride, ho, wo_p):
    """Pad y1 spatially (conv pad=1) and relayout to (s, s, N, Hg, Wg, C) so the
    3x3 kernel only needs static contiguous (Ho, Wo) windows per tap."""
    n, h, w, c = y1.shape
    s = stride
    hg = max(-(-(s * (ho - 1) + 3) // s), -(-(h + 1) // s))
    wg = max(-(-(s * (wo_p - 1) + 3) // s), -(-(w + 1) // s))
    hp, wp = s * hg, s * wg
    yp = jnp.pad(y1, ((0, 0), (1, hp - h - 1), (1, wp - w - 1), (0, 0)))
    xg = yp.reshape(n, hg, s, wg, s, c).transpose(2, 4, 0, 1, 3, 5)
    return xg, hg, wg


def fused_conv3x3_bn_relu(y1, w2, scale, bias, *, stride, ho, wo_p):
    n = y1.shape[0]
    cp = y1.shape[-1]
    co = w2.shape[-1]
    s = stride
    xg, hg, wg = _space_to_batch(y1, s, ho, wo_p)
    cost = pl.CostEstimate(
        flops=2 * n * ho * wo_p * 9 * cp * co, transcendentals=0,
        bytes_accessed=xg.size * 2 + w2.size * 2 + n * ho * wo_p * co * 2)
    return pl.pallas_call(
        functools.partial(_conv3x3_bn_relu_kernel, stride=s, ho=ho, wo_p=wo_p),
        out_shape=jax.ShapeDtypeStruct((n, ho * wo_p, co), BF16),
        grid=(n,),
        in_specs=[
            pl.BlockSpec((s, s, None, hg, wg, cp), lambda i: (0, 0, i, 0, 0, 0)),
            pl.BlockSpec((3, 3, cp, co), lambda i: (0, 0, 0, 0)),
            pl.BlockSpec((1, co), lambda i: (0, 0)),
            pl.BlockSpec((1, co), lambda i: (0, 0)),
        ],
        out_specs=pl.BlockSpec((None, ho * wo_p, co), lambda i: (i, 0, 0)),
        compiler_params=pltpu.CompilerParams(
            dimension_semantics=("parallel",), vmem_limit_bytes=VMEM_LIMIT),
        cost_estimate=cost,
    )(xg, w2, scale, bias)


def fused_conv3_bn_add_relu(y2, w3, s3, b3, short_args, *, n, ho, wo, proj):
    planes_p = y2.shape[-1]
    cout_p = w3.shape[-1]
    m_img = ho * wo
    in_specs = [
        pl.BlockSpec((None, m_img, planes_p), lambda i: (i, 0, 0)),
        pl.BlockSpec((planes_p, cout_p), lambda i: (0, 0)),
        pl.BlockSpec((1, cout_p), lambda i: (0, 0)),
        pl.BlockSpec((1, cout_p), lambda i: (0, 0)),
    ]
    if proj:
        xs, ws, ss, bs = short_args
        ks = xs.shape[-1]
        in_specs += [
            pl.BlockSpec((None, ho, None, wo, ks), lambda i: (i, 0, 0, 0, 0)),
            pl.BlockSpec((ks, cout_p), lambda i: (0, 0)),
            pl.BlockSpec((1, cout_p), lambda i: (0, 0)),
            pl.BlockSpec((1, cout_p), lambda i: (0, 0)),
        ]
        args = (y2, w3, s3, b3, xs, ws, ss, bs)
        flops = 2 * n * m_img * (planes_p + ks) * cout_p
    else:
        (res,) = short_args
        in_specs += [pl.BlockSpec((m_img, cout_p), lambda i: (i, 0))]
        args = (y2, w3, s3, b3, res)
        flops = 2 * n * m_img * planes_p * cout_p
    cost = pl.CostEstimate(
        flops=flops, transcendentals=0,
        bytes_accessed=sum(int(a.size) * a.dtype.itemsize for a in args)
        + n * m_img * cout_p * 4)
    return pl.pallas_call(
        functools.partial(_conv3_res_kernel, proj=proj, ho=ho, wo=wo),
        out_shape=jax.ShapeDtypeStruct((n, m_img, cout_p), jnp.float32),
        grid=(n,),
        in_specs=in_specs,
        out_specs=pl.BlockSpec((None, m_img, cout_p), lambda i: (i, 0, 0)),
        compiler_params=pltpu.CompilerParams(
            dimension_semantics=("parallel",), vmem_limit_bytes=VMEM_LIMIT),
        cost_estimate=cost,
    )(*args)


# ----------------------------------------------------------------------------
# Glue (parameter folding / layout) + full forward
# ----------------------------------------------------------------------------
def fold_bn(bn, c_pad):
    gamma, beta, mean, var = bn
    scale = gamma / jnp.sqrt(var + EPS)
    bias = beta - mean * scale
    c = gamma.shape[0]
    s = jnp.zeros((1, c_pad), jnp.float32).at[0, :c].set(scale)
    b = jnp.zeros((1, c_pad), jnp.float32).at[0, :c].set(bias)
    return s, b


def _pad_weight(w2d, k_pad, n_pad):
    k, n = w2d.shape
    return jnp.zeros((k_pad, n_pad), BF16).at[:k, :n].set(w2d.astype(BF16))


def bottleneck_forward(x_nchw, params, stride):
    """Pallas implementation of Bottleneck.forward. Input/output are NCHW f32."""
    n, cin, h, w = x_nchw.shape
    planes = params["w1"].shape[0]
    cout = params["w3"].shape[0]
    s = stride
    cin_p, planes_p, cout_p = _rup(cin, LANE), _rup(planes, LANE), _rup(cout, LANE)
    ho = (h - 1) // s + 1
    wo = (w - 1) // s + 1
    wo_p = _rup(wo, 8)   # sublane-aligned so the in-kernel spatial flatten is a no-op

    # NCHW -> NHWC, channel-pad to lane-dense multiple of 128, bf16 operands.
    x = jnp.transpose(x_nchw, (0, 2, 3, 1)).astype(jnp.float32)
    x = jnp.pad(x, ((0, 0), (0, 0), (0, 0), (0, cin_p - cin))).astype(BF16)

    # conv1 (1x1) + bn1 + relu
    s1, b1 = fold_bn(params["bn1"], planes_p)
    w1 = _pad_weight(params["w1"].reshape(planes, cin).T, cin_p, planes_p)
    y1 = fused_matmul_bn(x.reshape(-1, cin_p), w1, s1, b1, relu=True,
                         out_dtype=BF16).reshape(n, h, w, planes_p)

    # conv2 (3x3, stride, pad=1) + bn2 + relu — in-kernel 9-tap accumulation.
    s2, b2 = fold_bn(params["bn2"], planes_p)
    w2 = jnp.zeros((3, 3, planes_p, planes_p), BF16).at[:, :, :planes, :planes].set(
        jnp.transpose(params["w2"], (2, 3, 1, 0)).astype(BF16))
    y2 = fused_conv3x3_bn_relu(y1, w2, s2, b2, stride=s, ho=ho, wo_p=wo_p)
    if wo_p != wo:
        y2 = y2.reshape(n, ho, wo_p, planes_p)[:, :, :wo, :].reshape(n, ho * wo, planes_p)

    # conv3 (1x1) + bn3, fused with the shortcut, residual add and final ReLU.
    s3, b3 = fold_bn(params["bn3"], cout_p)
    w3 = _pad_weight(params["w3"].reshape(cout, planes).T, planes_p, cout_p)
    proj = (s != 1) or (cin != cout)
    if proj:
        ss, bs = fold_bn(params["bns"], cout_p)
        # Strided 1x1 shortcut: view x as (N, Ho, s, Wo, s*cin_p); the H-stride
        # is handled by the DMA (squeezed parity index 0), the W-stride by
        # zero-padded weight rows — no separate XLA gather pass over x.
        ws = jnp.zeros((s * cin_p, cout_p), BF16).at[:cin, :cout].set(
            params["ws"].reshape(cout, cin).T.astype(BF16))
        h_need, w_need = s * ho, s * wo
        xs = x
        if (h, w) != (h_need, w_need):
            xs = jnp.pad(xs, ((0, 0), (0, h_need - h), (0, w_need - w), (0, 0)))
        xs = xs.reshape(n, ho, s, wo, s * cin_p)
        short_args = (xs, ws, ss, bs)
    else:
        short_args = (x.reshape(-1, cout_p),)   # identity: cin_p == cout_p
    out = fused_conv3_bn_add_relu(y2, w3, s3, b3, short_args,
                                  n=n, ho=ho, wo=wo, proj=proj)

    out = out.reshape(n, ho, wo, cout_p)[..., :cout].astype(jnp.float32)
    return jnp.transpose(out, (0, 3, 1, 2))     # back to NCHW


# ----------------------------------------------------------------------------
# Pure-JAX reference (for correctness check)
# ----------------------------------------------------------------------------
def ref_bottleneck(x, params, stride):
    def conv(x_, w_, s_=1, p_=0):
        return jax.lax.conv_general_dilated(
            x_, w_, (s_, s_), [(p_, p_), (p_, p_)],
            dimension_numbers=("NCHW", "OIHW", "NCHW"))

    def bn(x_, p_):
        g, b, m, v = p_
        g, b, m, v = (t[None, :, None, None] for t in (g, b, m, v))
        return g * (x_ - m) / jnp.sqrt(v + EPS) + b

    out = jax.nn.relu(bn(conv(x, params["w1"]), params["bn1"]))
    out = jax.nn.relu(bn(conv(out, params["w2"], stride, 1), params["bn2"]))
    out = bn(conv(out, params["w3"]), params["bn3"])
    cin, cout = x.shape[1], params["w3"].shape[0]
    if stride != 1 or cin != cout:
        sc = bn(conv(x, params["ws"], stride), params["bns"])
    else:
        sc = x
    return jax.nn.relu(out + sc)


# ----------------------------------------------------------------------------
# Deterministic parameter init
# ----------------------------------------------------------------------------
def init_params(key, in_planes, planes, stride):
    expansion = 4
    cout = expansion * planes
    ks = list(jax.random.split(key, 16))

    def bn_params(k, c):
        k1, k2, k3, k4 = jax.random.split(k, 4)
        gamma = jax.random.uniform(k1, (c,), jnp.float32, 0.5, 1.5)
        beta = 0.1 * jax.random.normal(k2, (c,), jnp.float32)
        mean = 0.1 * jax.random.normal(k3, (c,), jnp.float32)
        var = jax.random.uniform(k4, (c,), jnp.float32, 0.5, 1.5)
        return (gamma, beta, mean, var)

    params = {
        "w1": 0.2 * jax.random.normal(ks[0], (planes, in_planes, 1, 1), jnp.float32),
        "bn1": bn_params(ks[1], planes),
        "w2": 0.2 * jax.random.normal(ks[2], (planes, planes, 3, 3), jnp.float32),
        "bn2": bn_params(ks[3], planes),
        "w3": 0.2 * jax.random.normal(ks[4], (cout, planes, 1, 1), jnp.float32),
        "bn3": bn_params(ks[5], cout),
    }
    if stride != 1 or in_planes != cout:
        params["ws"] = 0.2 * jax.random.normal(ks[6], (cout, in_planes, 1, 1), jnp.float32)
        params["bns"] = bn_params(ks[7], cout)
    return params


# ----------------------------------------------------------------------------
if __name__ == "__main__":
    key = jax.random.PRNGKey(0)
    k_x, k_p, k_x2, k_p2 = jax.random.split(key, 4)
    fwd = jax.jit(bottleneck_forward, static_argnums=2)

    # Case 1: projection shortcut — Bottleneck(in_planes=8, planes=4, stride=2)
    in_planes, planes, stride = 8, 4, 2
    n, h, w = 2, 16, 16
    x = jax.random.normal(k_x, (n, in_planes, h, w), jnp.float32)
    params = init_params(k_p, in_planes, planes, stride)
    out = jax.block_until_ready(fwd(x, params, stride))
    ref = jax.block_until_ready(ref_bottleneck(x, params, stride))
    assert out.shape == ref.shape == (n, 4 * planes, h // stride, w // stride), out.shape
    assert jnp.allclose(out, ref, rtol=2e-2, atol=2e-2), float(jnp.max(jnp.abs(out - ref)))

    # Case 2: identity shortcut — Bottleneck(in_planes=16, planes=4, stride=1)
    in_planes2, planes2, stride2 = 16, 4, 1
    x2 = jax.random.normal(k_x2, (n, in_planes2, h, w), jnp.float32)
    params2 = init_params(k_p2, in_planes2, planes2, stride2)
    out2 = jax.block_until_ready(fwd(x2, params2, stride2))
    ref2 = jax.block_until_ready(ref_bottleneck(x2, params2, stride2))
    assert out2.shape == ref2.shape == (n, 4 * planes2, h, w), out2.shape
    assert jnp.allclose(out2, ref2, rtol=2e-2, atol=2e-2), float(jnp.max(jnp.abs(out2 - ref2)))

    print("KERNEL_OK")
</pallas_src>

<mosaic_0001>
module attributes {stable_mosaic.version = 11 : i64} {
  func.func @_mm_bn_kernel(%arg0: i32, %arg1: i32, %arg2: memref<512x128xbf16, #tpu.memory_space<vmem>>, %arg3: memref<128x128xbf16, #tpu.memory_space<vmem>>, %arg4: memref<1x128xf32, #tpu.memory_space<vmem>>, %arg5: memref<1x128xf32, #tpu.memory_space<vmem>>, %arg6: memref<512x128xbf16, #tpu.memory_space<vmem>>) attributes {dimension_semantics = [#tpu.dimension_semantics<parallel>, #tpu.dimension_semantics<parallel>], iteration_bounds = array<i64: 1, 1>, scalar_prefetch = 0 : i64, scratch_operands = 0 : i64, tpu.core_type = #tpu.core_type<tc>, window_params = [{transform_indices = @transform_0, window_bounds = array<i64: 512, 128>}, {transform_indices = @transform_1, window_bounds = array<i64: 128, 128>}, {transform_indices = @transform_2, window_bounds = array<i64: 1, 128>}, {transform_indices = @transform_3, window_bounds = array<i64: 1, 128>}, {transform_indices = @transform_4, window_bounds = array<i64: 512, 128>}]} {
    %c0 = arith.constant 0 : index
    %c0_0 = arith.constant 0 : index
    %0 = vector.load %arg2[%c0, %c0_0] : memref<512x128xbf16, #tpu.memory_space<vmem>>, vector<512x128xbf16>
    %c0_1 = arith.constant 0 : index
    %c0_2 = arith.constant 0 : index
    %1 = vector.load %arg3[%c0_1, %c0_2] : memref<128x128xbf16, #tpu.memory_space<vmem>>, vector<128x128xbf16>
    %cst = arith.constant dense<0.000000e+00> : vector<512x128xf32>
    %2 = tpu.matmul %0, %1, %cst {dimension_numbers = #tpu.dot_dimension_numbers<[1], [0], [0], [1], [0, 0, 1, 1], [], []>} : vector<512x128xbf16>, vector<128x128xbf16>, vector<512x128xf32> -> vector<512x128xf32>
    %c0_3 = arith.constant 0 : index
    %c0_4 = arith.constant 0 : index
    %3 = vector.load %arg4[%c0_3, %c0_4] : memref<1x128xf32, #tpu.memory_space<vmem>>, vector<1x128xf32>
    %4 = vector.broadcast %3 : vector<1x128xf32> to vector<512x128xf32>
    %5 = arith.mulf %2, %4 : vector<512x128xf32>
    %c0_5 = arith.constant 0 : index
    %c0_6 = arith.constant 0 : index
    %6 = vector.load %arg5[%c0_5, %c0_6] : memref<1x128xf32, #tpu.memory_space<vmem>>, vector<1x128xf32>
    %7 = vector.broadcast %6 : vector<1x128xf32> to vector<512x128xf32>
    %8 = arith.addf %5, %7 : vector<512x128xf32>
    %cst_7 = arith.constant 0.000000e+00 : f32
    %9 = vector.broadcast %cst_7 : f32 to vector<512x128xf32>
    %10 = arith.maximumf %8, %9 : vector<512x128xf32>
    %11 = arith.truncf %10 : vector<512x128xf32> to vector<512x128xbf16>
    %c0_8 = arith.constant 0 : index
    %c0_9 = arith.constant 0 : index
    %12 = vector.load %arg6[%c0_8, %c0_9] : memref<512x128xbf16, #tpu.memory_space<vmem>>, vector<512x128xbf16>
    tpu.vector_store %arg6[%c0_8, %c0_9], %11 {strides = array<i32>} : memref<512x128xbf16, #tpu.memory_space<vmem>>, vector<512x128xbf16>,
    return
  }
  func.func @transform_0(%arg0: i32, %arg1: i32) -> (i32, i32) {
    %c0_i32 = arith.constant 0 : i32
    %c0_i32_0 = arith.constant 0 : i32
    return %arg0, %c0_i32 : i32, i32
  }
  func.func @transform_1(%arg0: i32, %arg1: i32) -> (i32, i32) {
    %c0_i32 = arith.constant 0 : i32
    %c0_i32_0 = arith.constant 0 : i32
    return %c0_i32, %arg1 : i32, i32
  }
  func.func @transform_2(%arg0: i32, %arg1: i32) -> (i32, i32) {
    %c0_i32 = arith.constant 0 : i32
    %c0_i32_0 = arith.constant 0 : i32
    return %c0_i32, %arg1 : i32, i32
  }
  func.func @transform_3(%arg0: i32, %arg1: i32) -> (i32, i32) {
    %c0_i32 = arith.constant 0 : i32
    %c0_i32_0 = arith.constant 0 : i32
    return %c0_i32, %arg1 : i32, i32
  }
  func.func @transform_4(%arg0: i32, %arg1: i32) -> (i32, i32) {
    %c0_i32 = arith.constant 0 : i32
    return %arg0, %arg1 : i32, i32
  }
}

module attributes {stable_mosaic.version = 11 : i64} {
  func.func @_conv3x3_bn_relu_kernel(%arg0: i32, %arg1: memref<2x2x1x9x9x128xbf16, #tpu.memory_space<vmem>>, %arg2: memref<3x3x128x128xbf16, #tpu.memory_space<vmem>>, %arg3: memref<1x128xf32, #tpu.memory_space<vmem>>, %arg4: memref<1x128xf32, #tpu.memory_space<vmem>>, %arg5: memref<1x64x128xbf16, #tpu.memory_space<vmem>>) attributes {dimension_semantics = [#tpu.dimension_semantics<parallel>], iteration_bounds = array<i64: 2>, scalar_prefetch = 0 : i64, scratch_operands = 0 : i64, tpu.core_type = #tpu.core_type<tc>, window_params = [{transform_indices = @transform_0, window_bounds = array<i64: 2, 2, 1, 9, 9, 128>}, {pipeline_mode = #tpu.pipeline_mode<synchronous>, transform_indices = @transform_1, window_bounds = array<i64: 3, 3, 128, 128>}, {pipeline_mode = #tpu.pipeline_mode<synchronous>, transform_indices = @transform_2, window_bounds = array<i64: 1, 128>}, {pipeline_mode = #tpu.pipeline_mode<synchronous>, transform_indices = @transform_3, window_bounds = array<i64: 1, 128>}, {transform_indices = @transform_4, window_bounds = array<i64: 1, 64, 128>}]} {
    %cst = arith.constant 0.000000e+00 : f32
    %0 = vector.broadcast %cst : f32 to vector<64x128xf32>
    %c0 = arith.constant 0 : index
    %c0_0 = arith.constant 0 : index
    %c0_1 = arith.constant 0 : index
    %c0_2 = arith.constant 0 : index
    %c0_3 = arith.constant 0 : index
    %c0_4 = arith.constant 0 : index
    %1 = vector.load %arg1[%c0, %c0_0, %c0_1, %c0_2, %c0_3, %c0_4] : memref<2x2x1x9x9x128xbf16, #tpu.memory_space<vmem>>, vector<1x1x1x8x8x128xbf16>
    %2 = vector.shape_cast %1 : vector<1x1x1x8x8x128xbf16> to vector<8x8x128xbf16>
    %3 = vector.shape_cast %2 : vector<8x8x128xbf16> to vector<64x128xbf16>
    %c0_5 = arith.constant 0 : index
    %c0_6 = arith.constant 0 : index
    %c0_7 = arith.constant 0 : index
    %c0_8 = arith.constant 0 : index
    %4 = vector.load %arg2[%c0_5, %c0_6, %c0_7, %c0_8] : memref<3x3x128x128xbf16, #tpu.memory_space<vmem>>, vector<1x1x128x128xbf16>
    %5 = vector.shape_cast %4 : vector<1x1x128x128xbf16> to vector<128x128xbf16>
    %cst_9 = arith.constant dense<0.000000e+00> : vector<64x128xf32>
    %6 = tpu.matmul %3, %5, %cst_9 {dimension_numbers = #tpu.dot_dimension_numbers<[1], [0], [0], [1], [0, 0, 1, 1], [], []>} : vector<64x128xbf16>, vector<128x128xbf16>, vector<64x128xf32> -> vector<64x128xf32>
    %7 = arith.addf %0, %6 : vector<64x128xf32>
    %c0_10 = arith.constant 0 : index
    %c1 = arith.constant 1 : index
    %c0_11 = arith.constant 0 : index
    %c0_12 = arith.constant 0 : index
    %c0_13 = arith.constant 0 : index
    %c0_14 = arith.constant 0 : index
    %8 = vector.load %arg1[%c0_10, %c1, %c0_11, %c0_12, %c0_13, %c0_14] : memref<2x2x1x9x9x128xbf16, #tpu.memory_space<vmem>>, vector<1x1x1x8x8x128xbf16>
    %9 = vector.shape_cast %8 : vector<1x1x1x8x8x128xbf16> to vector<8x8x128xbf16>
    %10 = vector.shape_cast %9 : vector<8x8x128xbf16> to vector<64x128xbf16>
    %c0_15 = arith.constant 0 : index
    %c1_16 = arith.constant 1 : index
    %c0_17 = arith.constant 0 : index
    %c0_18 = arith.constant 0 : index
    %11 = vector.load %arg2[%c0_15, %c1_16, %c0_17, %c0_18] : memref<3x3x128x128xbf16, #tpu.memory_space<vmem>>, vector<1x1x128x128xbf16>
    %12 = vector.shape_cast %11 : vector<1x1x128x128xbf16> to vector<128x128xbf16>
    %cst_19 = arith.constant dense<0.000000e+00> : vector<64x128xf32>
    %13 = tpu.matmul %10, %12, %cst_19 {dimension_numbers = #tpu.dot_dimension_numbers<[1], [0], [0], [1], [0, 0, 1, 1], [], []>} : vector<64x128xbf16>, vector<128x128xbf16>, vector<64x128xf32> -> vector<64x128xf32>
    %14 = arith.addf %7, %13 : vector<64x128xf32>
    %c0_20 = arith.constant 0 : index
    %c0_21 = arith.constant 0 : index
    %c0_22 = arith.constant 0 : index
    %c0_23 = arith.constant 0 : index
    %c1_24 = arith.constant 1 : index
    %c0_25 = arith.constant 0 : index
    %15 = vector.load %arg1[%c0_20, %c0_21, %c0_22, %c0_23, %c1_24, %c0_25] : memref<2x2x1x9x9x128xbf16, #tpu.memory_space<vmem>>, vector<1x1x1x8x8x128xbf16>
    %16 = vector.shape_cast %15 : vector<1x1x1x8x8x128xbf16> to vector<8x8x128xbf16>
    %17 = vector.shape_cast %16 : vector<8x8x128xbf16> to vector<64x128xbf16>
    %c0_26 = arith.constant 0 : index
    %c2 = arith.constant 2 : index
    %c0_27 = arith.constant 0 : index
    %c0_28 = arith.constant 0 : index
    %18 = vector.load %arg2[%c0_26, %c2, %c0_27, %c0_28] : memref<3x3x128x128xbf16, #tpu.memory_space<vmem>>, vector<1x1x128x128xbf16>
    %19 = vector.shape_cast %18 : vector<1x1x128x128xbf16> to vector<128x128xbf16>
    %cst_29 = arith.constant dense<0.000000e+00> : vector<64x128xf32>
    %20 = tpu.matmul %17, %19, %cst_29 {dimension_numbers = #tpu.dot_dimension_numbers<[1], [0], [0], [1], [0, 0, 1, 1], [], []>} : vector<64x128xbf16>, vector<128x128xbf16>, vector<64x128xf32> -> vector<64x128xf32>
    %21 = arith.addf %14, %20 : vector<64x128xf32>
    %c1_30 = arith.constant 1 : index
    %c0_31 = arith.constant 0 : index
    %c0_32 = arith.constant 0 : index
    %c0_33 = arith.constant 0 : index
    %c0_34 = arith.constant 0 : index
    %c0_35 = arith.constant 0 : index
    %22 = vector.load %arg1[%c1_30, %c0_31, %c0_32, %c0_33, %c0_34, %c0_35] : memref<2x2x1x9x9x128xbf16, #tpu.memory_space<vmem>>, vector<1x1x1x8x8x128xbf16>
    %23 = vector.shape_cast %22 : vector<1x1x1x8x8x128xbf16> to vector<8x8x128xbf16>
    %24 = vector.shape_cast %23 : vector<8x8x128xbf16> to vector<64x128xbf16>
    %c1_36 = arith.constant 1 : index
    %c0_37 = arith.constant 0 : index
    %c0_38 = arith.constant 0 : index
    %c0_39 = arith.constant 0 : index
    %25 = vector.load %arg2[%c1_36, %c0_37, %c0_38, %c0_39] : memref<3x3x128x128xbf16, #tpu.memory_space<vmem>>, vector<1x1x128x128xbf16>
    %26 = vector.shape_cast %25 : vector<1x1x128x128xbf16> to vector<128x128xbf16>
    %cst_40 = arith.constant dense<0.000000e+00> : vector<64x128xf32>
    %27 = tpu.matmul %24, %26, %cst_40 {dimension_numbers = #tpu.dot_dimension_numbers<[1], [0], [0], [1], [0, 0, 1, 1], [], []>} : vector<64x128xbf16>, vector<128x128xbf16>, vector<64x128xf32> -> vector<64x128xf32>
    %28 = arith.addf %21, %27 : vector<64x128xf32>
    %c1_41 = arith.constant 1 : index
    %c1_42 = arith.constant 1 : index
    %c0_43 = arith.constant 0 : index
    %c0_44 = arith.constant 0 : index
    %c0_45 = arith.constant 0 : index
    %c0_46 = arith.constant 0 : index
    %29 = vector.load %arg1[%c1_41, %c1_42, %c0_43, %c0_44, %c0_45, %c0_46] : memref<2x2x1x9x9x128xbf16, #tpu.memory_space<vmem>>, vector<1x1x1x8x8x128xbf16>
    %30 = vector.shape_cast %29 : vector<1x1x1x8x8x128xbf16> to vector<8x8x128xbf16>
    %31 = vector.shape_cast %30 : vector<8x8x128xbf16> to vector<64x128xbf16>
    %c1_47 = arith.constant 1 : index
    %c1_48 = arith.constant 1 : index
    %c0_49 = arith.constant 0 : index
    %c0_50 = arith.constant 0 : index
    %32 = vector.load %arg2[%c1_47, %c1_48, %c0_49, %c0_50] : memref<3x3x128x128xbf16, #tpu.memory_space<vmem>>, vector<1x1x128x128xbf16>
    %33 = vector.shape_cast %32 : vector<1x1x128x128xbf16> to vector<128x128xbf16>
    %cst_51 = arith.constant dense<0.000000e+00> : vector<64x128xf32>
    %34 = tpu.matmul %31, %33, %cst_51 {dimension_numbers = #tpu.dot_dimension_numbers<[1], [0], [0], [1], [0, 0, 1, 1], [], []>} : vector<64x128xbf16>, vector<128x128xbf16>, vector<64x128xf32> -> vector<64x128xf32>
    %35 = arith.addf %28, %34 : vector<64x128xf32>
    %c1_52 = arith.constant 1 : index
    %c0_53 = arith.constant 0 : index
    %c0_54 = arith.constant 0 : index
    %c0_55 = arith.constant 0 : index
    %c1_56 = arith.constant 1 : index
    %c0_57 = arith.constant 0 : index
    %36 = vector.load %arg1[%c1_52, %c0_53, %c0_54, %c0_55, %c1_56, %c0_57] : memref<2x2x1x9x9x128xbf16, #tpu.memory_space<vmem>>, vector<1x1x1x8x8x128xbf16>
    %37 = vector.shape_cast %36 : vector<1x1x1x8x8x128xbf16> to vector<8x8x128xbf16>
    %38 = vector.shape_cast %37 : vector<8x8x128xbf16> to vector<64x128xbf16>
    %c1_58 = arith.constant 1 : index
    %c2_59 = arith.constant 2 : index
    %c0_60 = arith.constant 0 : index
    %c0_61 = arith.constant 0 : index
    %39 = vector.load %arg2[%c1_58, %c2_59, %c0_60, %c0_61] : memref<3x3x128x128xbf16, #tpu.memory_space<vmem>>, vector<1x1x128x128xbf16>
    %40 = vector.shape_cast %39 : vector<1x1x128x128xbf16> to vector<128x128xbf16>
    %cst_62 = arith.constant dense<0.000000e+00> : vector<64x128xf32>
    %41 = tpu.matmul %38, %40, %cst_62 {dimension_numbers = #tpu.dot_dimension_numbers<[1], [0], [0], [1], [0, 0, 1, 1], [], []>} : vector<64x128xbf16>, vector<128x128xbf16>, vector<64x128xf32> -> vector<64x128xf32>
    %42 = arith.addf %35, %41 : vector<64x128xf32>
    %c0_63 = arith.constant 0 : index
    %c0_64 = arith.constant 0 : index
    %c0_65 = arith.constant 0 : index
    %c1_66 = arith.constant 1 : index
    %c0_67 = arith.constant 0 : index
    %c0_68 = arith.constant 0 : index
    %43 = vector.load %arg1[%c0_63, %c0_64, %c0_65, %c1_66, %c0_67, %c0_68] : memref<2x2x1x9x9x128xbf16, #tpu.memory_space<vmem>>, vector<1x1x1x8x8x128xbf16>
    %44 = vector.shape_cast %43 : vector<1x1x1x8x8x128xbf16> to vector<8x8x128xbf16>
    %45 = vector.shape_cast %44 : vector<8x8x128xbf16> to vector<64x128xbf16>
    %c2_69 = arith.constant 2 : index
    %c0_70 = arith.constant 0 : index
    %c0_71 = arith.constant 0 : index
    %c0_72 = arith.constant 0 : index
    %46 = vector.load %arg2[%c2_69, %c0_70, %c0_71, %c0_72] : memref<3x3x128x128xbf16, #tpu.memory_space<vmem>>, vector<1x1x128x128xbf16>
    %47 = vector.shape_cast %46 : vector<1x1x128x128xbf16> to vector<128x128xbf16>
    %cst_73 = arith.constant dense<0.000000e+00> : vector<64x128xf32>
    %48 = tpu.matmul %45, %47, %cst_73 {dimension_numbers = #tpu.dot_dimension_numbers<[1], [0], [0], [1], [0, 0, 1, 1], [], []>} : vector<64x128xbf16>, vector<128x128xbf16>, vector<64x128xf32> -> vector<64x128xf32>
    %49 = arith.addf %42, %48 : vector<64x128xf32>
    %c0_74 = arith.constant 0 : index
    %c1_75 = arith.constant 1 : index
    %c0_76 = arith.constant 0 : index
    %c1_77 = arith.constant 1 : index
    %c0_78 = arith.constant 0 : index
    %c0_79 = arith.constant 0 : index
    %50 = vector.load %arg1[%c0_74, %c1_75, %c0_76, %c1_77, %c0_78, %c0_79] : memref<2x2x1x9x9x128xbf16, #tpu.memory_space<vmem>>, vector<1x1x1x8x8x128xbf16>
    %51 = vector.shape_cast %50 : vector<1x1x1x8x8x128xbf16> to vector<8x8x128xbf16>
    %52 = vector.shape_cast %51 : vector<8x8x128xbf16> to vector<64x128xbf16>
    %c2_80 = arith.constant 2 : index
    %c1_81 = arith.constant 1 : index
    %c0_82 = arith.constant 0 : index
    %c0_83 = arith.constant 0 : index
    %53 = vector.load %arg2[%c2_80, %c1_81, %c0_82, %c0_83] : memref<3x3x128x128xbf16, #tpu.memory_space<vmem>>, vector<1x1x128x128xbf16>
    %54 = vector.shape_cast %53 : vector<1x1x128x128xbf16> to vector<128x128xbf16>
    %cst_84 = arith.constant dense<0.000000e+00> : vector<64x128xf32>
    %55 = tpu.matmul %52, %54, %cst_84 {dimension_numbers = #tpu.dot_dimension_numbers<[1], [0], [0], [1], [0, 0, 1, 1], [], []>} : vector<64x128xbf16>, vector<128x128xbf16>, vector<64x128xf32> -> vector<64x128xf32>
    %56 = arith.addf %49, %55 : vector<64x128xf32>
    %c0_85 = arith.constant 0 : index
    %c0_86 = arith.constant 0 : index
    %c0_87 = arith.constant 0 : index
    %c1_88 = arith.constant 1 : index
    %c1_89 = arith.constant 1 : index
    %c0_90 = arith.constant 0 : index
    %57 = vector.load %arg1[%c0_85, %c0_86, %c0_87, %c1_88, %c1_89, %c0_90] : memref<2x2x1x9x9x128xbf16, #tpu.memory_space<vmem>>, vector<1x1x1x8x8x128xbf16>
    %58 = vector.shape_cast %57 : vector<1x1x1x8x8x128xbf16> to vector<8x8x128xbf16>
    %59 = vector.shape_cast %58 : vector<8x8x128xbf16> to vector<64x128xbf16>
    %c2_91 = arith.constant 2 : index
    %c2_92 = arith.constant 2 : index
    %c0_93 = arith.constant 0 : index
    %c0_94 = arith.constant 0 : index
    %60 = vector.load %arg2[%c2_91, %c2_92, %c0_93, %c0_94] : memref<3x3x128x128xbf16, #tpu.memory_space<vmem>>, vector<1x1x128x128xbf16>
    %61 = vector.shape_cast %60 : vector<1x1x128x128xbf16> to vector<128x128xbf16>
    %cst_95 = arith.constant dense<0.000000e+00> : vector<64x128xf32>
    %62 = tpu.matmul %59, %61, %cst_95 {dimension_numbers = #tpu.dot_dimension_numbers<[1], [0], [0], [1], [0, 0, 1, 1], [], []>} : vector<64x128xbf16>, vector<128x128xbf16>, vector<64x128xf32> -> vector<64x128xf32>
    %63 = arith.addf %56, %62 : vector<64x128xf32>
    %c0_96 = arith.constant 0 : index
    %c0_97 = arith.constant 0 : index
    %64 = vector.load %arg3[%c0_96, %c0_97] : memref<1x128xf32, #tpu.memory_space<vmem>>, vector<1x128xf32>
    %65 = vector.broadcast %64 : vector<1x128xf32> to vector<64x128xf32>
    %66 = arith.mulf %63, %65 : vector<64x128xf32>
    %c0_98 = arith.constant 0 : index
    %c0_99 = arith.constant 0 : index
    %67 = vector.load %arg4[%c0_98, %c0_99] : memref<1x128xf32, #tpu.memory_space<vmem>>, vector<1x128xf32>
    %68 = vector.broadcast %67 : vector<1x128xf32> to vector<64x128xf32>
    %69 = arith.addf %66, %68 : vector<64x128xf32>
    %cst_100 = arith.constant 0.000000e+00 : f32
    %70 = vector.broadcast %cst_100 : f32 to vector<64x128xf32>
    %71 = arith.maximumf %69, %70 : vector<64x128xf32>
    %72 = arith.truncf %71 : vector<64x128xf32> to vector<64x128xbf16>
    %c0_101 = arith.constant 0 : index
    %c0_102 = arith.constant 0 : index
    %c0_103 = arith.constant 0 : index
    %73 = vector.load %arg5[%c0_101, %c0_102, %c0_103] : memref<1x64x128xbf16, #tpu.memory_space<vmem>>, vector<1x64x128xbf16>
    %74 = vector.shape_cast %73 : vector<1x64x128xbf16> to vector<64x128xbf16>
    %75 = vector.shape_cast %72 : vector<64x128xbf16> to vector<1x64x128xbf16>
    tpu.vector_store %arg5[%c0_101, %c0_102, %c0_103], %75 {strides = array<i32>} : memref<1x64x128xbf16, #tpu.memory_space<vmem>>, vector<1x64x128xbf16>,
    return
  }
  func.func @transform_0(%arg0: i32) -> (i32, i32, i32, i32, i32, i32) {
    %c0_i32 = arith.constant 0 : i32
    %c0_i32_0 = arith.constant 0 : i32
    %c0_i32_1 = arith.constant 0 : i32
    %c0_i32_2 = arith.constant 0 : i32
    %c0_i32_3 = arith.constant 0 : i32
    %c0_i32_4 = arith.constant 0 : i32
    return %c0_i32, %c0_i32_0, %arg0, %c0_i32_1, %c0_i32_2, %c0_i32_3 : i32, i32, i32, i32, i32, i32
  }
  func.func @transform_1(%arg0: i32) -> (i32, i32, i32, i32) {
    %c0_i32 = arith.constant 0 : i32
    %c0_i32_0 = arith.constant 0 : i32
    %c0_i32_1 = arith.constant 0 : i32
    %c0_i32_2 = arith.constant 0 : i32
    %c0_i32_3 = arith.constant 0 : i32
    return %c0_i32, %c0_i32_0, %c0_i32_1, %c0_i32_2 : i32, i32, i32, i32
  }
  func.func @transform_2(%arg0: i32) -> (i32, i32) {
    %c0_i32 = arith.constant 0 : i32
    %c0_i32_0 = arith.constant 0 : i32
    %c0_i32_1 = arith.constant 0 : i32
    return %c0_i32, %c0_i32_0 : i32, i32
  }
  func.func @transform_3(%arg0: i32) -> (i32, i32) {
    %c0_i32 = arith.constant 0 : i32
    %c0_i32_0 = arith.constant 0 : i32
    %c0_i32_1 = arith.constant 0 : i32
    return %c0_i32, %c0_i32_0 : i32, i32
  }
  func.func @transform_4(%arg0: i32) -> (i32, i32, i32) {
    %c0_i32 = arith.constant 0 : i32
    %c0_i32_0 = arith.constant 0 : i32
    %c0_i32_1 = arith.constant 0 : i32
    return %arg0, %c0_i32, %c0_i32_0 : i32, i32, i32
  }
}

module attributes {stable_mosaic.version = 11 : i64} {
  func.func @_conv3_res_kernel(%arg0: i32, %arg1: memref<1x64x128xbf16, #tpu.memory_space<vmem>>, %arg2: memref<128x128xbf16, #tpu.memory_space<vmem>>, %arg3: memref<1x128xf32, #tpu.memory_space<vmem>>, %arg4: memref<1x128xf32, #tpu.memory_space<vmem>>, %arg5: memref<1x8x1x8x256xbf16, #tpu.memory_space<vmem>>, %arg6: memref<256x128xbf16, #tpu.memory_space<vmem>>, %arg7: memref<1x128xf32, #tpu.memory_space<vmem>>, %arg8: memref<1x128xf32, #tpu.memory_space<vmem>>, %arg9: memref<1x64x128xf32, #tpu.memory_space<vmem>>) attributes {dimension_semantics = [#tpu.dimension_semantics<parallel>], iteration_bounds = array<i64: 2>, scalar_prefetch = 0 : i64, scratch_operands = 0 : i64, tpu.core_type = #tpu.core_type<tc>, window_params = [{transform_indices = @transform_0, window_bounds = array<i64: 1, 64, 128>}, {pipeline_mode = #tpu.pipeline_mode<synchronous>, transform_indices = @transform_1, window_bounds = array<i64: 128, 128>}, {pipeline_mode = #tpu.pipeline_mode<synchronous>, transform_indices = @transform_2, window_bounds = array<i64: 1, 128>}, {pipeline_mode = #tpu.pipeline_mode<synchronous>, transform_indices = @transform_3, window_bounds = array<i64: 1, 128>}, {transform_indices = @transform_4, window_bounds = array<i64: 1, 8, 1, 8, 256>}, {pipeline_mode = #tpu.pipeline_mode<synchronous>, transform_indices = @transform_5, window_bounds = array<i64: 256, 128>}, {pipeline_mode = #tpu.pipeline_mode<synchronous>, transform_indices = @transform_6, window_bounds = array<i64: 1, 128>}, {pipeline_mode = #tpu.pipeline_mode<synchronous>, transform_indices = @transform_7, window_bounds = array<i64: 1, 128>}, {transform_indices = @transform_8, window_bounds = array<i64: 1, 64, 128>}]} {
    %c0 = arith.constant 0 : index
    %c0_0 = arith.constant 0 : index
    %c0_1 = arith.constant 0 : index
    %0 = vector.load %arg1[%c0, %c0_0, %c0_1] : memref<1x64x128xbf16, #tpu.memory_space<vmem>>, vector<1x64x128xbf16>
    %1 = vector.shape_cast %0 : vector<1x64x128xbf16> to vector<64x128xbf16>
    %c0_2 = arith.constant 0 : index
    %c0_3 = arith.constant 0 : index
    %2 = vector.load %arg2[%c0_2, %c0_3] : memref<128x128xbf16, #tpu.memory_space<vmem>>, vector<128x128xbf16>
    %cst = arith.constant dense<0.000000e+00> : vector<64x128xf32>
    %3 = tpu.matmul %1, %2, %cst {dimension_numbers = #tpu.dot_dimension_numbers<[1], [0], [0], [1], [0, 0, 1, 1], [], []>} : vector<64x128xbf16>, vector<128x128xbf16>, vector<64x128xf32> -> vector<64x128xf32>
    %c0_4 = arith.constant 0 : index
    %c0_5 = arith.constant 0 : index
    %4 = vector.load %arg3[%c0_4, %c0_5] : memref<1x128xf32, #tpu.memory_space<vmem>>, vector<1x128xf32>
    %5 = vector.broadcast %4 : vector<1x128xf32> to vector<64x128xf32>
    %6 = arith.mulf %3, %5 : vector<64x128xf32>
    %c0_6 = arith.constant 0 : index
    %c0_7 = arith.constant 0 : index
    %7 = vector.load %arg4[%c0_6, %c0_7] : memref<1x128xf32, #tpu.memory_space<vmem>>, vector<1x128xf32>
    %8 = vector.broadcast %7 : vector<1x128xf32> to vector<64x128xf32>
    %9 = arith.addf %6, %8 : vector<64x128xf32>
    %c0_8 = arith.constant 0 : index
    %c0_9 = arith.constant 0 : index
    %c0_10 = arith.constant 0 : index
    %c0_11 = arith.constant 0 : index
    %c0_12 = arith.constant 0 : index
    %10 = vector.load %arg5[%c0_8, %c0_9, %c0_10, %c0_11, %c0_12] : memref<1x8x1x8x256xbf16, #tpu.memory_space<vmem>>, vector<1x8x1x8x256xbf16>
    %11 = vector.shape_cast %10 : vector<1x8x1x8x256xbf16> to vector<8x8x256xbf16>
    %12 = vector.shape_cast %11 : vector<8x8x256xbf16> to vector<64x256xbf16>
    %c0_13 = arith.constant 0 : index
    %c0_14 = arith.constant 0 : index
    %13 = vector.load %arg6[%c0_13, %c0_14] : memref<256x128xbf16, #tpu.memory_space<vmem>>, vector<256x128xbf16>
    %cst_15 = arith.constant dense<0.000000e+00> : vector<64x128xf32>
    %14 = tpu.matmul %12, %13, %cst_15 {dimension_numbers = #tpu.dot_dimension_numbers<[1], [0], [0], [1], [0, 0, 1, 1], [], []>} : vector<64x256xbf16>, vector<256x128xbf16>, vector<64x128xf32> -> vector<64x128xf32>
    %c0_16 = arith.constant 0 : index
    %c0_17 = arith.constant 0 : index
    %15 = vector.load %arg7[%c0_16, %c0_17] : memref<1x128xf32, #tpu.memory_space<vmem>>, vector<1x128xf32>
    %16 = vector.broadcast %15 : vector<1x128xf32> to vector<64x128xf32>
    %17 = arith.mulf %14, %16 : vector<64x128xf32>
    %c0_18 = arith.constant 0 : index
    %c0_19 = arith.constant 0 : index
    %18 = vector.load %arg8[%c0_18, %c0_19] : memref<1x128xf32, #tpu.memory_space<vmem>>, vector<1x128xf32>
    %19 = vector.broadcast %18 : vector<1x128xf32> to vector<64x128xf32>
    %20 = arith.addf %17, %19 : vector<64x128xf32>
    %21 = arith.addf %9, %20 : vector<64x128xf32>
    %cst_20 = arith.constant 0.000000e+00 : f32
    %22 = vector.broadcast %cst_20 : f32 to vector<64x128xf32>
    %23 = arith.maximumf %21, %22 : vector<64x128xf32>
    %c0_21 = arith.constant 0 : index
    %c0_22 = arith.constant 0 : index
    %c0_23 = arith.constant 0 : index
    %24 = vector.load %arg9[%c0_21, %c0_22, %c0_23] : memref<1x64x128xf32, #tpu.memory_space<vmem>>, vector<1x64x128xf32>
    %25 = vector.shape_cast %24 : vector<1x64x128xf32> to vector<64x128xf32>
    %26 = vector.shape_cast %23 : vector<64x128xf32> to vector<1x64x128xf32>
    tpu.vector_store %arg9[%c0_21, %c0_22, %c0_23], %26 {strides = array<i32>} : memref<1x64x128xf32, #tpu.memory_space<vmem>>, vector<1x64x128xf32>,
    return
  }
  func.func @transform_0(%arg0: i32) -> (i32, i32, i32) {
    %c0_i32 = arith.constant 0 : i32
    %c0_i32_0 = arith.constant 0 : i32
    %c0_i32_1 = arith.constant 0 : i32
    return %arg0, %c0_i32, %c0_i32_0 : i32, i32, i32
  }
  func.func @transform_1(%arg0: i32) -> (i32, i32) {
    %c0_i32 = arith.constant 0 : i32
    %c0_i32_0 = arith.constant 0 : i32
    %c0_i32_1 = arith.constant 0 : i32
    return %c0_i32, %c0_i32_0 : i32, i32
  }
  func.func @transform_2(%arg0: i32) -> (i32, i32) {
    %c0_i32 = arith.constant 0 : i32
    %c0_i32_0 = arith.constant 0 : i32
    %c0_i32_1 = arith.constant 0 : i32
    return %c0_i32, %c0_i32_0 : i32, i32
  }
  func.func @transform_3(%arg0: i32) -> (i32, i32) {
    %c0_i32 = arith.constant 0 : i32
    %c0_i32_0 = arith.constant 0 : i32
    %c0_i32_1 = arith.constant 0 : i32
    return %c0_i32, %c0_i32_0 : i32, i32
  }
  func.func @transform_4(%arg0: i32) -> (i32, i32, i32, i32, i32) {
    %c0_i32 = arith.constant 0 : i32
    %c0_i32_0 = arith.constant 0 : i32
    %c0_i32_1 = arith.constant 0 : i32
    %c0_i32_2 = arith.constant 0 : i32
    %c0_i32_3 = arith.constant 0 : i32
    return %arg0, %c0_i32, %c0_i32_0, %c0_i32_1, %c0_i32_2 : i32, i32, i32, i32, i32
  }
  func.func @transform_5(%arg0: i32) -> (i32, i32) {
    %c0_i32 = arith.constant 0 : i32
    %c0_i32_0 = arith.constant 0 : i32
    %c0_i32_1 = arith.constant 0 : i32
    return %c0_i32, %c0_i32_0 : i32, i32
  }
  func.func @transform_6(%arg0: i32) -> (i32, i32) {
    %c0_i32 = arith.constant 0 : i32
    %c0_i32_0 = arith.constant 0 : i32
    %c0_i32_1 = arith.constant 0 : i32
    return %c0_i32, %c0_i32_0 : i32, i32
  }
  func.func @transform_7(%arg0: i32) -> (i32, i32) {
    %c0_i32 = arith.constant 0 : i32
    %c0_i32_0 = arith.constant 0 : i32
    %c0_i32_1 = arith.constant 0 : i32
    return %c0_i32, %c0_i32_0 : i32, i32
  }
  func.func @transform_8(%arg0: i32) -> (i32, i32, i32) {
    %c0_i32 = arith.constant 0 : i32
    %c0_i32_0 = arith.constant 0 : i32
    %c0_i32_1 = arith.constant 0 : i32
    return %arg0, %c0_i32, %c0_i32_0 : i32, i32, i32
  }
}

</mosaic_0001>

<llo_original>
// kernel: bottleneck_forward.3
$region0: #{bottleneck_forward.3}
  #allocation0 [shape = 'u32[]', space=smem, size = 0x4, offset = 0x4, fixed_abs, tag = 'smem constant byte address 0x4 - core index']
  #allocation1 [shape = 'u32[144,128]{1,0:T(1,128)}', space=vmem, size = 0x12000, scoped, tag = 'internal scratch']
  %s0 = inlined_call_operand.hbm [shape: bf16[512,128], index: 0, kind: input, shape index: {}]
  %s1 = inlined_call_operand.hbm [shape: bf16[128,128], index: 1, kind: input, shape index: {}]
  %s2 = inlined_call_operand.hbm [shape: f32[1,128], index: 2, kind: input, shape index: {}]
  %s3 = inlined_call_operand.hbm [shape: f32[1,128], index: 3, kind: input, shape index: {}]
  %s4 = inlined_call_operand.hbm [shape: bf16[512,128], index: 4, kind: output, shape index: {}]
  %s5 = sld [smem:[#allocation0]]
  $region42: #{bottleneck_forward.3} parent=0
    _
  %s7 = ssub.s32 1, %s5
  %s8 = scalar_select 0, %s7, %s5
  $region1: #{bottleneck_forward.3} parent=0
    #allocation2 [shape = 'u8[131072]{0}', space=vmem, size = 0x20000, scoped, tag = 'input window, operand 0, single buffered']
    #allocation3 [shape = 's32[1]{0}', space=sflag, size = 0x4, scoped, tag = 'scoped memory for bottleneck_forward.3']
    #allocation4 [shape = 's32[1]{0}', space=sflag, size = 0x4, scoped, tag = 'scoped memory for bottleneck_forward.3']
    #allocation5 [shape = 'u8[32768]{0}', space=vmem, size = 0x8000, scoped, tag = 'input window, operand 1, single buffered']
    #allocation6 [shape = 's32[1]{0}', space=sflag, size = 0x4, scoped, tag = 'scoped memory for bottleneck_forward.3']
    #allocation7 [shape = 'u8[512]{0}', space=vmem, size = 0x400, scoped, tag = 'input window, operand 2, single buffered']
    #allocation8 [shape = 'u8[512]{0}', space=vmem, size = 0x400, scoped, tag = 'input window, operand 3, single buffered']
    #allocation9 [shape = 's32[1]{0}', space=sflag, size = 0x4, scoped, tag = 'scoped memory for bottleneck_forward.3']
    #allocation10 [shape = 'u8[131072]{0}', space=vmem, size = 0x20000, scoped, tag = 'output window, operand 0, single buffered']
    %9 = vsyncpa [#allocation3], 0
    %10 = vsyncpa [#allocation6], 0
    %11 = vsyncpa [#allocation9], 0
    %12 = vsyncpa [#allocation4], 0
    // Predicated region
    $region2: #{bottleneck_forward.3} parent=1 // pred_check
      _
    $region3: #{bottleneck_forward.3} parent=1 // pred_check_branch
      %14 = sbr.rel (0) target = $region5
    $region4: #{bottleneck_forward.3} parent=1 // pred_region
      %s16 = ssub.s32 4096, 4096
      %17 = vsyncadd [#allocation3], %s16
      %s18 = sshll.u32 [#allocation2], 4
      %s19 = int_to_ptr.vmem [resolvable:$true] %s18
      %24 = dma.hbm_to_vmem [thread:$0]  %s0, 4096, %s19, [#allocation3], 64, 64, 4
    $region5: #{bottleneck_forward.3} parent=1 // pred_fallthru
      _
    // Predicated region
    $region6: #{bottleneck_forward.3} parent=1 // pred_check
      _
    $region7: #{bottleneck_forward.3} parent=1 // pred_check_branch
      %26 = sbr.rel (0) target = $region9
    $region8: #{bottleneck_forward.3} parent=1 // pred_region
      %s28 = ssub.s32 1024, 1024
      %29 = vsyncadd [#allocation6], %s28
      %s30 = sshll.u32 [#allocation5], 4
      %s31 = int_to_ptr.vmem [resolvable:$true] %s30
      %36 = dma.hbm_to_vmem [thread:$0]  %s1, 1024, %s31, [#allocation6], 64, 64, 4
    $region9: #{bottleneck_forward.3} parent=1 // pred_fallthru
      _
    // Predicated region
    $region10: #{bottleneck_forward.3} parent=1 // pred_check
      _
    $region11: #{bottleneck_forward.3} parent=1 // pred_check_branch
      %38 = sbr.rel (0) target = $region13
    $region12: #{bottleneck_forward.3} parent=1 // pred_region
      %s40 = ssub.s32 16, 16
      %41 = vsyncadd [#allocation6], %s40
      %s43 = sshll.u32 [#allocation7], 4
      %s44 = int_to_ptr.vmem [resolvable:$true] %s43
      %46 = dma.hbm_to_vmem [thread:$0]  %s2, 16, %s44, [#allocation6]
    $region13: #{bottleneck_forward.3} parent=1 // pred_fallthru
      _
    // Predicated region
    $region14: #{bottleneck_forward.3} parent=1 // pred_check
      _
    $region15: #{bottleneck_forward.3} parent=1 // pred_check_branch
      %48 = sbr.rel (0) target = $region17
    $region16: #{bottleneck_forward.3} parent=1 // pred_region
      %s50 = ssub.s32 16, 16
      %51 = vsyncadd [#allocation9], %s50
      %s53 = sshll.u32 [#allocation8], 4
      %s54 = int_to_ptr.vmem [resolvable:$true] %s53
      %56 = dma.hbm_to_vmem [thread:$0]  %s3, 16, %s54, [#allocation9]
    $region17: #{bottleneck_forward.3} parent=1 // pred_fallthru
      _
    // Predicated region
    $region18: #{bottleneck_forward.3} parent=1 // pred_check
      _
    $region19: #{bottleneck_forward.3} parent=1 // pred_check_branch
      %58 = sbr.rel (0) target = $region21
    $region20: #{bottleneck_forward.3} parent=1 // pred_region
      %59 = dma.done [#allocation3], 4096
    $region21: #{bottleneck_forward.3} parent=1 // pred_fallthru
      _
    // Predicated region
    $region22: #{bottleneck_forward.3} parent=1 // pred_check
      _
    $region23: #{bottleneck_forward.3} parent=1 // pred_check_branch
      %61 = sbr.rel (0) target = $region25
    $region24: #{bottleneck_forward.3} parent=1 // pred_region
      %62 = dma.done [#allocation6], 1024
    $region25: #{bottleneck_forward.3} parent=1 // pred_fallthru
      _
    // Predicated region
    $region26: #{bottleneck_forward.3} parent=1 // pred_check
      _
    $region27: #{bottleneck_forward.3} parent=1 // pred_check_branch
      %64 = sbr.rel (0) target = $region29
    $region28: #{bottleneck_forward.3} parent=1 // pred_region
      %65 = dma.done [#allocation6], 16
    $region29: #{bottleneck_forward.3} parent=1 // pred_fallthru
      _
    // Predicated region
    $region30: #{bottleneck_forward.3} parent=1 // pred_check
      _
    $region31: #{bottleneck_forward.3} parent=1 // pred_check_branch
      %67 = sbr.rel (0) target = $region33
    $region32: #{bottleneck_forward.3} parent=1 // pred_region
      %68 = dma.done [#allocation9], 16
    $region33: #{bottleneck_forward.3} parent=1 // pred_fallthru
      _
    %v70 = vld [vmem:[#allocation2] sm:$0xf]
    %v71 = vld [vmem:[#allocation2 + $0x4] sm:$0xf]
    %v72 = vld [vmem:[#allocation2 + $0x8] sm:$0xf]
    %v73 = vld [vmem:[#allocation2 + $0xc] sm:$0xf]
    %v74 = vld [vmem:[#allocation2 + $0x10] sm:$0xf]
    %v75 = vld [vmem:[#allocation2 + $0x14] sm:$0xf]
    %v76 = vld [vmem:[#allocation2 + $0x18] sm:$0xf]
    %v77 = vld [vmem:[#allocation2 + $0x1c] sm:$0xf]
    %v78 = vld [vmem:[#allocation2 + $0x20] sm:$0xf]
    %v79 = vld [vmem:[#allocation2 + $0x24] sm:$0xf]
    %v80 = vld [vmem:[#allocation2 + $0x28] sm:$0xf]
    %v81 = vld [vmem:[#allocation2 + $0x2c] sm:$0xf]
    %v82 = vld [vmem:[#allocation2 + $0x30] sm:$0xf]
    %v83 = vld [vmem:[#allocation2 + $0x34] sm:$0xf]
    %v84 = vld [vmem:[#allocation2 + $0x38] sm:$0xf]
    %v85 = vld [vmem:[#allocation2 + $0x3c] sm:$0xf]
    %v86 = vld [vmem:[#allocation2 + $0x40] sm:$0xf]
    %v87 = vld [vmem:[#allocation2 + $0x44] sm:$0xf]
    %v88 = vld [vmem:[#allocation2 + $0x48] sm:$0xf]
    %v89 = vld [vmem:[#allocation2 + $0x4c] sm:$0xf]
    %v90 = vld [vmem:[#allocation2 + $0x50] sm:$0xf]
    %v91 = vld [vmem:[#allocation2 + $0x54] sm:$0xf]
    %v92 = vld [vmem:[#allocation2 + $0x58] sm:$0xf]
    %v93 = vld [vmem:[#allocation2 + $0x5c] sm:$0xf]
    %v94 = vld [vmem:[#allocation2 + $0x60] sm:$0xf]
    %v95 = vld [vmem:[#allocation2 + $0x64] sm:$0xf]
    %v96 = vld [vmem:[#allocation2 + $0x68] sm:$0xf]
    %v97 = vld [vmem:[#allocation2 + $0x6c] sm:$0xf]
    %v98 = vld [vmem:[#allocation2 + $0x70] sm:$0xf]
    %v99 = vld [vmem:[#allocation2 + $0x74] sm:$0xf]
    %v100 = vld [vmem:[#allocation2 + $0x78] sm:$0xf]
    %v101 = vld [vmem:[#allocation2 + $0x7c] sm:$0xf]
    %v102 = vld [vmem:[#allocation2 + $0x80] sm:$0xf]
    %v103 = vld [vmem:[#allocation2 + $0x84] sm:$0xf]
    %v104 = vld [vmem:[#allocation2 + $0x88] sm:$0xf]
    %v105 = vld [vmem:[#allocation2 + $0x8c] sm:$0xf]
    %v106 = vld [vmem:[#allocation2 + $0x90] sm:$0xf]
    %v107 = vld [vmem:[#allocation2 + $0x94] sm:$0xf]
    %v108 = vld [vmem:[#allocation2 + $0x98] sm:$0xf]
    %v109 = vld [vmem:[#allocation2 + $0x9c] sm:$0xf]
    %v110 = vld [vmem:[#allocation2 + $0xa0] sm:$0xf]
    %v111 = vld [vmem:[#allocation2 + $0xa4] sm:$0xf]
    %v112 = vld [vmem:[#allocation2 + $0xa8] sm:$0xf]
    %v113 = vld [vmem:[#allocation2 + $0xac] sm:$0xf]
    %v114 = vld [vmem:[#allocation2 + $0xb0] sm:$0xf]
    %v115 = vld [vmem:[#allocation2 + $0xb4] sm:$0xf]
    %v116 = vld [vmem:[#allocation2 + $0xb8] sm:$0xf]
    %v117 = vld [vmem:[#allocation2 + $0xbc] sm:$0xf]
    %v118 = vld [vmem:[#allocation2 + $0xc0] sm:$0xf]
    %v119 = vld [vmem:[#allocation2 + $0xc4] sm:$0xf]
    %v120 = vld [vmem:[#allocation2 + $0xc8] sm:$0xf]
    %v121 = vld [vmem:[#allocation2 + $0xcc] sm:$0xf]
    %v122 = vld [vmem:[#allocation2 + $0xd0] sm:$0xf]
    %v123 = vld [vmem:[#allocation2 + $0xd4] sm:$0xf]
    %v124 = vld [vmem:[#allocation2 + $0xd8] sm:$0xf]
    %v125 = vld [vmem:[#allocation2 + $0xdc] sm:$0xf]
    %v126 = vld [vmem:[#allocation2 + $0xe0] sm:$0xf]
    %v127 = vld [vmem:[#allocation2 + $0xe4] sm:$0xf]
    %v128 = vld [vmem:[#allocation2 + $0xe8] sm:$0xf]
    %v129 = vld [vmem:[#allocation2 + $0xec] sm:$0xf]
    %v130 = vld [vmem:[#allocation2 + $0xf0] sm:$0xf]
    %v131 = vld [vmem:[#allocation2 + $0xf4] sm:$0xf]
    %v132 = vld [vmem:[#allocation2 + $0xf8] sm:$0xf]
    %v133 = vld [vmem:[#allocation2 + $0xfc] sm:$0xf]
    %v134 = vld [vmem:[#allocation5] sm:$0xf]
    %v135 = vld [vmem:[#allocation5 + $0x4] sm:$0xf]
    %v136 = vld [vmem:[#allocation5 + $0x8] sm:$0xf]
    %v137 = vld [vmem:[#allocation5 + $0xc] sm:$0xf]
    %v138 = vld [vmem:[#allocation5 + $0x10] sm:$0xf]
    %v139 = vld [vmem:[#allocation5 + $0x14] sm:$0xf]
    %v140 = vld [vmem:[#allocation5 + $0x18] sm:$0xf]
    %v141 = vld [vmem:[#allocation5 + $0x1c] sm:$0xf]
    %v142 = vld [vmem:[#allocation5 + $0x20] sm:$0xf]
    %v143 = vld [vmem:[#allocation5 + $0x24] sm:$0xf]
    %v144 = vld [vmem:[#allocation5 + $0x28] sm:$0xf]
    %v145 = vld [vmem:[#allocation5 + $0x2c] sm:$0xf]
    %v146 = vld [vmem:[#allocation5 + $0x30] sm:$0xf]
    %v147 = vld [vmem:[#allocation5 + $0x34] sm:$0xf]
    %v148 = vld [vmem:[#allocation5 + $0x38] sm:$0xf]
    %v149 = vld [vmem:[#allocation5 + $0x3c] sm:$0xf]
    %v214 = vunpack.c.l.b16 %v70
    %v215 = vunpack.c.l.b16 %v71
    %v216 = vunpack.c.l.b16 %v72
    %v217 = vunpack.c.l.b16 %v73
    %v218 = vunpack.c.l.b16 %v74
    %v219 = vunpack.c.l.b16 %v75
    %v220 = vunpack.c.l.b16 %v76
    %v221 = vunpack.c.l.b16 %v77
    %v222 = vunpack.c.l.b16 %v78
    %v223 = vunpack.c.l.b16 %v79
    %v224 = vunpack.c.l.b16 %v80
    %v225 = vunpack.c.l.b16 %v81
    %v226 = vunpack.c.l.b16 %v82
    %v227 = vunpack.c.l.b16 %v83
    %v228 = vunpack.c.l.b16 %v84
    %v229 = vunpack.c.l.b16 %v85
    %v230 = vunpack.c.l.b16 %v86
    %v231 = vunpack.c.l.b16 %v87
    %v232 = vunpack.c.l.b16 %v88
    %v233 = vunpack.c.l.b16 %v89
    %v234 = vunpack.c.l.b16 %v90
    %v235 = vunpack.c.l.b16 %v91
    %v236 = vunpack.c.l.b16 %v92
    %v237 = vunpack.c.l.b16 %v93
    %v238 = vunpack.c.l.b16 %v94
    %v239 = vunpack.c.l.b16 %v95
    %v240 = vunpack.c.l.b16 %v96
    %v241 = vunpack.c.l.b16 %v97
    %v242 = vunpack.c.l.b16 %v98
    %v243 = vunpack.c.l.b16 %v99
    %v244 = vunpack.c.l.b16 %v100
    %v245 = vunpack.c.l.b16 %v101
    %v246 = vunpack.c.l.b16 %v102
    %v247 = vunpack.c.l.b16 %v103
    %v248 = vunpack.c.l.b16 %v104
    %v249 = vunpack.c.l.b16 %v105
    %v250 = vunpack.c.l.b16 %v106
    %v251 = vunpack.c.l.b16 %v107
    %v252 = vunpack.c.l.b16 %v108
    %v253 = vunpack.c.l.b16 %v109
    %v254 = vunpack.c.l.b16 %v110
    %v255 = vunpack.c.l.b16 %v111
    %v256 = vunpack.c.l.b16 %v112
    %v257 = vunpack.c.l.b16 %v113
    %v258 = vunpack.c.l.b16 %v114
    %v259 = vunpack.c.l.b16 %v115
    %v260 = vunpack.c.l.b16 %v116
    %v261 = vunpack.c.l.b16 %v117
    %v262 = vunpack.c.l.b16 %v118
    %v263 = vunpack.c.l.b16 %v119
    %v264 = vunpack.c.l.b16 %v120
    %v265 = vunpack.c.l.b16 %v121
    %v266 = vunpack.c.l.b16 %v122
    %v267 = vunpack.c.l.b16 %v123
    %v268 = vunpack.c.l.b16 %v124
    %v269 = vunpack.c.l.b16 %v125
    %v270 = vunpack.c.l.b16 %v126
    %v271 = vunpack.c.l.b16 %v127
    %v272 = vunpack.c.l.b16 %v128
    %v273 = vunpack.c.l.b16 %v129
    %v274 = vunpack.c.l.b16 %v130
    %v275 = vunpack.c.l.b16 %v131
    %v276 = vunpack.c.l.b16 %v132
    %v277 = vunpack.c.l.b16 %v133
    %v278 = vpack.c.b16 %v215, %v214
    %v279 = vpack.c.b16 %v217, %v216
    %v280 = vpack.c.b16 %v219, %v218
    %v281 = vpack.c.b16 %v221, %v220
    %v282 = vpack.c.b16 %v223, %v222
    %v283 = vpack.c.b16 %v225, %v224
    %v284 = vpack.c.b16 %v227, %v226
    %v285 = vpack.c.b16 %v229, %v228
    %v286 = vpack.c.b16 %v231, %v230
    %v287 = vpack.c.b16 %v233, %v232
    %v288 = vpack.c.b16 %v235, %v234
    %v289 = vpack.c.b16 %v237, %v236
    %v290 = vpack.c.b16 %v239, %v238
    %v291 = vpack.c.b16 %v241, %v240
    %v292 = vpack.c.b16 %v243, %v242
    %v293 = vpack.c.b16 %v245, %v244
    %v294 = vpack.c.b16 %v247, %v246
    %v295 = vpack.c.b16 %v249, %v248
    %v296 = vpack.c.b16 %v251, %v250
    %v297 = vpack.c.b16 %v253, %v252
    %v298 = vpack.c.b16 %v255, %v254
    %v299 = vpack.c.b16 %v257, %v256
    %v300 = vpack.c.b16 %v259, %v258
    %v301 = vpack.c.b16 %v261, %v260
    %v302 = vpack.c.b16 %v263, %v262
    %v303 = vpack.c.b16 %v265, %v264
    %v304 = vpack.c.b16 %v267, %v266
    %v305 = vpack.c.b16 %v269, %v268
    %v306 = vpack.c.b16 %v271, %v270
    %v307 = vpack.c.b16 %v273, %v272
    %v308 = vpack.c.b16 %v275, %v274
    %v309 = vpack.c.b16 %v277, %v276
    %v358 = vunpack.c.l.b16 %v134
    %v359 = vunpack.c.l.b16 %v135
    %v360 = vunpack.c.l.b16 %v136
    %v361 = vunpack.c.l.b16 %v137
    %v362 = vunpack.c.l.b16 %v138
    %v363 = vunpack.c.l.b16 %v139
    %v364 = vunpack.c.l.b16 %v140
    %v365 = vunpack.c.l.b16 %v141
    %v366 = vunpack.c.l.b16 %v142
    %v367 = vunpack.c.l.b16 %v143
    %v368 = vunpack.c.l.b16 %v144
    %v369 = vunpack.c.l.b16 %v145
    %v370 = vunpack.c.l.b16 %v146
    %v371 = vunpack.c.l.b16 %v147
    %v372 = vunpack.c.l.b16 %v148
    %v373 = vunpack.c.l.b16 %v149
    %v374 = vpack.c.b16 %v359, %v358
    %v375 = vpack.c.b16 %v361, %v360
    %v376 = vpack.c.b16 %v363, %v362
    %v377 = vpack.c.b16 %v365, %v364
    %v378 = vpack.c.b16 %v367, %v366
    %v379 = vpack.c.b16 %v369, %v368
    %v380 = vpack.c.b16 %v371, %v370
    %v381 = vpack.c.b16 %v373, %v372
    %390 = vmatprep.subr.bf16.mxu0 0
    %391 = vmatpush1.bf16.msra.mxu0 %v374
    %392 = vmatprep.subr.bf16.mxu0 0
    %393 = vmatpush1.bf16.msra.mxu0 %v375
    %394 = vmatprep.subr.bf16.mxu0 0
    %395 = vmatpush1.bf16.msra.mxu0 %v376
    %396 = vmatprep.subr.bf16.mxu0 0
    %397 = vmatpush1.bf16.msra.mxu0 %v377
    %398 = vmatprep.subr.bf16.mxu0 0
    %399 = vmatpush1.bf16.msra.mxu0 %v378
    %400 = vmatprep.subr.bf16.mxu0 0
    %401 = vmatpush1.bf16.msra.mxu0 %v379
    %402 = vmatprep.subr.bf16.mxu0 0
    %403 = vmatpush1.bf16.msra.mxu0 %v380
    %404 = vmatprep.subr.bf16.mxu0 0
    %405 = vmatpush1.bf16.msra.mxu0 %v381
    %406 = vmatprep.subr.bf16.mxu0 0
    %407 = vmatpush1.bf16.msra.mxu0 0
    %408 = vmatprep.subr.bf16.mxu0 0
    %409 = vmatpush1.bf16.msra.mxu0 0
    %410 = vmatprep.subr.bf16.mxu0 0
    %411 = vmatpush1.bf16.msra.mxu0 0
    %412 = vmatprep.subr.bf16.mxu0 0
    %413 = vmatpush1.bf16.msra.mxu0 0
    %414 = vmatprep.subr.bf16.mxu0 0
    %415 = vmatpush1.bf16.msra.mxu0 0
    %416 = vmatprep.subr.bf16.mxu0 0
    %417 = vmatpush1.bf16.msra.mxu0 0
    %418 = vmatprep.subr.bf16.mxu0 0
    %419 = vmatpush1.bf16.msra.mxu0 0
    %420 = vmatprep.subr.bf16.mxu0 0
    %421 = vmatpush1.bf16.msra.mxu0 0
    %422 = vmatprep.mubr.bf16.mxu0 0
    %423 = vmatmul.mubr.bf16.gmra.mrb[0].mxu0 %v278
    %v424 = vpop.f32.mrb[0].mxu0
    %v425 = vadd.f32 0.0, %v424
    %v426 = vpop.f32.mrb[0].mxu0
    %v427 = vpop.f32.mrb[0].mxu0
    %v428 = vadd.f32 0.0, %v427
    %v429 = vpop.f32.mrb[0].mxu0
    %430 = vmatprep.mubr.bf16.mxu0 0
    %431 = vmatmul.mubr.bf16.gmra.mrb[0].mxu0 %v279
    %v432 = vpop.f32.mrb[0].mxu0
    %v433 = vadd.f32 0.0, %v432
    %v434 = vpop.f32.mrb[0].mxu0
    %v435 = vpop.f32.mrb[0].mxu0
    %v436 = vadd.f32 0.0, %v435
    %v437 = vpop.f32.mrb[0].mxu0
    %438 = vmatprep.mubr.bf16.mxu0 0
    %439 = vmatmul.mubr.bf16.gmra.mrb[0].mxu0 %v280
    %v440 = vpop.f32.mrb[0].mxu0
    %v441 = vadd.f32 0.0, %v440
    %v442 = vpop.f32.mrb[0].mxu0
    %v443 = vpop.f32.mrb[0].mxu0
    %v444 = vadd.f32 0.0, %v443
    %v445 = vpop.f32.mrb[0].mxu0
    %446 = vmatprep.mubr.bf16.mxu0 0
    %447 = vmatmul.mubr.bf16.gmra.mrb[0].mxu0 %v281
    %v448 = vpop.f32.mrb[0].mxu0
    %v449 = vadd.f32 0.0, %v448
    %v450 = vpop.f32.mrb[0].mxu0
    %v451 = vpop.f32.mrb[0].mxu0
    %v452 = vadd.f32 0.0, %v451
    %v453 = vpop.f32.mrb[0].mxu0
    %454 = vmatprep.mubr.bf16.mxu0 0
    %455 = vmatmul.mubr.bf16.gmra.mrb[0].mxu0 %v282
    %v456 = vpop.f32.mrb[0].mxu0
    %v457 = vadd.f32 0.0, %v456
    %v458 = vpop.f32.mrb[0].mxu0
    %v459 = vpop.f32.mrb[0].mxu0
    %v460 = vadd.f32 0.0, %v459
    %v461 = vpop.f32.mrb[0].mxu0
    %462 = vmatprep.mubr.bf16.mxu0 0
    %463 = vmatmul.mubr.bf16.gmra.mrb[0].mxu0 %v283
    %v464 = vpop.f32.mrb[0].mxu0
    %v465 = vadd.f32 0.0, %v464
    %v466 = vpop.f32.mrb[0].mxu0
    %v467 = vpop.f32.mrb[0].mxu0
    %v468 = vadd.f32 0.0, %v467
    %v469 = vpop.f32.mrb[0].mxu0
    %470 = vmatprep.mubr.bf16.mxu0 0
    %471 = vmatmul.mubr.bf16.gmra.mrb[0].mxu0 %v284
    %v472 = vpop.f32.mrb[0].mxu0
    %v473 = vadd.f32 0.0, %v472
    %v474 = vpop.f32.mrb[0].mxu0
    %v475 = vpop.f32.mrb[0].mxu0
    %v476 = vadd.f32 0.0, %v475
    %v477 = vpop.f32.mrb[0].mxu0
    %478 = vmatprep.mubr.bf16.mxu0 0
    %479 = vmatmul.mubr.bf16.gmra.mrb[0].mxu0 %v285
    %v480 = vpop.f32.mrb[0].mxu0
    %v481 = vadd.f32 0.0, %v480
    %v482 = vpop.f32.mrb[0].mxu0
    %v483 = vpop.f32.mrb[0].mxu0
    %v484 = vadd.f32 0.0, %v483
    %v485 = vpop.f32.mrb[0].mxu0
    %486 = vmatprep.mubr.bf16.mxu0 0
    %487 = vmatmul.mubr.bf16.gmra.mrb[0].mxu0 %v286
    %v488 = vpop.f32.mrb[0].mxu0
    %v489 = vadd.f32 0.0, %v488
    %v490 = vpop.f32.mrb[0].mxu0
    %v491 = vpop.f32.mrb[0].mxu0
    %v492 = vadd.f32 0.0, %v491
    %v493 = vpop.f32.mrb[0].mxu0
    %494 = vmatprep.mubr.bf16.mxu0 0
    %495 = vmatmul.mubr.bf16.gmra.mrb[0].mxu0 %v287
    %v496 = vpop.f32.mrb[0].mxu0
    %v497 = vadd.f32 0.0, %v496
    %v498 = vpop.f32.mrb[0].mxu0
    %v499 = vpop.f32.mrb[0].mxu0
    %v500 = vadd.f32 0.0, %v499
    %v501 = vpop.f32.mrb[0].mxu0
    %502 = vmatprep.mubr.bf16.mxu0 0
    %503 = vmatmul.mubr.bf16.gmra.mrb[0].mxu0 %v288
    %v504 = vpop.f32.mrb[0].mxu0
    %v505 = vadd.f32 0.0, %v504
    %v506 = vpop.f32.mrb[0].mxu0
    %v507 = vpop.f32.mrb[0].mxu0
    %v508 = vadd.f32 0.0, %v507
    %v509 = vpop.f32.mrb[0].mxu0
    %510 = vmatprep.mubr.bf16.mxu0 0
    %511 = vmatmul.mubr.bf16.gmra.mrb[0].mxu0 %v289
    %v512 = vpop.f32.mrb[0].mxu0
    %v513 = vadd.f32 0.0, %v512
    %v514 = vpop.f32.mrb[0].mxu0
    %v515 = vpop.f32.mrb[0].mxu0
    %v516 = vadd.f32 0.0, %v515
    %v517 = vpop.f32.mrb[0].mxu0
    %518 = vmatprep.mubr.bf16.mxu0 0
    %519 = vmatmul.mubr.bf16.gmra.mrb[0].mxu0 %v290
    %v520 = vpop.f32.mrb[0].mxu0
    %v521 = vadd.f32 0.0, %v520
    %v522 = vpop.f32.mrb[0].mxu0
    %v523 = vpop.f32.mrb[0].mxu0
    %v524 = vadd.f32 0.0, %v523
    %v525 = vpop.f32.mrb[0].mxu0
    %526 = vmatprep.mubr.bf16.mxu0 0
    %527 = vmatmul.mubr.bf16.gmra.mrb[0].mxu0 %v291
    %v528 = vpop.f32.mrb[0].mxu0
    %v529 = vadd.f32 0.0, %v528
    %v530 = vpop.f32.mrb[0].mxu0
    %v531 = vpop.f32.mrb[0].mxu0
    %v532 = vadd.f32 0.0, %v531
    %v533 = vpop.f32.mrb[0].mxu0
    %534 = vmatprep.mubr.bf16.mxu0 0
    %535 = vmatmul.mubr.bf16.gmra.mrb[0].mxu0 %v292
    %v536 = vpop.f32.mrb[0].mxu0
    %v537 = vadd.f32 0.0, %v536
    %v538 = vpop.f32.mrb[0].mxu0
    %v539 = vpop.f32.mrb[0].mxu0
    %v540 = vadd.f32 0.0, %v539
    %v541 = vpop.f32.mrb[0].mxu0
    %542 = vmatprep.mubr.bf16.mxu0 0
    %543 = vmatmul.mubr.bf16.gmra.mrb[0].mxu0 %v293
    %v544 = vpop.f32.mrb[0].mxu0
    %v545 = vadd.f32 0.0, %v544
    %v546 = vpop.f32.mrb[0].mxu0
    %v547 = vpop.f32.mrb[0].mxu0
    %v548 = vadd.f32 0.0, %v547
    %v549 = vpop.f32.mrb[0].mxu0
    %550 = vmatprep.mubr.bf16.mxu0 0
    %551 = vmatmul.mubr.bf16.gmra.mrb[0].mxu0 %v294
    %v552 = vpop.f32.mrb[0].mxu0
    %v553 = vadd.f32 0.0, %v552
    %v554 = vpop.f32.mrb[0].mxu0
    %v555 = vpop.f32.mrb[0].mxu0
    %v556 = vadd.f32 0.0, %v555
    %v557 = vpop.f32.mrb[0].mxu0
    %558 = vmatprep.mubr.bf16.mxu0 0
    %559 = vmatmul.mubr.bf16.gmra.mrb[0].mxu0 %v295
    %v560 = vpop.f32.mrb[0].mxu0
    %v561 = vadd.f32 0.0, %v560
    %v562 = vpop.f32.mrb[0].mxu0
    %v563 = vpop.f32.mrb[0].mxu0
    %v564 = vadd.f32 0.0, %v563
    %v565 = vpop.f32.mrb[0].mxu0
    %566 = vmatprep.mubr.bf16.mxu0 0
    %567 = vmatmul.mubr.bf16.gmra.mrb[0].mxu0 %v296
    %v568 = vpop.f32.mrb[0].mxu0
    %v569 = vadd.f32 0.0, %v568
    %v570 = vpop.f32.mrb[0].mxu0
    %v571 = vpop.f32.mrb[0].mxu0
    %v572 = vadd.f32 0.0, %v571
    %v573 = vpop.f32.mrb[0].mxu0
    %574 = vmatprep.mubr.bf16.mxu0 0
    %575 = vmatmul.mubr.bf16.gmra.mrb[0].mxu0 %v297
    %v576 = vpop.f32.mrb[0].mxu0
    %v577 = vadd.f32 0.0, %v576
    %v578 = vpop.f32.mrb[0].mxu0
    %v579 = vpop.f32.mrb[0].mxu0
    %v580 = vadd.f32 0.0, %v579
    %v581 = vpop.f32.mrb[0].mxu0
    %582 = vmatprep.mubr.bf16.mxu0 0
    %583 = vmatmul.mubr.bf16.gmra.mrb[0].mxu0 %v298
    %v584 = vpop.f32.mrb[0].mxu0
    %v585 = vadd.f32 0.0, %v584
    %v586 = vpop.f32.mrb[0].mxu0
    %v587 = vpop.f32.mrb[0].mxu0
    %v588 = vadd.f32 0.0, %v587
    %v589 = vpop.f32.mrb[0].mxu0
    %590 = vmatprep.mubr.bf16.mxu0 0
    %591 = vmatmul.mubr.bf16.gmra.mrb[0].mxu0 %v299
    %v592 = vpop.f32.mrb[0].mxu0
    %v593 = vadd.f32 0.0, %v592
    %v594 = vpop.f32.mrb[0].mxu0
    %v595 = vpop.f32.mrb[0].mxu0
    %v596 = vadd.f32 0.0, %v595
    %v597 = vpop.f32.mrb[0].mxu0
    %598 = vmatprep.mubr.bf16.mxu0 0
    %599 = vmatmul.mubr.bf16.gmra.mrb[0].mxu0 %v300
    %v600 = vpop.f32.mrb[0].mxu0
    %v601 = vadd.f32 0.0, %v600
    %v602 = vpop.f32.mrb[0].mxu0
    %v603 = vpop.f32.mrb[0].mxu0
    %v604 = vadd.f32 0.0, %v603
    %v605 = vpop.f32.mrb[0].mxu0
    %606 = vmatprep.mubr.bf16.mxu0 0
    %607 = vmatmul.mubr.bf16.gmra.mrb[0].mxu0 %v301
    %v608 = vpop.f32.mrb[0].mxu0
    %v609 = vadd.f32 0.0, %v608
    %v610 = vpop.f32.mrb[0].mxu0
    %v611 = vpop.f32.mrb[0].mxu0
    %v612 = vadd.f32 0.0, %v611
    %v613 = vpop.f32.mrb[0].mxu0
    %614 = vmatprep.mubr.bf16.mxu0 0
    %615 = vmatmul.mubr.bf16.gmra.mrb[0].mxu0 %v302
    %v616 = vpop.f32.mrb[0].mxu0
    %v617 = vadd.f32 0.0, %v616
    %v618 = vpop.f32.mrb[0].mxu0
    %v619 = vpop.f32.mrb[0].mxu0
    %v620 = vadd.f32 0.0, %v619
    %v621 = vpop.f32.mrb[0].mxu0
    %622 = vmatprep.mubr.bf16.mxu0 0
    %623 = vmatmul.mubr.bf16.gmra.mrb[0].mxu0 %v303
    %v624 = vpop.f32.mrb[0].mxu0
    %v625 = vadd.f32 0.0, %v624
    %v626 = vpop.f32.mrb[0].mxu0
    %v627 = vpop.f32.mrb[0].mxu0
    %v628 = vadd.f32 0.0, %v627
    %v629 = vpop.f32.mrb[0].mxu0
    %630 = vmatprep.mubr.bf16.mxu0 0
    %631 = vmatmul.mubr.bf16.gmra.mrb[0].mxu0 %v304
    %v632 = vpop.f32.mrb[0].mxu0
    %v633 = vadd.f32 0.0, %v632
    %v634 = vpop.f32.mrb[0].mxu0
    %v635 = vpop.f32.mrb[0].mxu0
    %v636 = vadd.f32 0.0, %v635
    %v637 = vpop.f32.mrb[0].mxu0
    %638 = vmatprep.mubr.bf16.mxu0 0
    %639 = vmatmul.mubr.bf16.gmra.mrb[0].mxu0 %v305
    %v640 = vpop.f32.mrb[0].mxu0
    %v641 = vadd.f32 0.0, %v640
    %v642 = vpop.f32.mrb[0].mxu0
    %v643 = vpop.f32.mrb[0].mxu0
    %v644 = vadd.f32 0.0, %v643
    %v645 = vpop.f32.mrb[0].mxu0
    %646 = vmatprep.mubr.bf16.mxu0 0
    %647 = vmatmul.mubr.bf16.gmra.mrb[0].mxu0 %v306
    %v648 = vpop.f32.mrb[0].mxu0
    %v649 = vadd.f32 0.0, %v648
    %v650 = vpop.f32.mrb[0].mxu0
    %v651 = vpop.f32.mrb[0].mxu0
    %v652 = vadd.f32 0.0, %v651
    %v653 = vpop.f32.mrb[0].mxu0
    %654 = vmatprep.mubr.bf16.mxu0 0
    %655 = vmatmul.mubr.bf16.gmra.mrb[0].mxu0 %v307
    %v656 = vpop.f32.mrb[0].mxu0
    %v657 = vadd.f32 0.0, %v656
    %v658 = vpop.f32.mrb[0].mxu0
    %v659 = vpop.f32.mrb[0].mxu0
    %v660 = vadd.f32 0.0, %v659
    %v661 = vpop.f32.mrb[0].mxu0
    %662 = vmatprep.mubr.bf16.mxu0 0
    %663 = vmatmul.mubr.bf16.gmra.mrb[0].mxu0 %v308
    %v664 = vpop.f32.mrb[0].mxu0
    %v665 = vadd.f32 0.0, %v664
    %v666 = vpop.f32.mrb[0].mxu0
    %v667 = vpop.f32.mrb[0].mxu0
    %v668 = vadd.f32 0.0, %v667
    %v669 = vpop.f32.mrb[0].mxu0
    %670 = vmatprep.mubr.bf16.mxu0 0
    %671 = vmatmul.mubr.bf16.gmra.mrb[0].mxu0 %v309
    %v672 = vpop.f32.mrb[0].mxu0
    %v673 = vadd.f32 0.0, %v672
    %v674 = vpop.f32.mrb[0].mxu0
    %v675 = vpop.f32.mrb[0].mxu0
    %v676 = vadd.f32 0.0, %v675
    %v677 = vpop.f32.mrb[0].mxu0
    %678 = vdwg.mxu0
    %v679 = vld [vmem:[#allocation7] sm:$0x1]
    %v681 = vlaneseq
    %v682 = vshrl.u32 %v681, 7
    %v683 = vsub.s32 0, %v682
    %v684 = vrot.slane %v679, %v683
    %v686 = vmul.f32 %v425, %v684
    %v687 = vmul.f32 %v428, %v684
    %v688 = vmul.f32 %v433, %v684
    %v689 = vmul.f32 %v436, %v684
    %v690 = vmul.f32 %v441, %v684
    %v691 = vmul.f32 %v444, %v684
    %v692 = vmul.f32 %v449, %v684
    %v693 = vmul.f32 %v452, %v684
    %v694 = vmul.f32 %v457, %v684
    %v695 = vmul.f32 %v460, %v684
    %v696 = vmul.f32 %v465, %v684
    %v697 = vmul.f32 %v468, %v684
    %v698 = vmul.f32 %v473, %v684
    %v699 = vmul.f32 %v476, %v684
    %v700 = vmul.f32 %v481, %v684
    %v701 = vmul.f32 %v484, %v684
    %v702 = vmul.f32 %v489, %v684
    %v703 = vmul.f32 %v492, %v684
    %v704 = vmul.f32 %v497, %v684
    %v705 = vmul.f32 %v500, %v684
    %v706 = vmul.f32 %v505, %v684
    %v707 = vmul.f32 %v508, %v684
    %v708 = vmul.f32 %v513, %v684
    %v709 = vmul.f32 %v516, %v684
    %v710 = vmul.f32 %v521, %v684
    %v711 = vmul.f32 %v524, %v684
    %v712 = vmul.f32 %v529, %v684
    %v713 = vmul.f32 %v532, %v684
    %v714 = vmul.f32 %v537, %v684
    %v715 = vmul.f32 %v540, %v684
    %v716 = vmul.f32 %v545, %v684
    %v717 = vmul.f32 %v548, %v684
    %v718 = vmul.f32 %v553, %v684
    %v719 = vmul.f32 %v556, %v684
    %v720 = vmul.f32 %v561, %v684
    %v721 = vmul.f32 %v564, %v684
    %v722 = vmul.f32 %v569, %v684
    %v723 = vmul.f32 %v572, %v684
    %v724 = vmul.f32 %v577, %v684
    %v725 = vmul.f32 %v580, %v684
    %v726 = vmul.f32 %v585, %v684
    %v727 = vmul.f32 %v588, %v684
    %v728 = vmul.f32 %v593, %v684
    %v729 = vmul.f32 %v596, %v684
    %v730 = vmul.f32 %v601, %v684
    %v731 = vmul.f32 %v604, %v684
    %v732 = vmul.f32 %v609, %v684
    %v733 = vmul.f32 %v612, %v684
    %v734 = vmul.f32 %v617, %v684
    %v735 = vmul.f32 %v620, %v684
    %v736 = vmul.f32 %v625, %v684
    %v737 = vmul.f32 %v628, %v684
    %v738 = vmul.f32 %v633, %v684
    %v739 = vmul.f32 %v636, %v684
    %v740 = vmul.f32 %v641, %v684
    %v741 = vmul.f32 %v644, %v684
    %v742 = vmul.f32 %v649, %v684
    %v743 = vmul.f32 %v652, %v684
    %v744 = vmul.f32 %v657, %v684
    %v745 = vmul.f32 %v660, %v684
    %v746 = vmul.f32 %v665, %v684
    %v747 = vmul.f32 %v668, %v684
    %v748 = vmul.f32 %v673, %v684
    %v749 = vmul.f32 %v676, %v684
    %v750 = vld [vmem:[#allocation8] sm:$0x1]
    %v752 = vlaneseq
    %v753 = vshrl.u32 %v752, 7
    %v754 = vsub.s32 0, %v753
    %v755 = vrot.slane %v750, %v754
    %v757 = vadd.f32 %v686, %v755
    %v758 = vadd.f32 %v687, %v755
    %v759 = vadd.f32 %v688, %v755
    %v760 = vadd.f32 %v689, %v755
    %v761 = vadd.f32 %v690, %v755
    %v762 = vadd.f32 %v691, %v755
    %v763 = vadd.f32 %v692, %v755
    %v764 = vadd.f32 %v693, %v755
    %v765 = vadd.f32 %v694, %v755
    %v766 = vadd.f32 %v695, %v755
    %v767 = vadd.f32 %v696, %v755
    %v768 = vadd.f32 %v697, %v755
    %v769 = vadd.f32 %v698, %v755
    %v770 = vadd.f32 %v699, %v755
    %v771 = vadd.f32 %v700, %v755
    %v772 = vadd.f32 %v701, %v755
    %v773 = vadd.f32 %v702, %v755
    %v774 = vadd.f32 %v703, %v755
    %v775 = vadd.f32 %v704, %v755
    %v776 = vadd.f32 %v705, %v755
    %v777 = vadd.f32 %v706, %v755
    %v778 = vadd.f32 %v707, %v755
    %v779 = vadd.f32 %v708, %v755
    %v780 = vadd.f32 %v709, %v755
    %v781 = vadd.f32 %v710, %v755
    %v782 = vadd.f32 %v711, %v755
    %v783 = vadd.f32 %v712, %v755
    %v784 = vadd.f32 %v713, %v755
    %v785 = vadd.f32 %v714, %v755
    %v786 = vadd.f32 %v715, %v755
    %v787 = vadd.f32 %v716, %v755
    %v788 = vadd.f32 %v717, %v755
    %v789 = vadd.f32 %v718, %v755
    %v790 = vadd.f32 %v719, %v755
    %v791 = vadd.f32 %v720, %v755
    %v792 = vadd.f32 %v721, %v755
    %v793 = vadd.f32 %v722, %v755
    %v794 = vadd.f32 %v723, %v755
    %v795 = vadd.f32 %v724, %v755
    %v796 = vadd.f32 %v725, %v755
    %v797 = vadd.f32 %v726, %v755
    %v798 = vadd.f32 %v727, %v755
    %v799 = vadd.f32 %v728, %v755
    %v800 = vadd.f32 %v729, %v755
    %v801 = vadd.f32 %v730, %v755
    %v802 = vadd.f32 %v731, %v755
    %v803 = vadd.f32 %v732, %v755
    %v804 = vadd.f32 %v733, %v755
    %v805 = vadd.f32 %v734, %v755
    %v806 = vadd.f32 %v735, %v755
    %v807 = vadd.f32 %v736, %v755
    %v808 = vadd.f32 %v737, %v755
    %v809 = vadd.f32 %v738, %v755
    %v810 = vadd.f32 %v739, %v755
    %v811 = vadd.f32 %v740, %v755
    %v812 = vadd.f32 %v741, %v755
    %v813 = vadd.f32 %v742, %v755
    %v814 = vadd.f32 %v743, %v755
    %v815 = vadd.f32 %v744, %v755
    %v816 = vadd.f32 %v745, %v755
    %v817 = vadd.f32 %v746, %v755
    %v818 = vadd.f32 %v747, %v755
    %v819 = vadd.f32 %v748, %v755
    %v820 = vadd.f32 %v749, %v755
    %v821 = vmax.f32 %v757, 0.0
    %v822 = vmax.f32 %v758, 0.0
    %v823 = vmax.f32 %v759, 0.0
    %v824 = vmax.f32 %v760, 0.0
    %v825 = vmax.f32 %v761, 0.0
    %v826 = vmax.f32 %v762, 0.0
    %v827 = vmax.f32 %v763, 0.0
    %v828 = vmax.f32 %v764, 0.0
    %v829 = vmax.f32 %v765, 0.0
    %v830 = vmax.f32 %v766, 0.0
    %v831 = vmax.f32 %v767, 0.0
    %v832 = vmax.f32 %v768, 0.0
    %v833 = vmax.f32 %v769, 0.0
    %v834 = vmax.f32 %v770, 0.0
    %v835 = vmax.f32 %v771, 0.0
    %v836 = vmax.f32 %v772, 0.0
    %v837 = vmax.f32 %v773, 0.0
    %v838 = vmax.f32 %v774, 0.0
    %v839 = vmax.f32 %v775, 0.0
    %v840 = vmax.f32 %v776, 0.0
    %v841 = vmax.f32 %v777, 0.0
    %v842 = vmax.f32 %v778, 0.0
    %v843 = vmax.f32 %v779, 0.0
    %v844 = vmax.f32 %v780, 0.0
    %v845 = vmax.f32 %v781, 0.0
    %v846 = vmax.f32 %v782, 0.0
    %v847 = vmax.f32 %v783, 0.0
    %v848 = vmax.f32 %v784, 0.0
    %v849 = vmax.f32 %v785, 0.0
    %v850 = vmax.f32 %v786, 0.0
    %v851 = vmax.f32 %v787, 0.0
    %v852 = vmax.f32 %v788, 0.0
    %v853 = vmax.f32 %v789, 0.0
    %v854 = vmax.f32 %v790, 0.0
    %v855 = vmax.f32 %v791, 0.0
    %v856 = vmax.f32 %v792, 0.0
    %v857 = vmax.f32 %v793, 0.0
    %v858 = vmax.f32 %v794, 0.0
    %v859 = vmax.f32 %v795, 0.0
    %v860 = vmax.f32 %v796, 0.0
    %v861 = vmax.f32 %v797, 0.0
    %v862 = vmax.f32 %v798, 0.0
    %v863 = vmax.f32 %v799, 0.0
    %v864 = vmax.f32 %v800, 0.0
    %v865 = vmax.f32 %v801, 0.0
    %v866 = vmax.f32 %v802, 0.0
    %v867 = vmax.f32 %v803, 0.0
    %v868 = vmax.f32 %v804, 0.0
    %v869 = vmax.f32 %v805, 0.0
    %v870 = vmax.f32 %v806, 0.0
    %v871 = vmax.f32 %v807, 0.0
    %v872 = vmax.f32 %v808, 0.0
    %v873 = vmax.f32 %v809, 0.0
    %v874 = vmax.f32 %v810, 0.0
    %v875 = vmax.f32 %v811, 0.0
    %v876 = vmax.f32 %v812, 0.0
    %v877 = vmax.f32 %v813, 0.0
    %v878 = vmax.f32 %v814, 0.0
    %v879 = vmax.f32 %v815, 0.0
    %v880 = vmax.f32 %v816, 0.0
    %v881 = vmax.f32 %v817, 0.0
    %v882 = vmax.f32 %v818, 0.0
    %v883 = vmax.f32 %v819, 0.0
    %v884 = vmax.f32 %v820, 0.0
    %v885 = vpack.c.bf16 %v822, %v821
    %v886 = vpack.c.bf16 %v824, %v823
    %v887 = vpack.c.bf16 %v826, %v825
    %v888 = vpack.c.bf16 %v828, %v827
    %v889 = vpack.c.bf16 %v830, %v829
    %v890 = vpack.c.bf16 %v832, %v831
    %v891 = vpack.c.bf16 %v834, %v833
    %v892 = vpack.c.bf16 %v836, %v835
    %v893 = vpack.c.bf16 %v838, %v837
    %v894 = vpack.c.bf16 %v840, %v839
    %v895 = vpack.c.bf16 %v842, %v841
    %v896 = vpack.c.bf16 %v844, %v843
    %v897 = vpack.c.bf16 %v846, %v845
    %v898 = vpack.c.bf16 %v848, %v847
    %v899 = vpack.c.bf16 %v850, %v849
    %v900 = vpack.c.bf16 %v852, %v851
    %v901 = vpack.c.bf16 %v854, %v853
    %v902 = vpack.c.bf16 %v856, %v855
    %v903 = vpack.c.bf16 %v858, %v857
    %v904 = vpack.c.bf16 %v860, %v859
    %v905 = vpack.c.bf16 %v862, %v861
    %v906 = vpack.c.bf16 %v864, %v863
    %v907 = vpack.c.bf16 %v866, %v865
    %v908 = vpack.c.bf16 %v868, %v867
    %v909 = vpack.c.bf16 %v870, %v869
    %v910 = vpack.c.bf16 %v872, %v871
    %v911 = vpack.c.bf16 %v874, %v873
    %v912 = vpack.c.bf16 %v876, %v875
    %v913 = vpack.c.bf16 %v878, %v877
    %v914 = vpack.c.bf16 %v880, %v879
    %v915 = vpack.c.bf16 %v882, %v881
    %v916 = vpack.c.bf16 %v884, %v883
    %v949 = vunpack.c.l.b16 %v885
    %v950 = vunpack.c.h.b16 %v885
    %v951 = vunpack.c.l.b16 %v886
    %v952 = vunpack.c.h.b16 %v886
    %v953 = vunpack.c.l.b16 %v887
    %v954 = vunpack.c.h.b16 %v887
    %v955 = vunpack.c.l.b16 %v888
    %v956 = vunpack.c.h.b16 %v888
    %v957 = vunpack.c.l.b16 %v889
    %v958 = vunpack.c.h.b16 %v889
    %v959 = vunpack.c.l.b16 %v890
    %v960 = vunpack.c.h.b16 %v890
    %v961 = vunpack.c.l.b16 %v891
    %v962 = vunpack.c.h.b16 %v891
    %v963 = vunpack.c.l.b16 %v892
    %v964 = vunpack.c.h.b16 %v892
    %v965 = vunpack.c.l.b16 %v893
    %v966 = vunpack.c.h.b16 %v893
    %v967 = vunpack.c.l.b16 %v894
    %v968 = vunpack.c.h.b16 %v894
    %v969 = vunpack.c.l.b16 %v895
    %v970 = vunpack.c.h.b16 %v895
    %v971 = vunpack.c.l.b16 %v896
    %v972 = vunpack.c.h.b16 %v896
    %v973 = vunpack.c.l.b16 %v897
    %v974 = vunpack.c.h.b16 %v897
    %v975 = vunpack.c.l.b16 %v898
    %v976 = vunpack.c.h.b16 %v898
    %v977 = vunpack.c.l.b16 %v899
    %v978 = vunpack.c.h.b16 %v899
    %v979 = vunpack.c.l.b16 %v900
    %v980 = vunpack.c.h.b16 %v900
    %v981 = vunpack.c.l.b16 %v901
    %v982 = vunpack.c.h.b16 %v901
    %v983 = vunpack.c.l.b16 %v902
    %v984 = vunpack.c.h.b16 %v902
    %v985 = vunpack.c.l.b16 %v903
    %v986 = vunpack.c.h.b16 %v903
    %v987 = vunpack.c.l.b16 %v904
    %v988 = vunpack.c.h.b16 %v904
    %v989 = vunpack.c.l.b16 %v905
    %v990 = vunpack.c.h.b16 %v905
    %v991 = vunpack.c.l.b16 %v906
    %v992 = vunpack.c.h.b16 %v906
    %v993 = vunpack.c.l.b16 %v907
    %v994 = vunpack.c.h.b16 %v907
    %v995 = vunpack.c.l.b16 %v908
    %v996 = vunpack.c.h.b16 %v908
    %v997 = vunpack.c.l.b16 %v909
    %v998 = vunpack.c.h.b16 %v909
    %v999 = vunpack.c.l.b16 %v910
    %v1000 = vunpack.c.h.b16 %v910
    %v1001 = vunpack.c.l.b16 %v911
    %v1002 = vunpack.c.h.b16 %v911
    %v1003 = vunpack.c.l.b16 %v912
    %v1004 = vunpack.c.h.b16 %v912
    %v1005 = vunpack.c.l.b16 %v913
    %v1006 = vunpack.c.h.b16 %v913
    %v1007 = vunpack.c.l.b16 %v914
    %v1008 = vunpack.c.h.b16 %v914
    %v1009 = vunpack.c.l.b16 %v915
    %v1010 = vunpack.c.h.b16 %v915
    %v1011 = vunpack.c.l.b16 %v916
    %v1012 = vunpack.c.h.b16 %v916
    %v1013 = vpack.c.b16 %v949, %v949
    %v1014 = vpack.c.b16 %v950, %v950
    %v1015 = vpack.c.b16 %v951, %v951
    %v1016 = vpack.c.b16 %v952, %v952
    %v1017 = vpack.c.b16 %v953, %v953
    %v1018 = vpack.c.b16 %v954, %v954
    %v1019 = vpack.c.b16 %v955, %v955
    %v1020 = vpack.c.b16 %v956, %v956
    %v1021 = vpack.c.b16 %v957, %v957
    %v1022 = vpack.c.b16 %v958, %v958
    %v1023 = vpack.c.b16 %v959, %v959
    %v1024 = vpack.c.b16 %v960, %v960
    %v1025 = vpack.c.b16 %v961, %v961
    %v1026 = vpack.c.b16 %v962, %v962
    %v1027 = vpack.c.b16 %v963, %v963
    %v1028 = vpack.c.b16 %v964, %v964
    %v1029 = vpack.c.b16 %v965, %v965
    %v1030 = vpack.c.b16 %v966, %v966
    %v1031 = vpack.c.b16 %v967, %v967
    %v1032 = vpack.c.b16 %v968, %v968
    %v1033 = vpack.c.b16 %v969, %v969
    %v1034 = vpack.c.b16 %v970, %v970
    %v1035 = vpack.c.b16 %v971, %v971
    %v1036 = vpack.c.b16 %v972, %v972
    %v1037 = vpack.c.b16 %v973, %v973
    %v1038 = vpack.c.b16 %v974, %v974
    %v1039 = vpack.c.b16 %v975, %v975
    %v1040 = vpack.c.b16 %v976, %v976
    %v1041 = vpack.c.b16 %v977, %v977
    %v1042 = vpack.c.b16 %v978, %v978
    %v1043 = vpack.c.b16 %v979, %v979
    %v1044 = vpack.c.b16 %v980, %v980
    %v1045 = vpack.c.b16 %v981, %v981
    %v1046 = vpack.c.b16 %v982, %v982
    %v1047 = vpack.c.b16 %v983, %v983
    %v1048 = vpack.c.b16 %v984, %v984
    %v1049 = vpack.c.b16 %v985, %v985
    %v1050 = vpack.c.b16 %v986, %v986
    %v1051 = vpack.c.b16 %v987, %v987
    %v1052 = vpack.c.b16 %v988, %v988
    %v1053 = vpack.c.b16 %v989, %v989
    %v1054 = vpack.c.b16 %v990, %v990
    %v1055 = vpack.c.b16 %v991, %v991
    %v1056 = vpack.c.b16 %v992, %v992
    %v1057 = vpack.c.b16 %v993, %v993
    %v1058 = vpack.c.b16 %v994, %v994
    %v1059 = vpack.c.b16 %v995, %v995
    %v1060 = vpack.c.b16 %v996, %v996
    %v1061 = vpack.c.b16 %v997, %v997
    %v1062 = vpack.c.b16 %v998, %v998
    %v1063 = vpack.c.b16 %v999, %v999
    %v1064 = vpack.c.b16 %v1000, %v1000
    %v1065 = vpack.c.b16 %v1001, %v1001
    %v1066 = vpack.c.b16 %v1002, %v1002
    %v1067 = vpack.c.b16 %v1003, %v1003
    %v1068 = vpack.c.b16 %v1004, %v1004
    %v1069 = vpack.c.b16 %v1005, %v1005
    %v1070 = vpack.c.b16 %v1006, %v1006
    %v1071 = vpack.c.b16 %v1007, %v1007
    %v1072 = vpack.c.b16 %v1008, %v1008
    %v1073 = vpack.c.b16 %v1009, %v1009
    %v1074 = vpack.c.b16 %v1010, %v1010
    %v1075 = vpack.c.b16 %v1011, %v1011
    %v1076 = vpack.c.b16 %v1012, %v1012
    %1141 = vst [vmem:[#allocation10] sm:$0xf] %v1013
    %1142 = vst [vmem:[#allocation10 + $0x4] sm:$0xf] %v1014
    %1143 = vst [vmem:[#allocation10 + $0x8] sm:$0xf] %v1015
    %1144 = vst [vmem:[#allocation10 + $0xc] sm:$0xf] %v1016
    %1145 = vst [vmem:[#allocation10 + $0x10] sm:$0xf] %v1017
    %1146 = vst [vmem:[#allocation10 + $0x14] sm:$0xf] %v1018
    %1147 = vst [vmem:[#allocation10 + $0x18] sm:$0xf] %v1019
    %1148 = vst [vmem:[#allocation10 + $0x1c] sm:$0xf] %v1020
    %1149 = vst [vmem:[#allocation10 + $0x20] sm:$0xf] %v1021
    %1150 = vst [vmem:[#allocation10 + $0x24] sm:$0xf] %v1022
    %1151 = vst [vmem:[#allocation10 + $0x28] sm:$0xf] %v1023
    %1152 = vst [vmem:[#allocation10 + $0x2c] sm:$0xf] %v1024
    %1153 = vst [vmem:[#allocation10 + $0x30] sm:$0xf] %v1025
    %1154 = vst [vmem:[#allocation10 + $0x34] sm:$0xf] %v1026
    %1155 = vst [vmem:[#allocation10 + $0x38] sm:$0xf] %v1027
    %1156 = vst [vmem:[#allocation10 + $0x3c] sm:$0xf] %v1028
    %1157 = vst [vmem:[#allocation10 + $0x40] sm:$0xf] %v1029
    %1158 = vst [vmem:[#allocation10 + $0x44] sm:$0xf] %v1030
    %1159 = vst [vmem:[#allocation10 + $0x48] sm:$0xf] %v1031
    %1160 = vst [vmem:[#allocation10 + $0x4c] sm:$0xf] %v1032
    %1161 = vst [vmem:[#allocation10 + $0x50] sm:$0xf] %v1033
    %1162 = vst [vmem:[#allocation10 + $0x54] sm:$0xf] %v1034
    %1163 = vst [vmem:[#allocation10 + $0x58] sm:$0xf] %v1035
    %1164 = vst [vmem:[#allocation10 + $0x5c] sm:$0xf] %v1036
    %1165 = vst [vmem:[#allocation10 + $0x60] sm:$0xf] %v1037
    %1166 = vst [vmem:[#allocation10 + $0x64] sm:$0xf] %v1038
    %1167 = vst [vmem:[#allocation10 + $0x68] sm:$0xf] %v1039
    %1168 = vst [vmem:[#allocation10 + $0x6c] sm:$0xf] %v1040
    %1169 = vst [vmem:[#allocation10 + $0x70] sm:$0xf] %v1041
    %1170 = vst [vmem:[#allocation10 + $0x74] sm:$0xf] %v1042
    %1171 = vst [vmem:[#allocation10 + $0x78] sm:$0xf] %v1043
    %1172 = vst [vmem:[#allocation10 + $0x7c] sm:$0xf] %v1044
    %1173 = vst [vmem:[#allocation10 + $0x80] sm:$0xf] %v1045
    %1174 = vst [vmem:[#allocation10 + $0x84] sm:$0xf] %v1046
    %1175 = vst [vmem:[#allocation10 + $0x88] sm:$0xf] %v1047
    %1176 = vst [vmem:[#allocation10 + $0x8c] sm:$0xf] %v1048
    %1177 = vst [vmem:[#allocation10 + $0x90] sm:$0xf] %v1049
    %1178 = vst [vmem:[#allocation10 + $0x94] sm:$0xf] %v1050
    %1179 = vst [vmem:[#allocation10 + $0x98] sm:$0xf] %v1051
    %1180 = vst [vmem:[#allocation10 + $0x9c] sm:$0xf] %v1052
    %1181 = vst [vmem:[#allocation10 + $0xa0] sm:$0xf] %v1053
    %1182 = vst [vmem:[#allocation10 + $0xa4] sm:$0xf] %v1054
    %1183 = vst [vmem:[#allocation10 + $0xa8] sm:$0xf] %v1055
    %1184 = vst [vmem:[#allocation10 + $0xac] sm:$0xf] %v1056
    %1185 = vst [vmem:[#allocation10 + $0xb0] sm:$0xf] %v1057
    %1186 = vst [vmem:[#allocation10 + $0xb4] sm:$0xf] %v1058
    %1187 = vst [vmem:[#allocation10 + $0xb8] sm:$0xf] %v1059
    %1188 = vst [vmem:[#allocation10 + $0xbc] sm:$0xf] %v1060
    %1189 = vst [vmem:[#allocation10 + $0xc0] sm:$0xf] %v1061
    %1190 = vst [vmem:[#allocation10 + $0xc4] sm:$0xf] %v1062
    %1191 = vst [vmem:[#allocation10 + $0xc8] sm:$0xf] %v1063
    %1192 = vst [vmem:[#allocation10 + $0xcc] sm:$0xf] %v1064
    %1193 = vst [vmem:[#allocation10 + $0xd0] sm:$0xf] %v1065
    %1194 = vst [vmem:[#allocation10 + $0xd4] sm:$0xf] %v1066
    %1195 = vst [vmem:[#allocation10 + $0xd8] sm:$0xf] %v1067
    %1196 = vst [vmem:[#allocation10 + $0xdc] sm:$0xf] %v1068
    %1197 = vst [vmem:[#allocation10 + $0xe0] sm:$0xf] %v1069
    %1198 = vst [vmem:[#allocation10 + $0xe4] sm:$0xf] %v1070
    %1199 = vst [vmem:[#allocation10 + $0xe8] sm:$0xf] %v1071
    %1200 = vst [vmem:[#allocation10 + $0xec] sm:$0xf] %v1072
    %1201 = vst [vmem:[#allocation10 + $0xf0] sm:$0xf] %v1073
    %1202 = vst [vmem:[#allocation10 + $0xf4] sm:$0xf] %v1074
    %1203 = vst [vmem:[#allocation10 + $0xf8] sm:$0xf] %v1075
    %1204 = vst [vmem:[#allocation10 + $0xfc] sm:$0xf] %v1076
    // Predicated region
    $region34: #{bottleneck_forward.3} parent=1 // pred_check
      _
    $region35: #{bottleneck_forward.3} parent=1 // pred_check_branch
      %1206 = sbr.rel (0) target = $region37
    $region36: #{bottleneck_forward.3} parent=1 // pred_region
      %s1208 = ssub.s32 4096, 4096
      %1209 = vsyncadd [#allocation4], %s1208
      %s1210 = sshll.u32 [#allocation10], 4
      %s1211 = int_to_ptr.vmem [resolvable:$true] %s1210
      %1216 = dma.vmem_to_hbm [thread:$0]  %s1211, 4096, %s4, [#allocation4], 64, 64, 4
    $region37: #{bottleneck_forward.3} parent=1 // pred_fallthru
      _
    // Predicated region
    $region38: #{bottleneck_forward.3} parent=1 // pred_check
      _
    $region39: #{bottleneck_forward.3} parent=1 // pred_check_branch
      %1218 = sbr.rel (0) target = $region41
    $region40: #{bottleneck_forward.3} parent=1 // pred_region
      %1219 = dma.done [#allocation4], 4096
    $region41: #{bottleneck_forward.3} parent=1 // pred_fallthru
      _
    %1220 = vsyncpa [#allocation3], 1
    %1221 = vsyncpa [#allocation6], 1
    %1222 = vsyncpa [#allocation9], 1
    %1223 = vsyncpa [#allocation4], 1

// kernel: bottleneck_forward.5
$region0: #{bottleneck_forward.5}
  #allocation0 [shape = 'u32[]', space=smem, size = 0x4, offset = 0x4, fixed_abs, tag = 'smem constant byte address 0x4 - core index']
  #allocation1 [shape = 'u32[144,128]{1,0:T(1,128)}', space=vmem, size = 0x12000, scoped, tag = 'internal scratch']
  %s0 = inlined_call_operand.hbm [shape: bf16[2,64,128], index: 0, kind: input, shape index: {}]
  %s1 = inlined_call_operand.hbm [shape: bf16[128,128], index: 1, kind: input, shape index: {}]
  %s2 = inlined_call_operand.hbm [shape: f32[1,128], index: 2, kind: input, shape index: {}]
  %s3 = inlined_call_operand.hbm [shape: f32[1,128], index: 3, kind: input, shape index: {}]
  %s4 = inlined_call_operand.hbm [shape: bf16[2,8,2,8,256], index: 4, kind: input, shape index: {}]
  %s5 = inlined_call_operand.hbm [shape: bf16[256,128], index: 5, kind: input, shape index: {}]
  %s6 = inlined_call_operand.hbm [shape: f32[1,128], index: 6, kind: input, shape index: {}]
  %s7 = inlined_call_operand.hbm [shape: f32[1,128], index: 7, kind: input, shape index: {}]
  %s8 = inlined_call_operand.hbm [shape: f32[2,64,128], index: 8, kind: output, shape index: {}]
  %s9 = sld [smem:[#allocation0]]
  $region97: #{bottleneck_forward.5} parent=0
    _
  %s11 = ssub.s32 1, %s9
  %s12 = scalar_select 0, %s11, %s9
  $region1: #{bottleneck_forward.5} parent=0
    #allocation2 [shape = 'u8[32768]{0}', space=vmem, size = 0x8000, scoped, tag = 'input window, operand 0']
    #allocation3 [shape = 's32[2]{0}', space=sflag, size = 0x8, scoped, tag = 'scoped memory for bottleneck_forward.5']
    #allocation4 [shape = 's32[2]{0}', space=sflag, size = 0x8, scoped, tag = 'scoped memory for bottleneck_forward.5']
    #allocation5 [shape = 'u8[32768]{0}', space=vmem, size = 0x8000, scoped, tag = 'input window, operand 1, single buffered']
    #allocation6 [shape = 's32[1]{0}', space=sflag, size = 0x4, scoped, tag = 'scoped memory for bottleneck_forward.5']
    #allocation7 [shape = 'u8[512]{0}', space=vmem, size = 0x400, scoped, tag = 'input window, operand 2, single buffered']
    #allocation8 [shape = 'u8[512]{0}', space=vmem, size = 0x400, scoped, tag = 'input window, operand 3, single buffered']
    #allocation9 [shape = 's32[1]{0}', space=sflag, size = 0x4, scoped, tag = 'scoped memory for bottleneck_forward.5']
    #allocation10 [shape = 'u8[65536]{0}', space=vmem, size = 0x10000, scoped, tag = 'input window, operand 4']
    #allocation11 [shape = 'u8[65536]{0}', space=vmem, size = 0x10000, scoped, tag = 'input window, operand 5, single buffered']
    #allocation12 [shape = 'u8[512]{0}', space=vmem, size = 0x400, scoped, tag = 'input window, operand 6, single buffered']
    #allocation13 [shape = 'u8[512]{0}', space=vmem, size = 0x400, scoped, tag = 'input window, operand 7, single buffered']
    #allocation14 [shape = 's32[1]{0}', space=sflag, size = 0x4, scoped, tag = 'scoped memory for bottleneck_forward.5']
    #allocation15 [shape = 'u8[65536]{0}', space=vmem, size = 0x10000, scoped, tag = 'output window, operand 0']
    %13 = vsyncpa [#allocation3], 0
    %s14 = scalar_lea.sflag [#allocation3], 1
    %15 = vsyncpa %s14, 0
    %16 = vsyncpa [#allocation6], 0
    %17 = vsyncpa [#allocation9], 0
    %18 = vsyncpa [#allocation14], 0
    %19 = vsyncpa [#allocation4], 0
    %s20 = scalar_lea.sflag [#allocation4], 1
    %21 = vsyncpa %s20, 0
    loop: start=0, step=1, limit=4
    $region2: #{bottleneck_forward.5} parent=1 // loop_pre_header
      _
    $region3: #{bottleneck_forward.5} parent=1 // loop_header
      %s23 = sphi 0, %s27
      %p24 = scmp.ge.s32.totalorder %s23, 4
      %s33 = sphi 0, %s35
      %s36 = sphi 0, %s33
      %s37 = sphi 0, %s36
      %s53 = sphi 0, %s37
      %s57 = sphi 0, %s57
      %s59 = sphi 0, %s57
      %s60 = sphi 0, %s59
      %s74 = sphi 0, %s60
      %s78 = sphi 0, %s78
      %s80 = sphi 0, %s78
      %s81 = sphi 0, %s80
      %s95 = sphi 0, %s81
      %s99 = sphi 0, %s99
      %s101 = sphi 0, %s99
      %s102 = sphi 0, %s101
      %s116 = sphi 0, %s102
      %s122 = sphi 0, %s124
      %s125 = sphi 0, %s122
      %s126 = sphi 0, %s125
      %s142 = sphi 0, %s126
      %s146 = sphi 0, %s146
      %s148 = sphi 0, %s146
      %s149 = sphi 0, %s148
      %s163 = sphi 0, %s149
      %s167 = sphi 0, %s167
      %s169 = sphi 0, %s167
      %s170 = sphi 0, %s169
      %s184 = sphi 0, %s170
      %s188 = sphi 0, %s188
      %s190 = sphi 0, %s188
      %s191 = sphi 0, %s190
      %s205 = sphi 0, %s191
      %s211 = sphi 0, %s213
      %s214 = sphi 0, %s211
      %s215 = sphi 0, %s214
      %s231 = sphi 0, %s215
    $region4: #{bottleneck_forward.5} parent=1 // loop_header_branch
      %26 = sbr.rel (%p24) target = $region8
    $region5: #{bottleneck_forward.5} parent=1 // loop_body
      %s28 = ssub.s32 %s23, 1
      %s29 = ssub.s32 %s23, 2
      %s30 = sadd.s32 %s23, 1
      %s31 = ssub.s32 %s23, %s30
      %p32 = scmp.eq.s32.totalorder %s31, 0
      %s34 = sadd.s32 %s33, 1
      %s35 = scalar_select %p32, %s33, %s34
      %p38 = pneg %p32
      %p39 = scmp.eq.s32.totalorder %s23, 1
      %p40 = por %p38, %p39
      %p41 = scmp.ne.s32.totalorder %s33, %s36
      %p42 = scmp.eq.s32.totalorder %s23, 0
      %p43 = por %p41, %p42
      %p44 = scmp.ne.s32.totalorder %s33, %s36
      %p45 = scmp.eq.s32.totalorder %s28, 1
      %p46 = por %p44, %p45
      %p47 = scmp.ne.s32.totalorder %s36, %s37
      %p48 = scmp.eq.s32.totalorder %s28, 0
      %p49 = por %p47, %p48
      %p50 = scmp.ne.s32.totalorder %s36, %s37
      %p51 = scmp.eq.s32.totalorder %s29, 1
      %p52 = por %p50, %p51
      %p54 = scmp.ne.s32.totalorder %s37, %s53
      %p55 = scmp.eq.s32.totalorder %s29, 0
      %p56 = por %p54, %p55
      %s58 = sadd.s32 %s57, 1
      %p61 = scmp.eq.s32.totalorder %s23, 1
      %p62 = scmp.ne.s32.totalorder %s57, %s59
      %p63 = scmp.eq.s32.totalorder %s23, 0
      %p64 = por %p62, %p63
      %p65 = scmp.ne.s32.totalorder %s57, %s59
      %p66 = scmp.eq.s32.totalorder %s28, 1
      %p67 = por %p65, %p66
      %p68 = scmp.ne.s32.totalorder %s59, %s60
      %p69 = scmp.eq.s32.totalorder %s28, 0
      %p70 = por %p68, %p69
      %p71 = scmp.ne.s32.totalorder %s59, %s60
      %p72 = scmp.eq.s32.totalorder %s29, 1
      %p73 = por %p71, %p72
      %p75 = scmp.ne.s32.totalorder %s60, %s74
      %p76 = scmp.eq.s32.totalorder %s29, 0
      %p77 = por %p75, %p76
      %s79 = sadd.s32 %s78, 1
      %p82 = scmp.eq.s32.totalorder %s23, 1
      %p83 = scmp.ne.s32.totalorder %s78, %s80
      %p84 = scmp.eq.s32.totalorder %s23, 0
      %p85 = por %p83, %p84
      %p86 = scmp.ne.s32.totalorder %s78, %s80
      %p87 = scmp.eq.s32.totalorder %s28, 1
      %p88 = por %p86, %p87
      %p89 = scmp.ne.s32.totalorder %s80, %s81
      %p90 = scmp.eq.s32.totalorder %s28, 0
      %p91 = por %p89, %p90
      %p92 = scmp.ne.s32.totalorder %s80, %s81
      %p93 = scmp.eq.s32.totalorder %s29, 1
      %p94 = por %p92, %p93
      %p96 = scmp.ne.s32.totalorder %s81, %s95
      %p97 = scmp.eq.s32.totalorder %s29, 0
      %p98 = por %p96, %p97
      %s100 = sadd.s32 %s99, 1
      %p103 = scmp.eq.s32.totalorder %s23, 1
      %p104 = scmp.ne.s32.totalorder %s99, %s101
      %p105 = scmp.eq.s32.totalorder %s23, 0
      %p106 = por %p104, %p105
      %p107 = scmp.ne.s32.totalorder %s99, %s101
      %p108 = scmp.eq.s32.totalorder %s28, 1
      %p109 = por %p107, %p108
      %p110 = scmp.ne.s32.totalorder %s101, %s102
      %p111 = scmp.eq.s32.totalorder %s28, 0
      %p112 = por %p110, %p111
      %p113 = scmp.ne.s32.totalorder %s101, %s102
      %p114 = scmp.eq.s32.totalorder %s29, 1
      %p115 = por %p113, %p114
      %p117 = scmp.ne.s32.totalorder %s102, %s116
      %p118 = scmp.eq.s32.totalorder %s29, 0
      %p119 = por %p117, %p118
      %s120 = ssub.s32 %s23, %s30
      %p121 = scmp.eq.s32.totalorder %s120, 0
      %s123 = sadd.s32 %s122, 1
      %s124 = scalar_select %p121, %s122, %s123
      %p127 = pneg %p121
      %p128 = scmp.eq.s32.totalorder %s23, 1
      %p129 = por %p127, %p128
      %p130 = scmp.ne.s32.totalorder %s122, %s125
      %p131 = scmp.eq.s32.totalorder %s23, 0
      %p132 = por %p130, %p131
      %p133 = scmp.ne.s32.totalorder %s122, %s125
      %p134 = scmp.eq.s32.totalorder %s28, 1
      %p135 = por %p133, %p134
      %p136 = scmp.ne.s32.totalorder %s125, %s126
      %p137 = scmp.eq.s32.totalorder %s28, 0
      %p138 = por %p136, %p137
      %p139 = scmp.ne.s32.totalorder %s125, %s126
      %p140 = scmp.eq.s32.totalorder %s29, 1
      %p141 = por %p139, %p140
      %p143 = scmp.ne.s32.totalorder %s126, %s142
      %p144 = scmp.eq.s32.totalorder %s29, 0
      %p145 = por %p143, %p144
      %s147 = sadd.s32 %s146, 1
      %p150 = scmp.eq.s32.totalorder %s23, 1
      %p151 = scmp.ne.s32.totalorder %s146, %s148
      %p152 = scmp.eq.s32.totalorder %s23, 0
      %p153 = por %p151, %p152
      %p154 = scmp.ne.s32.totalorder %s146, %s148
      %p155 = scmp.eq.s32.totalorder %s28, 1
      %p156 = por %p154, %p155
      %p157 = scmp.ne.s32.totalorder %s148, %s149
      %p158 = scmp.eq.s32.totalorder %s28, 0
      %p159 = por %p157, %p158
      %p160 = scmp.ne.s32.totalorder %s148, %s149
      %p161 = scmp.eq.s32.totalorder %s29, 1
      %p162 = por %p160, %p161
      %p164 = scmp.ne.s32.totalorder %s149, %s163
      %p165 = scmp.eq.s32.totalorder %s29, 0
      %p166 = por %p164, %p165
      %s168 = sadd.s32 %s167, 1
      %p171 = scmp.eq.s32.totalorder %s23, 1
      %p172 = scmp.ne.s32.totalorder %s167, %s169
      %p173 = scmp.eq.s32.totalorder %s23, 0
      %p174 = por %p172, %p173
      %p175 = scmp.ne.s32.totalorder %s167, %s169
      %p176 = scmp.eq.s32.totalorder %s28, 1
      %p177 = por %p175, %p176
      %p178 = scmp.ne.s32.totalorder %s169, %s170
      %p179 = scmp.eq.s32.totalorder %s28, 0
      %p180 = por %p178, %p179
      %p181 = scmp.ne.s32.totalorder %s169, %s170
      %p182 = scmp.eq.s32.totalorder %s29, 1
      %p183 = por %p181, %p182
      %p185 = scmp.ne.s32.totalorder %s170, %s184
      %p186 = scmp.eq.s32.totalorder %s29, 0
      %p187 = por %p185, %p186
      %s189 = sadd.s32 %s188, 1
      %p192 = scmp.eq.s32.totalorder %s23, 1
      %p193 = scmp.ne.s32.totalorder %s188, %s190
      %p194 = scmp.eq.s32.totalorder %s23, 0
      %p195 = por %p193, %p194
      %p196 = scmp.ne.s32.totalorder %s188, %s190
      %p197 = scmp.eq.s32.totalorder %s28, 1
      %p198 = por %p196, %p197
      %p199 = scmp.ne.s32.totalorder %s190, %s191
      %p200 = scmp.eq.s32.totalorder %s28, 0
      %p201 = por %p199, %p200
      %p202 = scmp.ne.s32.totalorder %s190, %s191
      %p203 = scmp.eq.s32.totalorder %s29, 1
      %p204 = por %p202, %p203
      %p206 = scmp.ne.s32.totalorder %s191, %s205
      %p207 = scmp.eq.s32.totalorder %s29, 0
      %p208 = por %p206, %p207
      %s209 = ssub.s32 %s23, %s30
      %p210 = scmp.eq.s32.totalorder %s209, 0
      %s212 = sadd.s32 %s211, 1
      %s213 = scalar_select %p210, %s211, %s212
      %p216 = pneg %p210
      %p217 = scmp.eq.s32.totalorder %s23, 1
      %p218 = por %p216, %p217
      %p219 = scmp.ne.s32.totalorder %s211, %s214
      %p220 = scmp.eq.s32.totalorder %s23, 0
      %p221 = por %p219, %p220
      %p222 = scmp.ne.s32.totalorder %s211, %s214
      %p223 = scmp.eq.s32.totalorder %s28, 1
      %p224 = por %p222, %p223
      %p225 = scmp.ne.s32.totalorder %s214, %s215
      %p226 = scmp.eq.s32.totalorder %s28, 0
      %p227 = por %p225, %p226
      %p228 = scmp.ne.s32.totalorder %s214, %s215
      %p229 = scmp.eq.s32.totalorder %s29, 1
      %p230 = por %p228, %p229
      %p232 = scmp.ne.s32.totalorder %s215, %s231
      %p233 = scmp.eq.s32.totalorder %s29, 0
      %p234 = por %p232, %p233
      %p235 = scmp.le.s32.totalorder 1, %s23
      %p236 = scmp.lt.s32.totalorder %s23, 3
      %p237 = pnand %p235, %p236
      %p238 = pneg %p237
      // Predicated region
      $region9: #{bottleneck_forward.5} parent=5 // pred_check
        _
      $region10: #{bottleneck_forward.5} parent=5 // pred_check_branch
        %240 = sbr.rel (%p237) target = $region12
      $region11: #{bottleneck_forward.5} parent=5 // pred_region
        %s241 = ssub.s32 %s23, 1
        // Predicated region
        $region13: #{bottleneck_forward.5} parent=11 // pred_check
          %p242 = pneg %p70
        $region14: #{bottleneck_forward.5} parent=11 // pred_check_branch
          %244 = sbr.rel (%p242) target = $region16
        $region15: #{bottleneck_forward.5} parent=11 // pred_region
          %s246 = ssub.s32 1024, 1024
          %247 = vsyncadd [#allocation6], %s246
          %s248 = sshll.u32 [#allocation5], 4
          %s249 = int_to_ptr.vmem [resolvable:$true] %s248
          %254 = dma.hbm_to_vmem [thread:$0]  %s1, 1024, %s249, [#allocation6], 64, 64, 4
        $region16: #{bottleneck_forward.5} parent=11 // pred_fallthru
          _
        // Predicated region
        $region17: #{bottleneck_forward.5} parent=11 // pred_check
          %p255 = pneg %p91
        $region18: #{bottleneck_forward.5} parent=11 // pred_check_branch
          %257 = sbr.rel (%p255) target = $region20
        $region19: #{bottleneck_forward.5} parent=11 // pred_region
          %s259 = ssub.s32 16, 16
          %260 = vsyncadd [#allocation6], %s259
          %s262 = sshll.u32 [#allocation7], 4
          %s263 = int_to_ptr.vmem [resolvable:$true] %s262
          %265 = dma.hbm_to_vmem [thread:$0]  %s2, 16, %s263, [#allocation6]
        $region20: #{bottleneck_forward.5} parent=11 // pred_fallthru
          _
        // Predicated region
        $region21: #{bottleneck_forward.5} parent=11 // pred_check
          %p266 = pneg %p112
        $region22: #{bottleneck_forward.5} parent=11 // pred_check_branch
          %268 = sbr.rel (%p266) target = $region24
        $region23: #{bottleneck_forward.5} parent=11 // pred_region
          %s270 = ssub.s32 16, 16
          %271 = vsyncadd [#allocation9], %s270
          %s273 = sshll.u32 [#allocation8], 4
          %s274 = int_to_ptr.vmem [resolvable:$true] %s273
          %276 = dma.hbm_to_vmem [thread:$0]  %s3, 16, %s274, [#allocation9]
        $region24: #{bottleneck_forward.5} parent=11 // pred_fallthru
          _
        // Predicated region
        $region25: #{bottleneck_forward.5} parent=11 // pred_check
          %p277 = pneg %p159
        $region26: #{bottleneck_forward.5} parent=11 // pred_check_branch
          %279 = sbr.rel (%p277) target = $region28
        $region27: #{bottleneck_forward.5} parent=11 // pred_region
          %s281 = ssub.s32 2048, 2048
          %282 = vsyncadd [#allocation6], %s281
          %s283 = sshll.u32 [#allocation11], 4
          %s284 = int_to_ptr.vmem [resolvable:$true] %s283
          %289 = dma.hbm_to_vmem [thread:$0]  %s5, 2048, %s284, [#allocation6], 64, 64, 4
        $region28: #{bottleneck_forward.5} parent=11 // pred_fallthru
          _
        // Predicated region
        $region29: #{bottleneck_forward.5} parent=11 // pred_check
          %p290 = pneg %p180
        $region30: #{bottleneck_forward.5} parent=11 // pred_check_branch
          %292 = sbr.rel (%p290) target = $region32
        $region31: #{bottleneck_forward.5} parent=11 // pred_region
          %s294 = ssub.s32 16, 16
          %295 = vsyncadd [#allocation9], %s294
          %s297 = sshll.u32 [#allocation12], 4
          %s298 = int_to_ptr.vmem [resolvable:$true] %s297
          %300 = dma.hbm_to_vmem [thread:$0]  %s6, 16, %s298, [#allocation9]
        $region32: #{bottleneck_forward.5} parent=11 // pred_fallthru
          _
        // Predicated region
        $region33: #{bottleneck_forward.5} parent=11 // pred_check
          %p301 = pneg %p201
        $region34: #{bottleneck_forward.5} parent=11 // pred_check_branch
          %303 = sbr.rel (%p301) target = $region36
        $region35: #{bottleneck_forward.5} parent=11 // pred_region
          %s305 = ssub.s32 16, 16
          %306 = vsyncadd [#allocation14], %s305
          %s308 = sshll.u32 [#allocation13], 4
          %s309 = int_to_ptr.vmem [resolvable:$true] %s308
          %311 = dma.hbm_to_vmem [thread:$0]  %s7, 16, %s309, [#allocation14]
        $region36: #{bottleneck_forward.5} parent=11 // pred_fallthru
          _
      $region12: #{bottleneck_forward.5} parent=5 // pred_fallthru
        _
      %p312 = scmp.lt.s32.totalorder %s23, 2
      // Predicated region
      $region37: #{bottleneck_forward.5} parent=5 // pred_check
        %p313 = pneg %p312
      $region38: #{bottleneck_forward.5} parent=5 // pred_check_branch
        %315 = sbr.rel (%p313) target = $region40
      $region39: #{bottleneck_forward.5} parent=5 // pred_region
        // Predicated region
        $region41: #{bottleneck_forward.5} parent=39 // pred_check
          %p316 = pneg %p43
        $region42: #{bottleneck_forward.5} parent=39 // pred_check_branch
          %318 = sbr.rel (%p316) target = $region44
        $region43: #{bottleneck_forward.5} parent=39 // pred_region
          %s319 = sand.u32 %s23, 1
          %s320 = scalar_lea.sflag [#allocation3], %s319
          %s321 = sand.u32 %s33, 1
          %s322 = smul.addr %s321, 32
          %s323 = scalar_lea.vmem [#allocation2], %s322
          %s325 = ssub.s32 512, 512
          %326 = vsyncadd %s320, %s325
          %s327 = smul.addr %s23, 8
          %s328 = smul.addr %s327, 64
          %s329 = scalar_lea.hbm %s0, %s328
          %s330 = sshll.u32 %s323, 4
          %s331 = int_to_ptr.vmem [resolvable:$true] %s330
          %336 = dma.hbm_to_vmem [thread:$0]  %s329, 512, %s331, %s320, 64, 64, 4
        $region44: #{bottleneck_forward.5} parent=39 // pred_fallthru
          _
        // Predicated region
        $region45: #{bottleneck_forward.5} parent=39 // pred_check
          %p337 = pneg %p132
        $region46: #{bottleneck_forward.5} parent=39 // pred_check_branch
          %339 = sbr.rel (%p337) target = $region48
        $region47: #{bottleneck_forward.5} parent=39 // pred_region
          %s340 = sand.u32 %s23, 1
          %s341 = scalar_lea.sflag [#allocation3], %s340
          %s342 = sand.u32 %s122, 1
          %s343 = smul.addr %s342, 64
          %s344 = scalar_lea.vmem [#allocation10], %s343
          %s346 = ssub.s32 1024, 1024
          %347 = vsyncadd %s341, %s346
          %s348 = smul.addr %s23, 32
          %s349 = smul.addr %s348, 64
          %s350 = scalar_lea.hbm %s4, %s349
          %s351 = sshll.u32 %s344, 4
          %s352 = int_to_ptr.vmem [resolvable:$true] %s351
          %357 = dma.hbm_to_vmem [thread:$0]  %s350, 1024, %s352, %s341, 256, 128, 8
        $region48: #{bottleneck_forward.5} parent=39 // pred_fallthru
          _
      $region40: #{bottleneck_forward.5} parent=5 // pred_fallthru
        _
      %p358 = scmp.le.s32.totalorder 1, %s23
      %p359 = scmp.lt.s32.totalorder %s23, 3
      %p360 = pnand %p358, %p359
      %p361 = pneg %p360
      // Predicated region
      $region49: #{bottleneck_forward.5} parent=5 // pred_check
        _
      $region50: #{bottleneck_forward.5} parent=5 // pred_check_branch
        %363 = sbr.rel (%p360) target = $region52
      $region51: #{bottleneck_forward.5} parent=5 // pred_region
        %s364 = ssub.s32 %s23, 1
        %s365 = sand.u32 %s28, 1
        %s366 = scalar_lea.sflag [#allocation3], %s365
        %s367 = sand.u32 %s36, 1
        %s368 = smul.addr %s367, 32
        %s369 = scalar_lea.vmem [#allocation2], %s368
        // Predicated region
        $region53: #{bottleneck_forward.5} parent=51 // pred_check
          %p370 = pneg %p49
        $region54: #{bottleneck_forward.5} parent=51 // pred_check_branch
          %372 = sbr.rel (%p370) target = $region56
        $region55: #{bottleneck_forward.5} parent=51 // pred_region
          %373 = dma.done %s366, 512
        $region56: #{bottleneck_forward.5} parent=51 // pred_fallthru
          _
        // Predicated region
        $region57: #{bottleneck_forward.5} parent=51 // pred_check
          %p374 = pneg %p70
        $region58: #{bottleneck_forward.5} parent=51 // pred_check_branch
          %376 = sbr.rel (%p374) target = $region60
        $region59: #{bottleneck_forward.5} parent=51 // pred_region
          %377 = dma.done [#allocation6], 1024
        $region60: #{bottleneck_forward.5} parent=51 // pred_fallthru
          _
        // Predicated region
        $region61: #{bottleneck_forward.5} parent=51 // pred_check
          %p378 = pneg %p91
        $region62: #{bottleneck_forward.5} parent=51 // pred_check_branch
          %380 = sbr.rel (%p378) target = $region64
        $region63: #{bottleneck_forward.5} parent=51 // pred_region
          %381 = dma.done [#allocation6], 16
        $region64: #{bottleneck_forward.5} parent=51 // pred_fallthru
          _
        // Predicated region
        $region65: #{bottleneck_forward.5} parent=51 // pred_check
          %p382 = pneg %p112
        $region66: #{bottleneck_forward.5} parent=51 // pred_check_branch
          %384 = sbr.rel (%p382) target = $region68
        $region67: #{bottleneck_forward.5} parent=51 // pred_region
          %385 = dma.done [#allocation9], 16
        $region68: #{bottleneck_forward.5} parent=51 // pred_fallthru
          _
        %s386 = sand.u32 %s28, 1
        %s387 = scalar_lea.sflag [#allocation3], %s386
        %s388 = sand.u32 %s125, 1
        %s389 = smul.addr %s388, 64
        %s390 = scalar_lea.vmem [#allocation10], %s389
        // Predicated region
        $region69: #{bottleneck_forward.5} parent=51 // pred_check
          %p391 = pneg %p138
        $region70: #{bottleneck_forward.5} parent=51 // pred_check_branch
          %393 = sbr.rel (%p391) target = $region72
        $region71: #{bottleneck_forward.5} parent=51 // pred_region
          %394 = dma.done %s387, 1024
        $region72: #{bottleneck_forward.5} parent=51 // pred_fallthru
          _
        // Predicated region
        $region73: #{bottleneck_forward.5} parent=51 // pred_check
          %p395 = pneg %p159
        $region74: #{bottleneck_forward.5} parent=51 // pred_check_branch
          %397 = sbr.rel (%p395) target = $region76
        $region75: #{bottleneck_forward.5} parent=51 // pred_region
          %398 = dma.done [#allocation6], 2048
        $region76: #{bottleneck_forward.5} parent=51 // pred_fallthru
          _
        // Predicated region
        $region77: #{bottleneck_forward.5} parent=51 // pred_check
          %p399 = pneg %p180
        $region78: #{bottleneck_forward.5} parent=51 // pred_check_branch
          %401 = sbr.rel (%p399) target = $region80
        $region79: #{bottleneck_forward.5} parent=51 // pred_region
          %402 = dma.done [#allocation9], 16
        $region80: #{bottleneck_forward.5} parent=51 // pred_fallthru
          _
        // Predicated region
        $region81: #{bottleneck_forward.5} parent=51 // pred_check
          %p403 = pneg %p201
        $region82: #{bottleneck_forward.5} parent=51 // pred_check_branch
          %405 = sbr.rel (%p403) target = $region84
        $region83: #{bottleneck_forward.5} parent=51 // pred_region
          %406 = dma.done [#allocation14], 16
        $region84: #{bottleneck_forward.5} parent=51 // pred_fallthru
          _
        %s407 = sand.u32 %s28, 1
        %s408 = scalar_lea.sflag [#allocation3], %s407
        %s409 = sand.u32 %s36, 1
        %s410 = smul.addr %s409, 32
        %s411 = scalar_lea.vmem [#allocation2], %s410
        %p412 = pneg %p49
        %p413 = pneg %p46
        %p414 = pneg %p70
        %p415 = pneg %p67
        %p416 = pneg %p91
        %p417 = pneg %p88
        %p418 = pneg %p112
        %p419 = pneg %p109
        %s420 = sand.u32 %s28, 1
        %s421 = scalar_lea.sflag [#allocation3], %s420
        %s422 = sand.u32 %s125, 1
        %s423 = smul.addr %s422, 64
        %s424 = scalar_lea.vmem [#allocation10], %s423
        %p425 = pneg %p138
        %p426 = pneg %p135
        %p427 = pneg %p159
        %p428 = pneg %p156
        %p429 = pneg %p180
        %p430 = pneg %p177
        %p431 = pneg %p201
        %p432 = pneg %p198
        %p433 = pneg %p227
        %p434 = pneg %p224
        %s435 = sand.u32 %s214, 1
        %s436 = scalar_lea.sflag [#allocation4], %s435
        %s437 = sand.u32 %s214, 1
        %s438 = smul.addr %s437, 64
        %s439 = scalar_lea.vmem [#allocation15], %s438
        %v441 = vld [vmem:[%s369] sm:$0xf]
        %v442 = vld [vmem:[%s369 + $0x4] sm:$0xf]
        %v443 = vld [vmem:[%s369 + $0x8] sm:$0xf]
        %v444 = vld [vmem:[%s369 + $0xc] sm:$0xf]
        %v445 = vld [vmem:[%s369 + $0x10] sm:$0xf]
        %v446 = vld [vmem:[%s369 + $0x14] sm:$0xf]
        %v447 = vld [vmem:[%s369 + $0x18] sm:$0xf]
        %v448 = vld [vmem:[%s369 + $0x1c] sm:$0xf]
        %v449 = vld [vmem:[#allocation5] sm:$0xf]
        %v450 = vld [vmem:[#allocation5 + $0x4] sm:$0xf]
        %v451 = vld [vmem:[#allocation5 + $0x8] sm:$0xf]
        %v452 = vld [vmem:[#allocation5 + $0xc] sm:$0xf]
        %v453 = vld [vmem:[#allocation5 + $0x10] sm:$0xf]
        %v454 = vld [vmem:[#allocation5 + $0x14] sm:$0xf]
        %v455 = vld [vmem:[#allocation5 + $0x18] sm:$0xf]
        %v456 = vld [vmem:[#allocation5 + $0x1c] sm:$0xf]
        %v457 = vld [vmem:[#allocation5 + $0x20] sm:$0xf]
        %v458 = vld [vmem:[#allocation5 + $0x24] sm:$0xf]
        %v459 = vld [vmem:[#allocation5 + $0x28] sm:$0xf]
        %v460 = vld [vmem:[#allocation5 + $0x2c] sm:$0xf]
        %v461 = vld [vmem:[#allocation5 + $0x30] sm:$0xf]
        %v462 = vld [vmem:[#allocation5 + $0x34] sm:$0xf]
        %v463 = vld [vmem:[#allocation5 + $0x38] sm:$0xf]
        %v464 = vld [vmem:[#allocation5 + $0x3c] sm:$0xf]
        %v473 = vunpack.c.l.b16 %v441
        %v474 = vunpack.c.l.b16 %v442
        %v475 = vunpack.c.l.b16 %v443
        %v476 = vunpack.c.l.b16 %v444
        %v477 = vunpack.c.l.b16 %v445
        %v478 = vunpack.c.l.b16 %v446
        %v479 = vunpack.c.l.b16 %v447
        %v480 = vunpack.c.l.b16 %v448
        %v481 = vpack.c.b16 %v474, %v473
        %v482 = vpack.c.b16 %v476, %v475
        %v483 = vpack.c.b16 %v478, %v477
        %v484 = vpack.c.b16 %v480, %v479
        %v505 = vunpack.c.l.b16 %v449
        %v506 = vunpack.c.l.b16 %v450
        %v507 = vunpack.c.l.b16 %v451
        %v508 = vunpack.c.l.b16 %v452
        %v509 = vunpack.c.l.b16 %v453
        %v510 = vunpack.c.l.b16 %v454
        %v511 = vunpack.c.l.b16 %v455
        %v512 = vunpack.c.l.b16 %v456
        %v513 = vunpack.c.l.b16 %v457
        %v514 = vunpack.c.l.b16 %v458
        %v515 = vunpack.c.l.b16 %v459
        %v516 = vunpack.c.l.b16 %v460
        %v517 = vunpack.c.l.b16 %v461
        %v518 = vunpack.c.l.b16 %v462
        %v519 = vunpack.c.l.b16 %v463
        %v520 = vunpack.c.l.b16 %v464
        %v521 = vpack.c.b16 %v506, %v505
        %v522 = vpack.c.b16 %v508, %v507
        %v523 = vpack.c.b16 %v510, %v509
        %v524 = vpack.c.b16 %v512, %v511
        %v525 = vpack.c.b16 %v514, %v513
        %v526 = vpack.c.b16 %v516, %v515
        %v527 = vpack.c.b16 %v518, %v517
        %v528 = vpack.c.b16 %v520, %v519
        %537 = vmatprep.subr.bf16.mxu0 0
        %538 = vmatpush1.bf16.msra.mxu0 %v521
        %539 = vmatprep.subr.bf16.mxu0 0
        %540 = vmatpush1.bf16.msra.mxu0 %v522
        %541 = vmatprep.subr.bf16.mxu0 0
        %542 = vmatpush1.bf16.msra.mxu0 %v523
        %543 = vmatprep.subr.bf16.mxu0 0
        %544 = vmatpush1.bf16.msra.mxu0 %v524
        %545 = vmatprep.subr.bf16.mxu0 0
        %546 = vmatpush1.bf16.msra.mxu0 %v525
        %547 = vmatprep.subr.bf16.mxu0 0
        %548 = vmatpush1.bf16.msra.mxu0 %v526
        %549 = vmatprep.subr.bf16.mxu0 0
        %550 = vmatpush1.bf16.msra.mxu0 %v527
        %551 = vmatprep.subr.bf16.mxu0 0
        %552 = vmatpush1.bf16.msra.mxu0 %v528
        %553 = vmatprep.subr.bf16.mxu0 0
        %554 = vmatpush1.bf16.msra.mxu0 0
        %555 = vmatprep.subr.bf16.mxu0 0
        %556 = vmatpush1.bf16.msra.mxu0 0
        %557 = vmatprep.subr.bf16.mxu0 0
        %558 = vmatpush1.bf16.msra.mxu0 0
        %559 = vmatprep.subr.bf16.mxu0 0
        %560 = vmatpush1.bf16.msra.mxu0 0
        %561 = vmatprep.subr.bf16.mxu0 0
        %562 = vmatpush1.bf16.msra.mxu0 0
        %563 = vmatprep.subr.bf16.mxu0 0
        %564 = vmatpush1.bf16.msra.mxu0 0
        %565 = vmatprep.subr.bf16.mxu0 0
        %566 = vmatpush1.bf16.msra.mxu0 0
        %567 = vmatprep.subr.bf16.mxu0 0
        %568 = vmatpush1.bf16.msra.mxu0 0
        %569 = vmatprep.mubr.bf16.mxu0 0
        %570 = vmatmul.mubr.bf16.gmra.mrb[0].mxu0 %v481
        %v571 = vpop.f32.mrb[0].mxu0
        %v572 = vadd.f32 0.0, %v571
        %v573 = vpop.f32.mrb[0].mxu0
        %v574 = vpop.f32.mrb[0].mxu0
        %v575 = vadd.f32 0.0, %v574
        %v576 = vpop.f32.mrb[0].mxu0
        %577 = vmatprep.mubr.bf16.mxu0 0
        %578 = vmatmul.mubr.bf16.gmra.mrb[0].mxu0 %v482
        %v579 = vpop.f32.mrb[0].mxu0
        %v580 = vadd.f32 0.0, %v579
        %v581 = vpop.f32.mrb[0].mxu0
        %v582 = vpop.f32.mrb[0].mxu0
        %v583 = vadd.f32 0.0, %v582
        %v584 = vpop.f32.mrb[0].mxu0
        %585 = vmatprep.mubr.bf16.mxu0 0
        %586 = vmatmul.mubr.bf16.gmra.mrb[0].mxu0 %v483
        %v587 = vpop.f32.mrb[0].mxu0
        %v588 = vadd.f32 0.0, %v587
        %v589 = vpop.f32.mrb[0].mxu0
        %v590 = vpop.f32.mrb[0].mxu0
        %v591 = vadd.f32 0.0, %v590
        %v592 = vpop.f32.mrb[0].mxu0
        %593 = vmatprep.mubr.bf16.mxu0 0
        %594 = vmatmul.mubr.bf16.gmra.mrb[0].mxu0 %v484
        %v595 = vpop.f32.mrb[0].mxu0
        %v596 = vadd.f32 0.0, %v595
        %v597 = vpop.f32.mrb[0].mxu0
        %v598 = vpop.f32.mrb[0].mxu0
        %v599 = vadd.f32 0.0, %v598
        %v600 = vpop.f32.mrb[0].mxu0
        %601 = vdwg.mxu0
        %v602 = vld [vmem:[#allocation7] sm:$0x1]
        %v604 = vlaneseq
        %v605 = vshrl.u32 %v604, 7
        %v606 = vsub.s32 0, %v605
        %v607 = vrot.slane %v602, %v606
        %v609 = vmul.f32 %v572, %v607
        %v610 = vmul.f32 %v575, %v607
        %v611 = vmul.f32 %v580, %v607
        %v612 = vmul.f32 %v583, %v607
        %v613 = vmul.f32 %v588, %v607
        %v614 = vmul.f32 %v591, %v607
        %v615 = vmul.f32 %v596, %v607
        %v616 = vmul.f32 %v599, %v607
        %v617 = vld [vmem:[#allocation8] sm:$0x1]
        %v619 = vlaneseq
        %v620 = vshrl.u32 %v619, 7
        %v621 = vsub.s32 0, %v620
        %v622 = vrot.slane %v617, %v621
        %v624 = vadd.f32 %v609, %v622
        %v625 = vadd.f32 %v610, %v622
        %v626 = vadd.f32 %v611, %v622
        %v627 = vadd.f32 %v612, %v622
        %v628 = vadd.f32 %v613, %v622
        %v629 = vadd.f32 %v614, %v622
        %v630 = vadd.f32 %v615, %v622
        %v631 = vadd.f32 %v616, %v622
        %v632 = vld [vmem:[%s390] sm:$0xff]
        %v633 = vld [vmem:[%s390 + $0x8] sm:$0xff]
        %v634 = vld [vmem:[%s390 + $0x10] sm:$0xff]
        %v635 = vld [vmem:[%s390 + $0x18] sm:$0xff]
        %v636 = vld [vmem:[%s390 + $0x20] sm:$0xff]
        %v637 = vld [vmem:[%s390 + $0x28] sm:$0xff]
        %v638 = vld [vmem:[%s390 + $0x30] sm:$0xff]
        %v639 = vld [vmem:[%s390 + $0x38] sm:$0xff]
        %v640 = vld [vmem:[#allocation11] sm:$0xf]
        %v641 = vld [vmem:[#allocation11 + $0x4] sm:$0xf]
        %v642 = vld [vmem:[#allocation11 + $0x8] sm:$0xf]
        %v643 = vld [vmem:[#allocation11 + $0xc] sm:$0xf]
        %v644 = vld [vmem:[#allocation11 + $0x10] sm:$0xf]
        %v645 = vld [vmem:[#allocation11 + $0x14] sm:$0xf]
        %v646 = vld [vmem:[#allocation11 + $0x18] sm:$0xf]
        %v647 = vld [vmem:[#allocation11 + $0x1c] sm:$0xf]
        %v648 = vld [vmem:[#allocation11 + $0x20] sm:$0xf]
        %v649 = vld [vmem:[#allocation11 + $0x24] sm:$0xf]
        %v650 = vld [vmem:[#allocation11 + $0x28] sm:$0xf]
        %v651 = vld [vmem:[#allocation11 + $0x2c] sm:$0xf]
        %v652 = vld [vmem:[#allocation11 + $0x30] sm:$0xf]
        %v653 = vld [vmem:[#allocation11 + $0x34] sm:$0xf]
        %v654 = vld [vmem:[#allocation11 + $0x38] sm:$0xf]
        %v655 = vld [vmem:[#allocation11 + $0x3c] sm:$0xf]
        %v656 = vld [vmem:[#allocation11 + $0x40] sm:$0xf]
        %v657 = vld [vmem:[#allocation11 + $0x44] sm:$0xf]
        %v658 = vld [vmem:[#allocation11 + $0x48] sm:$0xf]
        %v659 = vld [vmem:[#allocation11 + $0x4c] sm:$0xf]
        %v660 = vld [vmem:[#allocation11 + $0x50] sm:$0xf]
        %v661 = vld [vmem:[#allocation11 + $0x54] sm:$0xf]
        %v662 = vld [vmem:[#allocation11 + $0x58] sm:$0xf]
        %v663 = vld [vmem:[#allocation11 + $0x5c] sm:$0xf]
        %v664 = vld [vmem:[#allocation11 + $0x60] sm:$0xf]
        %v665 = vld [vmem:[#allocation11 + $0x64] sm:$0xf]
        %v666 = vld [vmem:[#allocation11 + $0x68] sm:$0xf]
        %v667 = vld [vmem:[#allocation11 + $0x6c] sm:$0xf]
        %v668 = vld [vmem:[#allocation11 + $0x70] sm:$0xf]
        %v669 = vld [vmem:[#allocation11 + $0x74] sm:$0xf]
        %v670 = vld [vmem:[#allocation11 + $0x78] sm:$0xf]
        %v671 = vld [vmem:[#allocation11 + $0x7c] sm:$0xf]
        %v680 = vunpack.c.l.b16 %v632
        %v681 = vunpack.c.h.b16 %v632
        %v682 = vunpack.c.l.b16 %v633
        %v683 = vunpack.c.h.b16 %v633
        %v684 = vunpack.c.l.b16 %v634
        %v685 = vunpack.c.h.b16 %v634
        %v686 = vunpack.c.l.b16 %v635
        %v687 = vunpack.c.h.b16 %v635
        %v688 = vunpack.c.l.b16 %v636
        %v689 = vunpack.c.h.b16 %v636
        %v690 = vunpack.c.l.b16 %v637
        %v691 = vunpack.c.h.b16 %v637
        %v692 = vunpack.c.l.b16 %v638
        %v693 = vunpack.c.h.b16 %v638
        %v694 = vunpack.c.l.b16 %v639
        %v695 = vunpack.c.h.b16 %v639
        %v696 = vpack.c.b16 %v682, %v680
        %v697 = vpack.c.b16 %v683, %v681
        %v698 = vpack.c.b16 %v686, %v684
        %v699 = vpack.c.b16 %v687, %v685
        %v700 = vpack.c.b16 %v690, %v688
        %v701 = vpack.c.b16 %v691, %v689
        %v702 = vpack.c.b16 %v694, %v692
        %v703 = vpack.c.b16 %v695, %v693
        %v744 = vunpack.c.l.b16 %v640
        %v745 = vunpack.c.l.b16 %v641
        %v746 = vunpack.c.l.b16 %v642
        %v747 = vunpack.c.l.b16 %v643
        %v748 = vunpack.c.l.b16 %v644
        %v749 = vunpack.c.l.b16 %v645
        %v750 = vunpack.c.l.b16 %v646
        %v751 = vunpack.c.l.b16 %v647
        %v752 = vunpack.c.l.b16 %v648
        %v753 = vunpack.c.l.b16 %v649
        %v754 = vunpack.c.l.b16 %v650
        %v755 = vunpack.c.l.b16 %v651
        %v756 = vunpack.c.l.b16 %v652
        %v757 = vunpack.c.l.b16 %v653
        %v758 = vunpack.c.l.b16 %v654
        %v759 = vunpack.c.l.b16 %v655
        %v760 = vunpack.c.l.b16 %v656
        %v761 = vunpack.c.l.b16 %v657
        %v762 = vunpack.c.l.b16 %v658
        %v763 = vunpack.c.l.b16 %v659
        %v764 = vunpack.c.l.b16 %v660
        %v765 = vunpack.c.l.b16 %v661
        %v766 = vunpack.c.l.b16 %v662
        %v767 = vunpack.c.l.b16 %v663
        %v768 = vunpack.c.l.b16 %v664
        %v769 = vunpack.c.l.b16 %v665
        %v770 = vunpack.c.l.b16 %v666
        %v771 = vunpack.c.l.b16 %v667
        %v772 = vunpack.c.l.b16 %v668
        %v773 = vunpack.c.l.b16 %v669
        %v774 = vunpack.c.l.b16 %v670
        %v775 = vunpack.c.l.b16 %v671
        %v776 = vpack.c.b16 %v745, %v744
        %v777 = vpack.c.b16 %v747, %v746
        %v778 = vpack.c.b16 %v749, %v748
        %v779 = vpack.c.b16 %v751, %v750
        %v780 = vpack.c.b16 %v753, %v752
        %v781 = vpack.c.b16 %v755, %v754
        %v782 = vpack.c.b16 %v757, %v756
        %v783 = vpack.c.b16 %v759, %v758
        %v784 = vpack.c.b16 %v761, %v760
        %v785 = vpack.c.b16 %v763, %v762
        %v786 = vpack.c.b16 %v765, %v764
        %v787 = vpack.c.b16 %v767, %v766
        %v788 = vpack.c.b16 %v769, %v768
        %v789 = vpack.c.b16 %v771, %v770
        %v790 = vpack.c.b16 %v773, %v772
        %v791 = vpack.c.b16 %v775, %v774
        %808 = vmatprep.subr.bf16.mxu0 0
        %809 = vmatpush1.bf16.msra.mxu0 %v776
        %810 = vmatprep.subr.bf16.mxu0 0
        %811 = vmatpush1.bf16.msra.mxu0 %v777
        %812 = vmatprep.subr.bf16.mxu0 0
        %813 = vmatpush1.bf16.msra.mxu0 %v778
        %814 = vmatprep.subr.bf16.mxu0 0
        %815 = vmatpush1.bf16.msra.mxu0 %v779
        %816 = vmatprep.subr.bf16.mxu0 0
        %817 = vmatpush1.bf16.msra.mxu0 %v780
        %818 = vmatprep.subr.bf16.mxu0 0
        %819 = vmatpush1.bf16.msra.mxu0 %v781
        %820 = vmatprep.subr.bf16.mxu0 0
        %821 = vmatpush1.bf16.msra.mxu0 %v782
        %822 = vmatprep.subr.bf16.mxu0 0
        %823 = vmatpush1.bf16.msra.mxu0 %v783
        %824 = vmatprep.subr.bf16.mxu0 0
        %825 = vmatpush1.bf16.msra.mxu0 %v784
        %826 = vmatprep.subr.bf16.mxu0 0
        %827 = vmatpush1.bf16.msra.mxu0 %v785
        %828 = vmatprep.subr.bf16.mxu0 0
        %829 = vmatpush1.bf16.msra.mxu0 %v786
        %830 = vmatprep.subr.bf16.mxu0 0
        %831 = vmatpush1.bf16.msra.mxu0 %v787
        %832 = vmatprep.subr.bf16.mxu0 0
        %833 = vmatpush1.bf16.msra.mxu0 %v788
        %834 = vmatprep.subr.bf16.mxu0 0
        %835 = vmatpush1.bf16.msra.mxu0 %v789
        %836 = vmatprep.subr.bf16.mxu0 0
        %837 = vmatpush1.bf16.msra.mxu0 %v790
        %838 = vmatprep.subr.bf16.mxu0 0
        %839 = vmatpush1.bf16.msra.mxu0 %v791
        %840 = vmatprep.mubr.bf16.mxu0 %v697
        %841 = vmatmul.mubr.bf16.gmra.mrb[0].mxu0 %v696
        %v842 = vpop.f32.mrb[0].mxu0
        %v843 = vadd.f32 0.0, %v842
        %v844 = vpop.f32.mrb[0].mxu0
        %v845 = vpop.f32.mrb[0].mxu0
        %v846 = vadd.f32 0.0, %v845
        %v847 = vpop.f32.mrb[0].mxu0
        %848 = vmatprep.mubr.bf16.mxu0 %v699
        %849 = vmatmul.mubr.bf16.gmra.mrb[0].mxu0 %v698
        %v850 = vpop.f32.mrb[0].mxu0
        %v851 = vadd.f32 0.0, %v850
        %v852 = vpop.f32.mrb[0].mxu0
        %v853 = vpop.f32.mrb[0].mxu0
        %v854 = vadd.f32 0.0, %v853
        %v855 = vpop.f32.mrb[0].mxu0
        %856 = vmatprep.mubr.bf16.mxu0 %v701
        %857 = vmatmul.mubr.bf16.gmra.mrb[0].mxu0 %v700
        %v858 = vpop.f32.mrb[0].mxu0
        %v859 = vadd.f32 0.0, %v858
        %v860 = vpop.f32.mrb[0].mxu0
        %v861 = vpop.f32.mrb[0].mxu0
        %v862 = vadd.f32 0.0, %v861
        %v863 = vpop.f32.mrb[0].mxu0
        %864 = vmatprep.mubr.bf16.mxu0 %v703
        %865 = vmatmul.mubr.bf16.gmra.mrb[0].mxu0 %v702
        %v866 = vpop.f32.mrb[0].mxu0
        %v867 = vadd.f32 0.0, %v866
        %v868 = vpop.f32.mrb[0].mxu0
        %v869 = vpop.f32.mrb[0].mxu0
        %v870 = vadd.f32 0.0, %v869
        %v871 = vpop.f32.mrb[0].mxu0
        %872 = vdwg.mxu0
        %v873 = vld [vmem:[#allocation12] sm:$0x1]
        %v875 = vlaneseq
        %v876 = vshrl.u32 %v875, 7
        %v877 = vsub.s32 0, %v876
        %v878 = vrot.slane %v873, %v877
        %v880 = vmul.f32 %v843, %v878
        %v881 = vmul.f32 %v846, %v878
        %v882 = vmul.f32 %v851, %v878
        %v883 = vmul.f32 %v854, %v878
        %v884 = vmul.f32 %v859, %v878
        %v885 = vmul.f32 %v862, %v878
        %v886 = vmul.f32 %v867, %v878
        %v887 = vmul.f32 %v870, %v878
        %v888 = vld [vmem:[#allocation13] sm:$0x1]
        %v890 = vlaneseq
        %v891 = vshrl.u32 %v890, 7
        %v892 = vsub.s32 0, %v891
        %v893 = vrot.slane %v888, %v892
        %v895 = vadd.f32 %v880, %v893
        %v896 = vadd.f32 %v881, %v893
        %v897 = vadd.f32 %v882, %v893
        %v898 = vadd.f32 %v883, %v893
        %v899 = vadd.f32 %v884, %v893
        %v900 = vadd.f32 %v885, %v893
        %v901 = vadd.f32 %v886, %v893
        %v902 = vadd.f32 %v887, %v893
        %v903 = vadd.f32 %v624, %v895
        %v904 = vadd.f32 %v625, %v896
        %v905 = vadd.f32 %v626, %v897
        %v906 = vadd.f32 %v627, %v898
        %v907 = vadd.f32 %v628, %v899
        %v908 = vadd.f32 %v629, %v900
        %v909 = vadd.f32 %v630, %v901
        %v910 = vadd.f32 %v631, %v902
        %v911 = vmax.f32 %v903, 0.0
        %v912 = vmax.f32 %v904, 0.0
        %v913 = vmax.f32 %v905, 0.0
        %v914 = vmax.f32 %v906, 0.0
        %v915 = vmax.f32 %v907, 0.0
        %v916 = vmax.f32 %v908, 0.0
        %v917 = vmax.f32 %v909, 0.0
        %v918 = vmax.f32 %v910, 0.0
        %919 = vst [vmem:[%s439] sm:$0xff] %v911
        %920 = vst [vmem:[%s439 + $0x8] sm:$0xff] %v912
        %921 = vst [vmem:[%s439 + $0x10] sm:$0xff] %v913
        %922 = vst [vmem:[%s439 + $0x18] sm:$0xff] %v914
        %923 = vst [vmem:[%s439 + $0x20] sm:$0xff] %v915
        %924 = vst [vmem:[%s439 + $0x28] sm:$0xff] %v916
        %925 = vst [vmem:[%s439 + $0x30] sm:$0xff] %v917
        %926 = vst [vmem:[%s439 + $0x38] sm:$0xff] %v918
        %s927 = sand.u32 %s214, 1
        %s928 = scalar_lea.sflag [#allocation4], %s927
        %s929 = sand.u32 %s214, 1
        %s930 = smul.addr %s929, 64
        %s931 = scalar_lea.vmem [#allocation15], %s930
        // Predicated region
        $region85: #{bottleneck_forward.5} parent=51 // pred_check
          %p932 = pneg %p224
        $region86: #{bottleneck_forward.5} parent=51 // pred_check_branch
          %934 = sbr.rel (%p932) target = $region88
        $region87: #{bottleneck_forward.5} parent=51 // pred_region
          %s936 = ssub.s32 1024, 1024
          %937 = vsyncadd %s928, %s936
          %s938 = smul.addr %s28, 8
          %s939 = smul.addr %s938, 128
          %s940 = scalar_lea.hbm %s8, %s939
          %s941 = sshll.u32 %s931, 4
          %s942 = int_to_ptr.vmem [resolvable:$true] %s941
          %947 = dma.vmem_to_hbm [thread:$0]  %s942, 1024, %s940, %s928, 128, 128, 8
        $region88: #{bottleneck_forward.5} parent=51 // pred_fallthru
          _
      $region52: #{bottleneck_forward.5} parent=5 // pred_fallthru
        _
      %p948 = scmp.le.s32.totalorder 2, %s23
      // Predicated region
      $region89: #{bottleneck_forward.5} parent=5 // pred_check
        %p949 = pneg %p948
      $region90: #{bottleneck_forward.5} parent=5 // pred_check_branch
        %951 = sbr.rel (%p949) target = $region92
      $region91: #{bottleneck_forward.5} parent=5 // pred_region
        %s952 = ssub.s32 %s23, 2
        // Predicated region
        $region93: #{bottleneck_forward.5} parent=91 // pred_check
          %p953 = pneg %p230
        $region94: #{bottleneck_forward.5} parent=91 // pred_check_branch
          %955 = sbr.rel (%p953) target = $region96
        $region95: #{bottleneck_forward.5} parent=91 // pred_region
          %s956 = sand.u32 %s215, 1
          %s957 = scalar_lea.sflag [#allocation4], %s956
          %s958 = sand.u32 %s215, 1
          %s959 = smul.addr %s958, 64
          %s960 = scalar_lea.vmem [#allocation15], %s959
          %961 = dma.done %s957, 1024
        $region96: #{bottleneck_forward.5} parent=91 // pred_fallthru
          _
      $region92: #{bottleneck_forward.5} parent=5 // pred_fallthru
        _
    $region6: #{bottleneck_forward.5} parent=1 // loop_footer
      %s27 = sadd.s32 1, %s23
    $region7: #{bottleneck_forward.5} parent=1 // loop_footer_branch
      %22 = sbr.rel target = $region3
    $region8: #{bottleneck_forward.5} parent=1 // loop_exit
      _
    %962 = vsyncpa [#allocation3], 1
    %s963 = scalar_lea.sflag [#allocation3], 1
    %964 = vsyncpa %s963, 1
    %965 = vsyncpa [#allocation6], 1
    %966 = vsyncpa [#allocation9], 1
    %967 = vsyncpa [#allocation14], 1
    %968 = vsyncpa [#allocation4], 1
    %s969 = scalar_lea.sflag [#allocation4], 1
    %970 = vsyncpa %s969, 1

// kernel: bottleneck_forward.4
$region0: #{bottleneck_forward.4}
  #allocation0 [shape = 'u32[]', space=smem, size = 0x4, offset = 0x4, fixed_abs, tag = 'smem constant byte address 0x4 - core index']
  #allocation1 [shape = 'u32[144,128]{1,0:T(1,128)}', space=vmem, size = 0x12000, scoped, tag = 'internal scratch']
  #allocation11 [shape = 's32[]', space=sflag, size = 0x4, offset = 0, fixed_abs, tag = 'sflag constant byte address 0x0 - dummy sync flag']
  %s0 = inlined_call_operand.hbm [shape: bf16[2,2,2,9,9,128], index: 0, kind: input, shape index: {}]
  %s1 = inlined_call_operand.hbm [shape: bf16[3,3,128,128], index: 1, kind: input, shape index: {}]
  %s2 = inlined_call_operand.hbm [shape: f32[1,128], index: 2, kind: input, shape index: {}]
  %s3 = inlined_call_operand.hbm [shape: f32[1,128], index: 3, kind: input, shape index: {}]
  %s4 = inlined_call_operand.hbm [shape: bf16[2,64,128], index: 4, kind: output, shape index: {}]
  %s5 = sld [smem:[#allocation0]]
  $region65: #{bottleneck_forward.4} parent=0
    _
  %s7 = ssub.s32 1, %s5
  %s8 = scalar_select 0, %s7, %s5
  $region1: #{bottleneck_forward.4} parent=0
    #allocation2 [shape = 'u8[294912]{0}', space=vmem, size = 0x48000, scoped, tag = 'input window, operand 0']
    #allocation3 [shape = 's32[2]{0}', space=sflag, size = 0x8, scoped, tag = 'scoped memory for bottleneck_forward.4']
    #allocation4 [shape = 's32[2]{0}', space=sflag, size = 0x8, scoped, tag = 'scoped memory for bottleneck_forward.4']
    #allocation5 [shape = 'u8[294912]{0}', space=vmem, size = 0x48000, scoped, tag = 'input window, operand 1, single buffered']
    #allocation6 [shape = 's32[1]{0}', space=sflag, size = 0x4, scoped, tag = 'scoped memory for bottleneck_forward.4']
    #allocation7 [shape = 'u8[512]{0}', space=vmem, size = 0x400, scoped, tag = 'input window, operand 2, single buffered']
    #allocation8 [shape = 'u8[512]{0}', space=vmem, size = 0x400, scoped, tag = 'input window, operand 3, single buffered']
    #allocation9 [shape = 's32[1]{0}', space=sflag, size = 0x4, scoped, tag = 'scoped memory for bottleneck_forward.4']
    #allocation10 [shape = 'u8[32768]{0}', space=vmem, size = 0x8000, scoped, tag = 'output window, operand 0']
    %9 = vsyncpa [#allocation3], 0
    %s10 = scalar_lea.sflag [#allocation3], 1
    %11 = vsyncpa %s10, 0
    %12 = vsyncpa [#allocation6], 0
    %13 = vsyncpa [#allocation9], 0
    %14 = vsyncpa [#allocation4], 0
    %s15 = scalar_lea.sflag [#allocation4], 1
    %16 = vsyncpa %s15, 0
    loop: start=0, step=1, limit=4
    $region2: #{bottleneck_forward.4} parent=1 // loop_pre_header
      _
    $region3: #{bottleneck_forward.4} parent=1 // loop_header
      %s18 = sphi 0, %s22
      %p19 = scmp.ge.s32.totalorder %s18, 4
      %s28 = sphi 0, %s30
      %s31 = sphi 0, %s28
      %s32 = sphi 0, %s31
      %s48 = sphi 0, %s32
      %s52 = sphi 0, %s52
      %s54 = sphi 0, %s52
      %s55 = sphi 0, %s54
      %s69 = sphi 0, %s55
      %s73 = sphi 0, %s73
      %s75 = sphi 0, %s73
      %s76 = sphi 0, %s75
      %s90 = sphi 0, %s76
      %s94 = sphi 0, %s94
      %s96 = sphi 0, %s94
      %s97 = sphi 0, %s96
      %s111 = sphi 0, %s97
      %s117 = sphi 0, %s119
      %s120 = sphi 0, %s117
      %s121 = sphi 0, %s120
      %s137 = sphi 0, %s121
    $region4: #{bottleneck_forward.4} parent=1 // loop_header_branch
      %21 = sbr.rel (%p19) target = $region8
    $region5: #{bottleneck_forward.4} parent=1 // loop_body
      %s23 = ssub.s32 %s18, 1
      %s24 = ssub.s32 %s18, 2
      %s25 = sadd.s32 %s18, 1
      %s26 = ssub.s32 %s18, %s25
      %p27 = scmp.eq.s32.totalorder %s26, 0
      %s29 = sadd.s32 %s28, 1
      %s30 = scalar_select %p27, %s28, %s29
      %p33 = pneg %p27
      %p34 = scmp.eq.s32.totalorder %s18, 1
      %p35 = por %p33, %p34
      %p36 = scmp.ne.s32.totalorder %s28, %s31
      %p37 = scmp.eq.s32.totalorder %s18, 0
      %p38 = por %p36, %p37
      %p39 = scmp.ne.s32.totalorder %s28, %s31
      %p40 = scmp.eq.s32.totalorder %s23, 1
      %p41 = por %p39, %p40
      %p42 = scmp.ne.s32.totalorder %s31, %s32
      %p43 = scmp.eq.s32.totalorder %s23, 0
      %p44 = por %p42, %p43
      %p45 = scmp.ne.s32.totalorder %s31, %s32
      %p46 = scmp.eq.s32.totalorder %s24, 1
      %p47 = por %p45, %p46
      %p49 = scmp.ne.s32.totalorder %s32, %s48
      %p50 = scmp.eq.s32.totalorder %s24, 0
      %p51 = por %p49, %p50
      %s53 = sadd.s32 %s52, 1
      %p56 = scmp.eq.s32.totalorder %s18, 1
      %p57 = scmp.ne.s32.totalorder %s52, %s54
      %p58 = scmp.eq.s32.totalorder %s18, 0
      %p59 = por %p57, %p58
      %p60 = scmp.ne.s32.totalorder %s52, %s54
      %p61 = scmp.eq.s32.totalorder %s23, 1
      %p62 = por %p60, %p61
      %p63 = scmp.ne.s32.totalorder %s54, %s55
      %p64 = scmp.eq.s32.totalorder %s23, 0
      %p65 = por %p63, %p64
      %p66 = scmp.ne.s32.totalorder %s54, %s55
      %p67 = scmp.eq.s32.totalorder %s24, 1
      %p68 = por %p66, %p67
      %p70 = scmp.ne.s32.totalorder %s55, %s69
      %p71 = scmp.eq.s32.totalorder %s24, 0
      %p72 = por %p70, %p71
      %s74 = sadd.s32 %s73, 1
      %p77 = scmp.eq.s32.totalorder %s18, 1
      %p78 = scmp.ne.s32.totalorder %s73, %s75
      %p79 = scmp.eq.s32.totalorder %s18, 0
      %p80 = por %p78, %p79
      %p81 = scmp.ne.s32.totalorder %s73, %s75
      %p82 = scmp.eq.s32.totalorder %s23, 1
      %p83 = por %p81, %p82
      %p84 = scmp.ne.s32.totalorder %s75, %s76
      %p85 = scmp.eq.s32.totalorder %s23, 0
      %p86 = por %p84, %p85
      %p87 = scmp.ne.s32.totalorder %s75, %s76
      %p88 = scmp.eq.s32.totalorder %s24, 1
      %p89 = por %p87, %p88
      %p91 = scmp.ne.s32.totalorder %s76, %s90
      %p92 = scmp.eq.s32.totalorder %s24, 0
      %p93 = por %p91, %p92
      %s95 = sadd.s32 %s94, 1
      %p98 = scmp.eq.s32.totalorder %s18, 1
      %p99 = scmp.ne.s32.totalorder %s94, %s96
      %p100 = scmp.eq.s32.totalorder %s18, 0
      %p101 = por %p99, %p100
      %p102 = scmp.ne.s32.totalorder %s94, %s96
      %p103 = scmp.eq.s32.totalorder %s23, 1
      %p104 = por %p102, %p103
      %p105 = scmp.ne.s32.totalorder %s96, %s97
      %p106 = scmp.eq.s32.totalorder %s23, 0
      %p107 = por %p105, %p106
      %p108 = scmp.ne.s32.totalorder %s96, %s97
      %p109 = scmp.eq.s32.totalorder %s24, 1
      %p110 = por %p108, %p109
      %p112 = scmp.ne.s32.totalorder %s97, %s111
      %p113 = scmp.eq.s32.totalorder %s24, 0
      %p114 = por %p112, %p113
      %s115 = ssub.s32 %s18, %s25
      %p116 = scmp.eq.s32.totalorder %s115, 0
      %s118 = sadd.s32 %s117, 1
      %s119 = scalar_select %p116, %s117, %s118
      %p122 = pneg %p116
      %p123 = scmp.eq.s32.totalorder %s18, 1
      %p124 = por %p122, %p123
      %p125 = scmp.ne.s32.totalorder %s117, %s120
      %p126 = scmp.eq.s32.totalorder %s18, 0
      %p127 = por %p125, %p126
      %p128 = scmp.ne.s32.totalorder %s117, %s120
      %p129 = scmp.eq.s32.totalorder %s23, 1
      %p130 = por %p128, %p129
      %p131 = scmp.ne.s32.totalorder %s120, %s121
      %p132 = scmp.eq.s32.totalorder %s23, 0
      %p133 = por %p131, %p132
      %p134 = scmp.ne.s32.totalorder %s120, %s121
      %p135 = scmp.eq.s32.totalorder %s24, 1
      %p136 = por %p134, %p135
      %p138 = scmp.ne.s32.totalorder %s121, %s137
      %p139 = scmp.eq.s32.totalorder %s24, 0
      %p140 = por %p138, %p139
      %p141 = scmp.le.s32.totalorder 1, %s18
      %p142 = scmp.lt.s32.totalorder %s18, 3
      %p143 = pnand %p141, %p142
      %p144 = pneg %p143
      // Predicated region
      $region9: #{bottleneck_forward.4} parent=5 // pred_check
        _
      $region10: #{bottleneck_forward.4} parent=5 // pred_check_branch
        %146 = sbr.rel (%p143) target = $region12
      $region11: #{bottleneck_forward.4} parent=5 // pred_region
        %s147 = ssub.s32 %s18, 1
        // Predicated region
        $region13: #{bottleneck_forward.4} parent=11 // pred_check
          %p148 = pneg %p65
        $region14: #{bottleneck_forward.4} parent=11 // pred_check_branch
          %150 = sbr.rel (%p148) target = $region16
        $region15: #{bottleneck_forward.4} parent=11 // pred_region
          %s152 = ssub.s32 9216, 9216
          %153 = vsyncadd [#allocation6], %s152
          %s154 = sshll.u32 [#allocation5], 4
          %s155 = int_to_ptr.vmem [resolvable:$true] %s154
          %160 = dma.hbm_to_vmem [thread:$0]  %s1, 9216, %s155, [#allocation6], 64, 64, 4
        $region16: #{bottleneck_forward.4} parent=11 // pred_fallthru
          _
        // Predicated region
        $region17: #{bottleneck_forward.4} parent=11 // pred_check
          %p161 = pneg %p86
        $region18: #{bottleneck_forward.4} parent=11 // pred_check_branch
          %163 = sbr.rel (%p161) target = $region20
        $region19: #{bottleneck_forward.4} parent=11 // pred_region
          %s165 = ssub.s32 16, 16
          %166 = vsyncadd [#allocation6], %s165
          %s168 = sshll.u32 [#allocation7], 4
          %s169 = int_to_ptr.vmem [resolvable:$true] %s168
          %171 = dma.hbm_to_vmem [thread:$0]  %s2, 16, %s169, [#allocation6]
        $region20: #{bottleneck_forward.4} parent=11 // pred_fallthru
          _
        // Predicated region
        $region21: #{bottleneck_forward.4} parent=11 // pred_check
          %p172 = pneg %p107
        $region22: #{bottleneck_forward.4} parent=11 // pred_check_branch
          %174 = sbr.rel (%p172) target = $region24
        $region23: #{bottleneck_forward.4} parent=11 // pred_region
          %s176 = ssub.s32 16, 16
          %177 = vsyncadd [#allocation9], %s176
          %s179 = sshll.u32 [#allocation8], 4
          %s180 = int_to_ptr.vmem [resolvable:$true] %s179
          %182 = dma.hbm_to_vmem [thread:$0]  %s3, 16, %s180, [#allocation9]
        $region24: #{bottleneck_forward.4} parent=11 // pred_fallthru
          _
      $region12: #{bottleneck_forward.4} parent=5 // pred_fallthru
        _
      %p183 = scmp.lt.s32.totalorder %s18, 2
      // Predicated region
      $region25: #{bottleneck_forward.4} parent=5 // pred_check
        %p184 = pneg %p183
      $region26: #{bottleneck_forward.4} parent=5 // pred_check_branch
        %186 = sbr.rel (%p184) target = $region28
      $region27: #{bottleneck_forward.4} parent=5 // pred_region
        // Predicated region
        $region29: #{bottleneck_forward.4} parent=27 // pred_check
          %p187 = pneg %p38
        $region30: #{bottleneck_forward.4} parent=27 // pred_check_branch
          %189 = sbr.rel (%p187) target = $region32
        $region31: #{bottleneck_forward.4} parent=27 // pred_region
          #allocation12 [shape = 'u32[6]{0}', space=smem, size = 0x18, scoped, tag = 'DMA stride descriptor']
          %s190 = sand.u32 %s28, 1
          %s191 = scalar_lea.sflag [#allocation3], %s190
          %s192 = sand.u32 %s28, 1
          %s193 = smul.addr %s192, 288
          %s194 = scalar_lea.vmem [#allocation2], %s193
          %s196 = ssub.s32 4608, 4608
          %197 = vsyncadd %s191, %s196
          %s198 = smul.addr %s18, 18
          %s199 = smul.addr %s198, 64
          %s200 = scalar_lea.hbm %s0, %s199
          %s202 = sshll.u32 1, 14
          %s203 = sxor.u32 4294967295, %s202
          %s205 = sld [smem:[#allocation0]]
          %s206 = sadd.s32 2, %s205
          %s208 = sshll.u32 7, 26
          %s209 = sxor.u32 4294967295, %s208
          %s210 = sand.u32 0, %s209
          %s211 = sshll.u32 %s206, 26
          %s212 = sor.u32 %s210, %s211
          %s213 = sshll.u32 %s194, 4
          %s214 = int_to_ptr.vmem [resolvable:$true] %s213
          %220 = sst [smem:[#allocation12]] 2304
          %s221 = scalar_lea.smem [#allocation12], 1
          %222 = sst [smem:[%s221]] 1152
          %s223 = scalar_lea.smem [#allocation12], 2
          %224 = sst [smem:[%s223]] 18
          %s225 = scalar_lea.smem [#allocation12], 3
          %226 = sst [smem:[%s225]] 64
          %s227 = scalar_lea.smem [#allocation12], 4
          %228 = sst [smem:[%s227]] 64
          %s229 = scalar_lea.smem [#allocation12], 5
          %230 = sst [smem:[%s229]] 4
          %232 = dma.general %s200, 4608, %s214, %s191, [#allocation11], [#allocation12], %s212, 0
        $region32: #{bottleneck_forward.4} parent=27 // pred_fallthru
          _
      $region28: #{bottleneck_forward.4} parent=5 // pred_fallthru
        _
      %p233 = scmp.le.s32.totalorder 1, %s18
      %p234 = scmp.lt.s32.totalorder %s18, 3
      %p235 = pnand %p233, %p234
      %p236 = pneg %p235
      // Predicated region
      $region33: #{bottleneck_forward.4} parent=5 // pred_check
        _
      $region34: #{bottleneck_forward.4} parent=5 // pred_check_branch
        %238 = sbr.rel (%p235) target = $region36
      $region35: #{bottleneck_forward.4} parent=5 // pred_region
        %s239 = ssub.s32 %s18, 1
        %s240 = sand.u32 %s31, 1
        %s241 = scalar_lea.sflag [#allocation3], %s240
        %s242 = sand.u32 %s31, 1
        %s243 = smul.addr %s242, 288
        %s244 = scalar_lea.vmem [#allocation2], %s243
        // Predicated region
        $region37: #{bottleneck_forward.4} parent=35 // pred_check
          %p245 = pneg %p44
        $region38: #{bottleneck_forward.4} parent=35 // pred_check_branch
          %247 = sbr.rel (%p245) target = $region40
        $region39: #{bottleneck_forward.4} parent=35 // pred_region
          %248 = dma.done %s241, 4608
        $region40: #{bottleneck_forward.4} parent=35 // pred_fallthru
          _
        // Predicated region
        $region41: #{bottleneck_forward.4} parent=35 // pred_check
          %p249 = pneg %p65
        $region42: #{bottleneck_forward.4} parent=35 // pred_check_branch
          %251 = sbr.rel (%p249) target = $region44
        $region43: #{bottleneck_forward.4} parent=35 // pred_region
          %252 = dma.done [#allocation6], 9216
        $region44: #{bottleneck_forward.4} parent=35 // pred_fallthru
          _
        // Predicated region
        $region45: #{bottleneck_forward.4} parent=35 // pred_check
          %p253 = pneg %p86
        $region46: #{bottleneck_forward.4} parent=35 // pred_check_branch
          %255 = sbr.rel (%p253) target = $region48
        $region47: #{bottleneck_forward.4} parent=35 // pred_region
          %256 = dma.done [#allocation6], 16
        $region48: #{bottleneck_forward.4} parent=35 // pred_fallthru
          _
        // Predicated region
        $region49: #{bottleneck_forward.4} parent=35 // pred_check
          %p257 = pneg %p107
        $region50: #{bottleneck_forward.4} parent=35 // pred_check_branch
          %259 = sbr.rel (%p257) target = $region52
        $region51: #{bottleneck_forward.4} parent=35 // pred_region
          %260 = dma.done [#allocation9], 16
        $region52: #{bottleneck_forward.4} parent=35 // pred_fallthru
          _
        %s261 = sand.u32 %s31, 1
        %s262 = scalar_lea.sflag [#allocation3], %s261
        %s263 = sand.u32 %s31, 1
        %s264 = smul.addr %s263, 288
        %s265 = scalar_lea.vmem [#allocation2], %s264
        %p266 = pneg %p44
        %p267 = pneg %p41
        %p268 = pneg %p65
        %p269 = pneg %p62
        %p270 = pneg %p86
        %p271 = pneg %p83
        %p272 = pneg %p107
        %p273 = pneg %p104
        %p274 = pneg %p133
        %p275 = pneg %p130
        %s276 = sand.u32 %s120, 1
        %s277 = scalar_lea.sflag [#allocation4], %s276
        %s278 = sand.u32 %s120, 1
        %s279 = smul.addr %s278, 32
        %s280 = scalar_lea.vmem [#allocation10], %s279
        %v282 = vld [vmem:[%s244] sm:$0xf]
        %v283 = vld [vmem:[%s244 + $0x8] sm:$0xf]
        %v284 = vld [vmem:[%s244 + $0x10] sm:$0xf]
        %v285 = vld [vmem:[%s244 + $0x18] sm:$0xf]
        %v286 = vld [vmem:[%s244 + $0x20] sm:$0xf]
        %v287 = vld [vmem:[%s244 + $0x28] sm:$0xf]
        %v288 = vld [vmem:[%s244 + $0x30] sm:$0xf]
        %v289 = vld [vmem:[%s244 + $0x38] sm:$0xf]
        %v290 = vld [vmem:[#allocation5] sm:$0xf]
        %v291 = vld [vmem:[#allocation5 + $0x4] sm:$0xf]
        %v292 = vld [vmem:[#allocation5 + $0x8] sm:$0xf]
        %v293 = vld [vmem:[#allocation5 + $0xc] sm:$0xf]
        %v294 = vld [vmem:[#allocation5 + $0x10] sm:$0xf]
        %v295 = vld [vmem:[#allocation5 + $0x14] sm:$0xf]
        %v296 = vld [vmem:[#allocation5 + $0x18] sm:$0xf]
        %v297 = vld [vmem:[#allocation5 + $0x1c] sm:$0xf]
        %v298 = vld [vmem:[#allocation5 + $0x20] sm:$0xf]
        %v299 = vld [vmem:[#allocation5 + $0x24] sm:$0xf]
        %v300 = vld [vmem:[#allocation5 + $0x28] sm:$0xf]
        %v301 = vld [vmem:[#allocation5 + $0x2c] sm:$0xf]
        %v302 = vld [vmem:[#allocation5 + $0x30] sm:$0xf]
        %v303 = vld [vmem:[#allocation5 + $0x34] sm:$0xf]
        %v304 = vld [vmem:[#allocation5 + $0x38] sm:$0xf]
        %v305 = vld [vmem:[#allocation5 + $0x3c] sm:$0xf]
        %s306 = scalar_lea.vmem %s244, 72 [#allocation2]
        %v307 = vld [vmem:[%s306] sm:$0xf]
        %v308 = vld [vmem:[%s306 + $0x8] sm:$0xf]
        %v309 = vld [vmem:[%s306 + $0x10] sm:$0xf]
        %v310 = vld [vmem:[%s306 + $0x18] sm:$0xf]
        %v311 = vld [vmem:[%s306 + $0x20] sm:$0xf]
        %v312 = vld [vmem:[%s306 + $0x28] sm:$0xf]
        %v313 = vld [vmem:[%s306 + $0x30] sm:$0xf]
        %v314 = vld [vmem:[%s306 + $0x38] sm:$0xf]
        %s315 = scalar_lea.vmem [#allocation5], 64
        %v316 = vld [vmem:[%s315] sm:$0xf]
        %v317 = vld [vmem:[%s315 + $0x4] sm:$0xf]
        %v318 = vld [vmem:[%s315 + $0x8] sm:$0xf]
        %v319 = vld [vmem:[%s315 + $0xc] sm:$0xf]
        %v320 = vld [vmem:[%s315 + $0x10] sm:$0xf]
        %v321 = vld [vmem:[%s315 + $0x14] sm:$0xf]
        %v322 = vld [vmem:[%s315 + $0x18] sm:$0xf]
        %v323 = vld [vmem:[%s315 + $0x1c] sm:$0xf]
        %v324 = vld [vmem:[%s315 + $0x20] sm:$0xf]
        %v325 = vld [vmem:[%s315 + $0x24] sm:$0xf]
        %v326 = vld [vmem:[%s315 + $0x28] sm:$0xf]
        %v327 = vld [vmem:[%s315 + $0x2c] sm:$0xf]
        %v328 = vld [vmem:[%s315 + $0x30] sm:$0xf]
        %v329 = vld [vmem:[%s315 + $0x34] sm:$0xf]
        %v330 = vld [vmem:[%s315 + $0x38] sm:$0xf]
        %v331 = vld [vmem:[%s315 + $0x3c] sm:$0xf]
        %v340 = vunpack.c.l.b16 %v307
        %v341 = vunpack.c.l.b16 %v308
        %v342 = vunpack.c.l.b16 %v309
        %v343 = vunpack.c.l.b16 %v310
        %v344 = vunpack.c.l.b16 %v311
        %v345 = vunpack.c.l.b16 %v312
        %v346 = vunpack.c.l.b16 %v313
        %v347 = vunpack.c.l.b16 %v314
        %v348 = vpack.c.b16 %v341, %v340
        %v349 = vpack.c.b16 %v343, %v342
        %v350 = vpack.c.b16 %v345, %v344
        %v351 = vpack.c.b16 %v347, %v346
        %v372 = vunpack.c.l.b16 %v316
        %v373 = vunpack.c.l.b16 %v317
        %v374 = vunpack.c.l.b16 %v318
        %v375 = vunpack.c.l.b16 %v319
        %v376 = vunpack.c.l.b16 %v320
        %v377 = vunpack.c.l.b16 %v321
        %v378 = vunpack.c.l.b16 %v322
        %v379 = vunpack.c.l.b16 %v323
        %v380 = vunpack.c.l.b16 %v324
        %v381 = vunpack.c.l.b16 %v325
        %v382 = vunpack.c.l.b16 %v326
        %v383 = vunpack.c.l.b16 %v327
        %v384 = vunpack.c.l.b16 %v328
        %v385 = vunpack.c.l.b16 %v329
        %v386 = vunpack.c.l.b16 %v330
        %v387 = vunpack.c.l.b16 %v331
        %v388 = vpack.c.b16 %v373, %v372
        %v389 = vpack.c.b16 %v375, %v374
        %v390 = vpack.c.b16 %v377, %v376
        %v391 = vpack.c.b16 %v379, %v378
        %v392 = vpack.c.b16 %v381, %v380
        %v393 = vpack.c.b16 %v383, %v382
        %v394 = vpack.c.b16 %v385, %v384
        %v395 = vpack.c.b16 %v387, %v386
        %404 = vmatprep.subr.bf16.mxu0 0
        %405 = vmatpush1.bf16.msra.mxu0 %v388
        %406 = vmatprep.subr.bf16.mxu0 0
        %407 = vmatpush1.bf16.msra.mxu0 %v389
        %408 = vmatprep.subr.bf16.mxu0 0
        %409 = vmatpush1.bf16.msra.mxu0 %v390
        %410 = vmatprep.subr.bf16.mxu0 0
        %411 = vmatpush1.bf16.msra.mxu0 %v391
        %412 = vmatprep.subr.bf16.mxu0 0
        %413 = vmatpush1.bf16.msra.mxu0 %v392
        %414 = vmatprep.subr.bf16.mxu0 0
        %415 = vmatpush1.bf16.msra.mxu0 %v393
        %416 = vmatprep.subr.bf16.mxu0 0
        %417 = vmatpush1.bf16.msra.mxu0 %v394
        %418 = vmatprep.subr.bf16.mxu0 0
        %419 = vmatpush1.bf16.msra.mxu0 %v395
        %420 = vmatprep.subr.bf16.mxu0 0
        %421 = vmatpush1.bf16.msra.mxu0 0
        %422 = vmatprep.subr.bf16.mxu0 0
        %423 = vmatpush1.bf16.msra.mxu0 0
        %424 = vmatprep.subr.bf16.mxu0 0
        %425 = vmatpush1.bf16.msra.mxu0 0
        %426 = vmatprep.subr.bf16.mxu0 0
        %427 = vmatpush1.bf16.msra.mxu0 0
        %428 = vmatprep.subr.bf16.mxu0 0
        %429 = vmatpush1.bf16.msra.mxu0 0
        %430 = vmatprep.subr.bf16.mxu0 0
        %431 = vmatpush1.bf16.msra.mxu0 0
        %432 = vmatprep.subr.bf16.mxu0 0
        %433 = vmatpush1.bf16.msra.mxu0 0
        %434 = vmatprep.subr.bf16.mxu0 0
        %435 = vmatpush1.bf16.msra.mxu0 0
        %436 = vmatprep.mubr.bf16.mxu0 0
        %437 = vmatmul.mubr.bf16.gmra.mrb[0].mxu0 %v348
        %v438 = vpop.f32.mrb[0].mxu0
        %v439 = vadd.f32 0.0, %v438
        %v440 = vpop.f32.mrb[0].mxu0
        %v441 = vpop.f32.mrb[0].mxu0
        %v442 = vadd.f32 0.0, %v441
        %v443 = vpop.f32.mrb[0].mxu0
        %444 = vmatprep.mubr.bf16.mxu0 0
        %445 = vmatmul.mubr.bf16.gmra.mrb[0].mxu0 %v349
        %v446 = vpop.f32.mrb[0].mxu0
        %v447 = vadd.f32 0.0, %v446
        %v448 = vpop.f32.mrb[0].mxu0
        %v449 = vpop.f32.mrb[0].mxu0
        %v450 = vadd.f32 0.0, %v449
        %v451 = vpop.f32.mrb[0].mxu0
        %452 = vmatprep.mubr.bf16.mxu0 0
        %453 = vmatmul.mubr.bf16.gmra.mrb[0].mxu0 %v350
        %v454 = vpop.f32.mrb[0].mxu0
        %v455 = vadd.f32 0.0, %v454
        %v456 = vpop.f32.mrb[0].mxu0
        %v457 = vpop.f32.mrb[0].mxu0
        %v458 = vadd.f32 0.0, %v457
        %v459 = vpop.f32.mrb[0].mxu0
        %460 = vmatprep.mubr.bf16.mxu0 0
        %461 = vmatmul.mubr.bf16.gmra.mrb[0].mxu0 %v351
        %v462 = vpop.f32.mrb[0].mxu0
        %v463 = vadd.f32 0.0, %v462
        %v464 = vpop.f32.mrb[0].mxu0
        %v465 = vpop.f32.mrb[0].mxu0
        %v466 = vadd.f32 0.0, %v465
        %v467 = vpop.f32.mrb[0].mxu0
        %468 = vdwg.mxu0
        %v477 = vunpack.c.l.b16 %v282
        %v478 = vunpack.c.l.b16 %v283
        %v479 = vunpack.c.l.b16 %v284
        %v480 = vunpack.c.l.b16 %v285
        %v481 = vunpack.c.l.b16 %v286
        %v482 = vunpack.c.l.b16 %v287
        %v483 = vunpack.c.l.b16 %v288
        %v484 = vunpack.c.l.b16 %v289
        %v485 = vpack.c.b16 %v478, %v477
        %v486 = vpack.c.b16 %v480, %v479
        %v487 = vpack.c.b16 %v482, %v481
        %v488 = vpack.c.b16 %v484, %v483
        %v509 = vunpack.c.l.b16 %v290
        %v510 = vunpack.c.l.b16 %v291
        %v511 = vunpack.c.l.b16 %v292
        %v512 = vunpack.c.l.b16 %v293
        %v513 = vunpack.c.l.b16 %v294
        %v514 = vunpack.c.l.b16 %v295
        %v515 = vunpack.c.l.b16 %v296
        %v516 = vunpack.c.l.b16 %v297
        %v517 = vunpack.c.l.b16 %v298
        %v518 = vunpack.c.l.b16 %v299
        %v519 = vunpack.c.l.b16 %v300
        %v520 = vunpack.c.l.b16 %v301
        %v521 = vunpack.c.l.b16 %v302
        %v522 = vunpack.c.l.b16 %v303
        %v523 = vunpack.c.l.b16 %v304
        %v524 = vunpack.c.l.b16 %v305
        %v525 = vpack.c.b16 %v510, %v509
        %v526 = vpack.c.b16 %v512, %v511
        %v527 = vpack.c.b16 %v514, %v513
        %v528 = vpack.c.b16 %v516, %v515
        %v529 = vpack.c.b16 %v518, %v517
        %v530 = vpack.c.b16 %v520, %v519
        %v531 = vpack.c.b16 %v522, %v521
        %v532 = vpack.c.b16 %v524, %v523
        %541 = vmatprep.subr.bf16.mxu0 0
        %542 = vmatpush1.bf16.msra.mxu0 %v525
        %543 = vmatprep.subr.bf16.mxu0 0
        %544 = vmatpush1.bf16.msra.mxu0 %v526
        %545 = vmatprep.subr.bf16.mxu0 0
        %546 = vmatpush1.bf16.msra.mxu0 %v527
        %547 = vmatprep.subr.bf16.mxu0 0
        %548 = vmatpush1.bf16.msra.mxu0 %v528
        %549 = vmatprep.subr.bf16.mxu0 0
        %550 = vmatpush1.bf16.msra.mxu0 %v529
        %551 = vmatprep.subr.bf16.mxu0 0
        %552 = vmatpush1.bf16.msra.mxu0 %v530
        %553 = vmatprep.subr.bf16.mxu0 0
        %554 = vmatpush1.bf16.msra.mxu0 %v531
        %555 = vmatprep.subr.bf16.mxu0 0
        %556 = vmatpush1.bf16.msra.mxu0 %v532
        %557 = vmatprep.subr.bf16.mxu0 0
        %558 = vmatpush1.bf16.msra.mxu0 0
        %559 = vmatprep.subr.bf16.mxu0 0
        %560 = vmatpush1.bf16.msra.mxu0 0
        %561 = vmatprep.subr.bf16.mxu0 0
        %562 = vmatpush1.bf16.msra.mxu0 0
        %563 = vmatprep.subr.bf16.mxu0 0
        %564 = vmatpush1.bf16.msra.mxu0 0
        %565 = vmatprep.subr.bf16.mxu0 0
        %566 = vmatpush1.bf16.msra.mxu0 0
        %567 = vmatprep.subr.bf16.mxu0 0
        %568 = vmatpush1.bf16.msra.mxu0 0
        %569 = vmatprep.subr.bf16.mxu0 0
        %570 = vmatpush1.bf16.msra.mxu0 0
        %571 = vmatprep.subr.bf16.mxu0 0
        %572 = vmatpush1.bf16.msra.mxu0 0
        %573 = vmatprep.mubr.bf16.mxu0 0
        %574 = vmatmul.mubr.bf16.gmra.mrb[0].mxu0 %v485
        %v575 = vpop.f32.mrb[0].mxu0
        %v576 = vadd.f32 %v439, %v575
        %v577 = vpop.f32.mrb[0].mxu0
        %v578 = vpop.f32.mrb[0].mxu0
        %v579 = vadd.f32 %v442, %v578
        %v580 = vpop.f32.mrb[0].mxu0
        %581 = vmatprep.mubr.bf16.mxu0 0
        %582 = vmatmul.mubr.bf16.gmra.mrb[0].mxu0 %v486
        %v583 = vpop.f32.mrb[0].mxu0
        %v584 = vadd.f32 %v447, %v583
        %v585 = vpop.f32.mrb[0].mxu0
        %v586 = vpop.f32.mrb[0].mxu0
        %v587 = vadd.f32 %v450, %v586
        %v588 = vpop.f32.mrb[0].mxu0
        %589 = vmatprep.mubr.bf16.mxu0 0
        %590 = vmatmul.mubr.bf16.gmra.mrb[0].mxu0 %v487
        %v591 = vpop.f32.mrb[0].mxu0
        %v592 = vadd.f32 %v455, %v591
        %v593 = vpop.f32.mrb[0].mxu0
        %v594 = vpop.f32.mrb[0].mxu0
        %v595 = vadd.f32 %v458, %v594
        %v596 = vpop.f32.mrb[0].mxu0
        %597 = vmatprep.mubr.bf16.mxu0 0
        %598 = vmatmul.mubr.bf16.gmra.mrb[0].mxu0 %v488
        %v599 = vpop.f32.mrb[0].mxu0
        %v600 = vadd.f32 %v463, %v599
        %v601 = vpop.f32.mrb[0].mxu0
        %v602 = vpop.f32.mrb[0].mxu0
        %v603 = vadd.f32 %v466, %v602
        %v604 = vpop.f32.mrb[0].mxu0
        %605 = vdwg.mxu0
        %v606 = vld [vmem:[%s244] sm:$0xf]
        %v607 = vld [vmem:[%s244 + $0x4] sm:$0x1]
        %v608 = vld [vmem:[%s244 + $0x8] sm:$0xf]
        %v609 = vld [vmem:[%s244 + $0xc] sm:$0x1]
        %v610 = vld [vmem:[%s244 + $0x10] sm:$0xf]
        %v611 = vld [vmem:[%s244 + $0x14] sm:$0x1]
        %v612 = vld [vmem:[%s244 + $0x18] sm:$0xf]
        %v613 = vld [vmem:[%s244 + $0x1c] sm:$0x1]
        %v614 = vld [vmem:[%s244 + $0x20] sm:$0xf]
        %v615 = vld [vmem:[%s244 + $0x24] sm:$0x1]
        %v616 = vld [vmem:[%s244 + $0x28] sm:$0xf]
        %v617 = vld [vmem:[%s244 + $0x2c] sm:$0x1]
        %v618 = vld [vmem:[%s244 + $0x30] sm:$0xf]
        %v619 = vld [vmem:[%s244 + $0x34] sm:$0x1]
        %v620 = vld [vmem:[%s244 + $0x38] sm:$0xf]
        %v621 = vld [vmem:[%s244 + $0x3c] sm:$0x1]
        %vm622 = vsmask.f32 3328
        %vm623 = vsmask.f32 7440
        %vm624 = vmor %vm622, %vm623
        %v626 = vshrl.u32 %v606, 16
        %v628 = vrot.slane %v626, 4
        %v629 = vshll.u32 %v606, 16
        %v631 = vrot.slane %v629, 5
        %v632 = vor.u32 %v628, %v631
        %v633 = vrot.slane %v632, 4
        %v635 = vshll.u32 %v607, 16
        %v637 = vrot.slane %v635, 5
        %v638 = vsel %vm624, %v633, %v637
        %v640 = vshrl.u32 %v608, 16
        %v642 = vrot.slane %v640, 4
        %v643 = vshll.u32 %v608, 16
        %v645 = vrot.slane %v643, 5
        %v646 = vor.u32 %v642, %v645
        %v647 = vrot.slane %v646, 4
        %v649 = vshll.u32 %v609, 16
        %v651 = vrot.slane %v649, 5
        %v652 = vsel %vm624, %v647, %v651
        %v654 = vshrl.u32 %v610, 16
        %v656 = vrot.slane %v654, 4
        %v657 = vshll.u32 %v610, 16
        %v659 = vrot.slane %v657, 5
        %v660 = vor.u32 %v656, %v659
        %v661 = vrot.slane %v660, 4
        %v663 = vshll.u32 %v611, 16
        %v665 = vrot.slane %v663, 5
        %v666 = vsel %vm624, %v661, %v665
        %v668 = vshrl.u32 %v612, 16
        %v670 = vrot.slane %v668, 4
        %v671 = vshll.u32 %v612, 16
        %v673 = vrot.slane %v671, 5
        %v674 = vor.u32 %v670, %v673
        %v675 = vrot.slane %v674, 4
        %v677 = vshll.u32 %v613, 16
        %v679 = vrot.slane %v677, 5
        %v680 = vsel %vm624, %v675, %v679
        %v682 = vshrl.u32 %v614, 16
        %v684 = vrot.slane %v682, 4
        %v685 = vshll.u32 %v614, 16
        %v687 = vrot.slane %v685, 5
        %v688 = vor.u32 %v684, %v687
        %v689 = vrot.slane %v688, 4
        %v691 = vshll.u32 %v615, 16
        %v693 = vrot.slane %v691, 5
        %v694 = vsel %vm624, %v689, %v693
        %v696 = vshrl.u32 %v616, 16
        %v698 = vrot.slane %v696, 4
        %v699 = vshll.u32 %v616, 16
        %v701 = vrot.slane %v699, 5
        %v702 = vor.u32 %v698, %v701
        %v703 = vrot.slane %v702, 4
        %v705 = vshll.u32 %v617, 16
        %v707 = vrot.slane %v705, 5
        %v708 = vsel %vm624, %v703, %v707
        %v710 = vshrl.u32 %v618, 16
        %v712 = vrot.slane %v710, 4
        %v713 = vshll.u32 %v618, 16
        %v715 = vrot.slane %v713, 5
        %v716 = vor.u32 %v712, %v715
        %v717 = vrot.slane %v716, 4
        %v719 = vshll.u32 %v619, 16
        %v721 = vrot.slane %v719, 5
        %v722 = vsel %vm624, %v717, %v721
        %v724 = vshrl.u32 %v620, 16
        %v726 = vrot.slane %v724, 4
        %v727 = vshll.u32 %v620, 16
        %v729 = vrot.slane %v727, 5
        %v730 = vor.u32 %v726, %v729
        %v731 = vrot.slane %v730, 4
        %v733 = vshll.u32 %v621, 16
        %v735 = vrot.slane %v733, 5
        %v736 = vsel %vm624, %v731, %v735
        %s737 = scalar_lea.vmem [#allocation5], 128
        %v738 = vld [vmem:[%s737] sm:$0xf]
        %v739 = vld [vmem:[%s737 + $0x4] sm:$0xf]
        %v740 = vld [vmem:[%s737 + $0x8] sm:$0xf]
        %v741 = vld [vmem:[%s737 + $0xc] sm:$0xf]
        %v742 = vld [vmem:[%s737 + $0x10] sm:$0xf]
        %v743 = vld [vmem:[%s737 + $0x14] sm:$0xf]
        %v744 = vld [vmem:[%s737 + $0x18] sm:$0xf]
        %v745 = vld [vmem:[%s737 + $0x1c] sm:$0xf]
        %v746 = vld [vmem:[%s737 + $0x20] sm:$0xf]
        %v747 = vld [vmem:[%s737 + $0x24] sm:$0xf]
        %v748 = vld [vmem:[%s737 + $0x28] sm:$0xf]
        %v749 = vld [vmem:[%s737 + $0x2c] sm:$0xf]
        %v750 = vld [vmem:[%s737 + $0x30] sm:$0xf]
        %v751 = vld [vmem:[%s737 + $0x34] sm:$0xf]
        %v752 = vld [vmem:[%s737 + $0x38] sm:$0xf]
        %v753 = vld [vmem:[%s737 + $0x3c] sm:$0xf]
        %v754 = vunpack.c.l.b16 %v638
        %v755 = vunpack.c.l.b16 %v652
        %v756 = vunpack.c.l.b16 %v666
        %v757 = vunpack.c.l.b16 %v680
        %v758 = vunpack.c.l.b16 %v694
        %v759 = vunpack.c.l.b16 %v708
        %v760 = vunpack.c.l.b16 %v722
        %v761 = vunpack.c.l.b16 %v736
        %v762 = vpack.c.b16 %v755, %v754
        %v763 = vpack.c.b16 %v757, %v756
        %v764 = vpack.c.b16 %v759, %v758
        %v765 = vpack.c.b16 %v761, %v760
        %v786 = vunpack.c.l.b16 %v738
        %v787 = vunpack.c.l.b16 %v739
        %v788 = vunpack.c.l.b16 %v740
        %v789 = vunpack.c.l.b16 %v741
        %v790 = vunpack.c.l.b16 %v742
        %v791 = vunpack.c.l.b16 %v743
        %v792 = vunpack.c.l.b16 %v744
        %v793 = vunpack.c.l.b16 %v745
        %v794 = vunpack.c.l.b16 %v746
        %v795 = vunpack.c.l.b16 %v747
        %v796 = vunpack.c.l.b16 %v748
        %v797 = vunpack.c.l.b16 %v749
        %v798 = vunpack.c.l.b16 %v750
        %v799 = vunpack.c.l.b16 %v751
        %v800 = vunpack.c.l.b16 %v752
        %v801 = vunpack.c.l.b16 %v753
        %v802 = vpack.c.b16 %v787, %v786
        %v803 = vpack.c.b16 %v789, %v788
        %v804 = vpack.c.b16 %v791, %v790
        %v805 = vpack.c.b16 %v793, %v792
        %v806 = vpack.c.b16 %v795, %v794
        %v807 = vpack.c.b16 %v797, %v796
        %v808 = vpack.c.b16 %v799, %v798
        %v809 = vpack.c.b16 %v801, %v800
        %818 = vmatprep.subr.bf16.mxu0 0
        %819 = vmatpush1.bf16.msra.mxu0 %v802
        %820 = vmatprep.subr.bf16.mxu0 0
        %821 = vmatpush1.bf16.msra.mxu0 %v803
        %822 = vmatprep.subr.bf16.mxu0 0
        %823 = vmatpush1.bf16.msra.mxu0 %v804
        %824 = vmatprep.subr.bf16.mxu0 0
        %825 = vmatpush1.bf16.msra.mxu0 %v805
        %826 = vmatprep.subr.bf16.mxu0 0
        %827 = vmatpush1.bf16.msra.mxu0 %v806
        %828 = vmatprep.subr.bf16.mxu0 0
        %829 = vmatpush1.bf16.msra.mxu0 %v807
        %830 = vmatprep.subr.bf16.mxu0 0
        %831 = vmatpush1.bf16.msra.mxu0 %v808
        %832 = vmatprep.subr.bf16.mxu0 0
        %833 = vmatpush1.bf16.msra.mxu0 %v809
        %834 = vmatprep.subr.bf16.mxu0 0
        %835 = vmatpush1.bf16.msra.mxu0 0
        %836 = vmatprep.subr.bf16.mxu0 0
        %837 = vmatpush1.bf16.msra.mxu0 0
        %838 = vmatprep.subr.bf16.mxu0 0
        %839 = vmatpush1.bf16.msra.mxu0 0
        %840 = vmatprep.subr.bf16.mxu0 0
        %841 = vmatpush1.bf16.msra.mxu0 0
        %842 = vmatprep.subr.bf16.mxu0 0
        %843 = vmatpush1.bf16.msra.mxu0 0
        %844 = vmatprep.subr.bf16.mxu0 0
        %845 = vmatpush1.bf16.msra.mxu0 0
        %846 = vmatprep.subr.bf16.mxu0 0
        %847 = vmatpush1.bf16.msra.mxu0 0
        %848 = vmatprep.subr.bf16.mxu0 0
        %849 = vmatpush1.bf16.msra.mxu0 0
        %850 = vmatprep.mubr.bf16.mxu0 0
        %851 = vmatmul.mubr.bf16.gmra.mrb[0].mxu0 %v762
        %v852 = vpop.f32.mrb[0].mxu0
        %v853 = vadd.f32 0.0, %v852
        %v854 = vpop.f32.mrb[0].mxu0
        %v855 = vpop.f32.mrb[0].mxu0
        %v856 = vadd.f32 0.0, %v855
        %v857 = vpop.f32.mrb[0].mxu0
        %858 = vmatprep.mubr.bf16.mxu0 0
        %859 = vmatmul.mubr.bf16.gmra.mrb[0].mxu0 %v763
        %v860 = vpop.f32.mrb[0].mxu0
        %v861 = vadd.f32 0.0, %v860
        %v862 = vpop.f32.mrb[0].mxu0
        %v863 = vpop.f32.mrb[0].mxu0
        %v864 = vadd.f32 0.0, %v863
        %v865 = vpop.f32.mrb[0].mxu0
        %866 = vmatprep.mubr.bf16.mxu0 0
        %867 = vmatmul.mubr.bf16.gmra.mrb[0].mxu0 %v764
        %v868 = vpop.f32.mrb[0].mxu0
        %v869 = vadd.f32 0.0, %v868
        %v870 = vpop.f32.mrb[0].mxu0
        %v871 = vpop.f32.mrb[0].mxu0
        %v872 = vadd.f32 0.0, %v871
        %v873 = vpop.f32.mrb[0].mxu0
        %874 = vmatprep.mubr.bf16.mxu0 0
        %875 = vmatmul.mubr.bf16.gmra.mrb[0].mxu0 %v765
        %v876 = vpop.f32.mrb[0].mxu0
        %v877 = vadd.f32 0.0, %v876
        %v878 = vpop.f32.mrb[0].mxu0
        %v879 = vpop.f32.mrb[0].mxu0
        %v880 = vadd.f32 0.0, %v879
        %v881 = vpop.f32.mrb[0].mxu0
        %882 = vdwg.mxu0
        %v883 = vadd.f32 %v576, %v853
        %v884 = vadd.f32 %v579, %v856
        %v885 = vadd.f32 %v584, %v861
        %v886 = vadd.f32 %v587, %v864
        %v887 = vadd.f32 %v592, %v869
        %v888 = vadd.f32 %v595, %v872
        %v889 = vadd.f32 %v600, %v877
        %v890 = vadd.f32 %v603, %v880
        %s891 = scalar_lea.vmem %s244, 144 [#allocation2]
        %v892 = vld [vmem:[%s891] sm:$0xf]
        %v893 = vld [vmem:[%s891 + $0x8] sm:$0xf]
        %v894 = vld [vmem:[%s891 + $0x10] sm:$0xf]
        %v895 = vld [vmem:[%s891 + $0x18] sm:$0xf]
        %v896 = vld [vmem:[%s891 + $0x20] sm:$0xf]
        %v897 = vld [vmem:[%s891 + $0x28] sm:$0xf]
        %v898 = vld [vmem:[%s891 + $0x30] sm:$0xf]
        %v899 = vld [vmem:[%s891 + $0x38] sm:$0xf]
        %s900 = scalar_lea.vmem [#allocation5], 192
        %v901 = vld [vmem:[%s900] sm:$0xf]
        %v902 = vld [vmem:[%s900 + $0x4] sm:$0xf]
        %v903 = vld [vmem:[%s900 + $0x8] sm:$0xf]
        %v904 = vld [vmem:[%s900 + $0xc] sm:$0xf]
        %v905 = vld [vmem:[%s900 + $0x10] sm:$0xf]
        %v906 = vld [vmem:[%s900 + $0x14] sm:$0xf]
        %v907 = vld [vmem:[%s900 + $0x18] sm:$0xf]
        %v908 = vld [vmem:[%s900 + $0x1c] sm:$0xf]
        %v909 = vld [vmem:[%s900 + $0x20] sm:$0xf]
        %v910 = vld [vmem:[%s900 + $0x24] sm:$0xf]
        %v911 = vld [vmem:[%s900 + $0x28] sm:$0xf]
        %v912 = vld [vmem:[%s900 + $0x2c] sm:$0xf]
        %v913 = vld [vmem:[%s900 + $0x30] sm:$0xf]
        %v914 = vld [vmem:[%s900 + $0x34] sm:$0xf]
        %v915 = vld [vmem:[%s900 + $0x38] sm:$0xf]
        %v916 = vld [vmem:[%s900 + $0x3c] sm:$0xf]
        %v925 = vunpack.c.l.b16 %v892
        %v926 = vunpack.c.l.b16 %v893
        %v927 = vunpack.c.l.b16 %v894
        %v928 = vunpack.c.l.b16 %v895
        %v929 = vunpack.c.l.b16 %v896
        %v930 = vunpack.c.l.b16 %v897
        %v931 = vunpack.c.l.b16 %v898
        %v932 = vunpack.c.l.b16 %v899
        %v933 = vpack.c.b16 %v926, %v925
        %v934 = vpack.c.b16 %v928, %v927
        %v935 = vpack.c.b16 %v930, %v929
        %v936 = vpack.c.b16 %v932, %v931
        %v957 = vunpack.c.l.b16 %v901
        %v958 = vunpack.c.l.b16 %v902
        %v959 = vunpack.c.l.b16 %v903
        %v960 = vunpack.c.l.b16 %v904
        %v961 = vunpack.c.l.b16 %v905
        %v962 = vunpack.c.l.b16 %v906
        %v963 = vunpack.c.l.b16 %v907
        %v964 = vunpack.c.l.b16 %v908
        %v965 = vunpack.c.l.b16 %v909
        %v966 = vunpack.c.l.b16 %v910
        %v967 = vunpack.c.l.b16 %v911
        %v968 = vunpack.c.l.b16 %v912
        %v969 = vunpack.c.l.b16 %v913
        %v970 = vunpack.c.l.b16 %v914
        %v971 = vunpack.c.l.b16 %v915
        %v972 = vunpack.c.l.b16 %v916
        %v973 = vpack.c.b16 %v958, %v957
        %v974 = vpack.c.b16 %v960, %v959
        %v975 = vpack.c.b16 %v962, %v961
        %v976 = vpack.c.b16 %v964, %v963
        %v977 = vpack.c.b16 %v966, %v965
        %v978 = vpack.c.b16 %v968, %v967
        %v979 = vpack.c.b16 %v970, %v969
        %v980 = vpack.c.b16 %v972, %v971
        %989 = vmatprep.subr.bf16.mxu0 0
        %990 = vmatpush1.bf16.msra.mxu0 %v973
        %991 = vmatprep.subr.bf16.mxu0 0
        %992 = vmatpush1.bf16.msra.mxu0 %v974
        %993 = vmatprep.subr.bf16.mxu0 0
        %994 = vmatpush1.bf16.msra.mxu0 %v975
        %995 = vmatprep.subr.bf16.mxu0 0
        %996 = vmatpush1.bf16.msra.mxu0 %v976
        %997 = vmatprep.subr.bf16.mxu0 0
        %998 = vmatpush1.bf16.msra.mxu0 %v977
        %999 = vmatprep.subr.bf16.mxu0 0
        %1000 = vmatpush1.bf16.msra.mxu0 %v978
        %1001 = vmatprep.subr.bf16.mxu0 0
        %1002 = vmatpush1.bf16.msra.mxu0 %v979
        %1003 = vmatprep.subr.bf16.mxu0 0
        %1004 = vmatpush1.bf16.msra.mxu0 %v980
        %1005 = vmatprep.subr.bf16.mxu0 0
        %1006 = vmatpush1.bf16.msra.mxu0 0
        %1007 = vmatprep.subr.bf16.mxu0 0
        %1008 = vmatpush1.bf16.msra.mxu0 0
        %1009 = vmatprep.subr.bf16.mxu0 0
        %1010 = vmatpush1.bf16.msra.mxu0 0
        %1011 = vmatprep.subr.bf16.mxu0 0
        %1012 = vmatpush1.bf16.msra.mxu0 0
        %1013 = vmatprep.subr.bf16.mxu0 0
        %1014 = vmatpush1.bf16.msra.mxu0 0
        %1015 = vmatprep.subr.bf16.mxu0 0
        %1016 = vmatpush1.bf16.msra.mxu0 0
        %1017 = vmatprep.subr.bf16.mxu0 0
        %1018 = vmatpush1.bf16.msra.mxu0 0
        %1019 = vmatprep.subr.bf16.mxu0 0
        %1020 = vmatpush1.bf16.msra.mxu0 0
        %1021 = vmatprep.mubr.bf16.mxu0 0
        %1022 = vmatmul.mubr.bf16.gmra.mrb[0].mxu0 %v933
        %v1023 = vpop.f32.mrb[0].mxu0
        %v1024 = vadd.f32 0.0, %v1023
        %v1025 = vpop.f32.mrb[0].mxu0
        %v1026 = vpop.f32.mrb[0].mxu0
        %v1027 = vadd.f32 0.0, %v1026
        %v1028 = vpop.f32.mrb[0].mxu0
        %1029 = vmatprep.mubr.bf16.mxu0 0
        %1030 = vmatmul.mubr.bf16.gmra.mrb[0].mxu0 %v934
        %v1031 = vpop.f32.mrb[0].mxu0
        %v1032 = vadd.f32 0.0, %v1031
        %v1033 = vpop.f32.mrb[0].mxu0
        %v1034 = vpop.f32.mrb[0].mxu0
        %v1035 = vadd.f32 0.0, %v1034
        %v1036 = vpop.f32.mrb[0].mxu0
        %1037 = vmatprep.mubr.bf16.mxu0 0
        %1038 = vmatmul.mubr.bf16.gmra.mrb[0].mxu0 %v935
        %v1039 = vpop.f32.mrb[0].mxu0
        %v1040 = vadd.f32 0.0, %v1039
        %v1041 = vpop.f32.mrb[0].mxu0
        %v1042 = vpop.f32.mrb[0].mxu0
        %v1043 = vadd.f32 0.0, %v1042
        %v1044 = vpop.f32.mrb[0].mxu0
        %1045 = vmatprep.mubr.bf16.mxu0 0
        %1046 = vmatmul.mubr.bf16.gmra.mrb[0].mxu0 %v936
        %v1047 = vpop.f32.mrb[0].mxu0
        %v1048 = vadd.f32 0.0, %v1047
        %v1049 = vpop.f32.mrb[0].mxu0
        %v1050 = vpop.f32.mrb[0].mxu0
        %v1051 = vadd.f32 0.0, %v1050
        %v1052 = vpop.f32.mrb[0].mxu0
        %1053 = vdwg.mxu0
        %v1054 = vadd.f32 %v883, %v1024
        %v1055 = vadd.f32 %v884, %v1027
        %v1056 = vadd.f32 %v885, %v1032
        %v1057 = vadd.f32 %v886, %v1035
        %v1058 = vadd.f32 %v887, %v1040
        %v1059 = vadd.f32 %v888, %v1043
        %v1060 = vadd.f32 %v889, %v1048
        %v1061 = vadd.f32 %v890, %v1051
        %s1062 = scalar_lea.vmem %s244, 216 [#allocation2]
        %v1063 = vld [vmem:[%s1062] sm:$0xf]
        %v1064 = vld [vmem:[%s1062 + $0x8] sm:$0xf]
        %v1065 = vld [vmem:[%s1062 + $0x10] sm:$0xf]
        %v1066 = vld [vmem:[%s1062 + $0x18] sm:$0xf]
        %v1067 = vld [vmem:[%s1062 + $0x20] sm:$0xf]
        %v1068 = vld [vmem:[%s1062 + $0x28] sm:$0xf]
        %v1069 = vld [vmem:[%s1062 + $0x30] sm:$0xf]
        %v1070 = vld [vmem:[%s1062 + $0x38] sm:$0xf]
        %s1071 = scalar_lea.vmem [#allocation5], 256
        %v1072 = vld [vmem:[%s1071] sm:$0xf]
        %v1073 = vld [vmem:[%s1071 + $0x4] sm:$0xf]
        %v1074 = vld [vmem:[%s1071 + $0x8] sm:$0xf]
        %v1075 = vld [vmem:[%s1071 + $0xc] sm:$0xf]
        %v1076 = vld [vmem:[%s1071 + $0x10] sm:$0xf]
        %v1077 = vld [vmem:[%s1071 + $0x14] sm:$0xf]
        %v1078 = vld [vmem:[%s1071 + $0x18] sm:$0xf]
        %v1079 = vld [vmem:[%s1071 + $0x1c] sm:$0xf]
        %v1080 = vld [vmem:[%s1071 + $0x20] sm:$0xf]
        %v1081 = vld [vmem:[%s1071 + $0x24] sm:$0xf]
        %v1082 = vld [vmem:[%s1071 + $0x28] sm:$0xf]
        %v1083 = vld [vmem:[%s1071 + $0x2c] sm:$0xf]
        %v1084 = vld [vmem:[%s1071 + $0x30] sm:$0xf]
        %v1085 = vld [vmem:[%s1071 + $0x34] sm:$0xf]
        %v1086 = vld [vmem:[%s1071 + $0x38] sm:$0xf]
        %v1087 = vld [vmem:[%s1071 + $0x3c] sm:$0xf]
        %v1096 = vunpack.c.l.b16 %v1063
        %v1097 = vunpack.c.l.b16 %v1064
        %v1098 = vunpack.c.l.b16 %v1065
        %v1099 = vunpack.c.l.b16 %v1066
        %v1100 = vunpack.c.l.b16 %v1067
        %v1101 = vunpack.c.l.b16 %v1068
        %v1102 = vunpack.c.l.b16 %v1069
        %v1103 = vunpack.c.l.b16 %v1070
        %v1104 = vpack.c.b16 %v1097, %v1096
        %v1105 = vpack.c.b16 %v1099, %v1098
        %v1106 = vpack.c.b16 %v1101, %v1100
        %v1107 = vpack.c.b16 %v1103, %v1102
        %v1128 = vunpack.c.l.b16 %v1072
        %v1129 = vunpack.c.l.b16 %v1073
        %v1130 = vunpack.c.l.b16 %v1074
        %v1131 = vunpack.c.l.b16 %v1075
        %v1132 = vunpack.c.l.b16 %v1076
        %v1133 = vunpack.c.l.b16 %v1077
        %v1134 = vunpack.c.l.b16 %v1078
        %v1135 = vunpack.c.l.b16 %v1079
        %v1136 = vunpack.c.l.b16 %v1080
        %v1137 = vunpack.c.l.b16 %v1081
        %v1138 = vunpack.c.l.b16 %v1082
        %v1139 = vunpack.c.l.b16 %v1083
        %v1140 = vunpack.c.l.b16 %v1084
        %v1141 = vunpack.c.l.b16 %v1085
        %v1142 = vunpack.c.l.b16 %v1086
        %v1143 = vunpack.c.l.b16 %v1087
        %v1144 = vpack.c.b16 %v1129, %v1128
        %v1145 = vpack.c.b16 %v1131, %v1130
        %v1146 = vpack.c.b16 %v1133, %v1132
        %v1147 = vpack.c.b16 %v1135, %v1134
        %v1148 = vpack.c.b16 %v1137, %v1136
        %v1149 = vpack.c.b16 %v1139, %v1138
        %v1150 = vpack.c.b16 %v1141, %v1140
        %v1151 = vpack.c.b16 %v1143, %v1142
        %1160 = vmatprep.subr.bf16.mxu0 0
        %1161 = vmatpush1.bf16.msra.mxu0 %v1144
        %1162 = vmatprep.subr.bf16.mxu0 0
        %1163 = vmatpush1.bf16.msra.mxu0 %v1145
        %1164 = vmatprep.subr.bf16.mxu0 0
        %1165 = vmatpush1.bf16.msra.mxu0 %v1146
        %1166 = vmatprep.subr.bf16.mxu0 0
        %1167 = vmatpush1.bf16.msra.mxu0 %v1147
        %1168 = vmatprep.subr.bf16.mxu0 0
        %1169 = vmatpush1.bf16.msra.mxu0 %v1148
        %1170 = vmatprep.subr.bf16.mxu0 0
        %1171 = vmatpush1.bf16.msra.mxu0 %v1149
        %1172 = vmatprep.subr.bf16.mxu0 0
        %1173 = vmatpush1.bf16.msra.mxu0 %v1150
        %1174 = vmatprep.subr.bf16.mxu0 0
        %1175 = vmatpush1.bf16.msra.mxu0 %v1151
        %1176 = vmatprep.subr.bf16.mxu0 0
        %1177 = vmatpush1.bf16.msra.mxu0 0
        %1178 = vmatprep.subr.bf16.mxu0 0
        %1179 = vmatpush1.bf16.msra.mxu0 0
        %1180 = vmatprep.subr.bf16.mxu0 0
        %1181 = vmatpush1.bf16.msra.mxu0 0
        %1182 = vmatprep.subr.bf16.mxu0 0
        %1183 = vmatpush1.bf16.msra.mxu0 0
        %1184 = vmatprep.subr.bf16.mxu0 0
        %1185 = vmatpush1.bf16.msra.mxu0 0
        %1186 = vmatprep.subr.bf16.mxu0 0
        %1187 = vmatpush1.bf16.msra.mxu0 0
        %1188 = vmatprep.subr.bf16.mxu0 0
        %1189 = vmatpush1.bf16.msra.mxu0 0
        %1190 = vmatprep.subr.bf16.mxu0 0
        %1191 = vmatpush1.bf16.msra.mxu0 0
        %1192 = vmatprep.mubr.bf16.mxu0 0
        %1193 = vmatmul.mubr.bf16.gmra.mrb[0].mxu0 %v1104
        %v1194 = vpop.f32.mrb[0].mxu0
        %v1195 = vadd.f32 0.0, %v1194
        %v1196 = vpop.f32.mrb[0].mxu0
        %v1197 = vpop.f32.mrb[0].mxu0
        %v1198 = vadd.f32 0.0, %v1197
        %v1199 = vpop.f32.mrb[0].mxu0
        %1200 = vmatprep.mubr.bf16.mxu0 0
        %1201 = vmatmul.mubr.bf16.gmra.mrb[0].mxu0 %v1105
        %v1202 = vpop.f32.mrb[0].mxu0
        %v1203 = vadd.f32 0.0, %v1202
        %v1204 = vpop.f32.mrb[0].mxu0
        %v1205 = vpop.f32.mrb[0].mxu0
        %v1206 = vadd.f32 0.0, %v1205
        %v1207 = vpop.f32.mrb[0].mxu0
        %1208 = vmatprep.mubr.bf16.mxu0 0
        %1209 = vmatmul.mubr.bf16.gmra.mrb[0].mxu0 %v1106
        %v1210 = vpop.f32.mrb[0].mxu0
        %v1211 = vadd.f32 0.0, %v1210
        %v1212 = vpop.f32.mrb[0].mxu0
        %v1213 = vpop.f32.mrb[0].mxu0
        %v1214 = vadd.f32 0.0, %v1213
        %v1215 = vpop.f32.mrb[0].mxu0
        %1216 = vmatprep.mubr.bf16.mxu0 0
        %1217 = vmatmul.mubr.bf16.gmra.mrb[0].mxu0 %v1107
        %v1218 = vpop.f32.mrb[0].mxu0
        %v1219 = vadd.f32 0.0, %v1218
        %v1220 = vpop.f32.mrb[0].mxu0
        %v1221 = vpop.f32.mrb[0].mxu0
        %v1222 = vadd.f32 0.0, %v1221
        %v1223 = vpop.f32.mrb[0].mxu0
        %1224 = vdwg.mxu0
        %v1225 = vadd.f32 %v1054, %v1195
        %v1226 = vadd.f32 %v1055, %v1198
        %v1227 = vadd.f32 %v1056, %v1203
        %v1228 = vadd.f32 %v1057, %v1206
        %v1229 = vadd.f32 %v1058, %v1211
        %v1230 = vadd.f32 %v1059, %v1214
        %v1231 = vadd.f32 %v1060, %v1219
        %v1232 = vadd.f32 %v1061, %v1222
        %v1233 = vld [vmem:[%s891] sm:$0xf]
        %v1234 = vld [vmem:[%s891 + $0x4] sm:$0x1]
        %v1235 = vld [vmem:[%s891 + $0x8] sm:$0xf]
        %v1236 = vld [vmem:[%s891 + $0xc] sm:$0x1]
        %v1237 = vld [vmem:[%s891 + $0x10] sm:$0xf]
        %v1238 = vld [vmem:[%s891 + $0x14] sm:$0x1]
        %v1239 = vld [vmem:[%s891 + $0x18] sm:$0xf]
        %v1240 = vld [vmem:[%s891 + $0x1c] sm:$0x1]
        %v1241 = vld [vmem:[%s891 + $0x20] sm:$0xf]
        %v1242 = vld [vmem:[%s891 + $0x24] sm:$0x1]
        %v1243 = vld [vmem:[%s891 + $0x28] sm:$0xf]
        %v1244 = vld [vmem:[%s891 + $0x2c] sm:$0x1]
        %v1245 = vld [vmem:[%s891 + $0x30] sm:$0xf]
        %v1246 = vld [vmem:[%s891 + $0x34] sm:$0x1]
        %v1247 = vld [vmem:[%s891 + $0x38] sm:$0xf]
        %v1248 = vld [vmem:[%s891 + $0x3c] sm:$0x1]
        %v1250 = vshrl.u32 %v1233, 16
        %v1252 = vrot.slane %v1250, 4
        %v1253 = vshll.u32 %v1233, 16
        %v1255 = vrot.slane %v1253, 5
        %v1256 = vor.u32 %v1252, %v1255
        %v1257 = vrot.slane %v1256, 4
        %v1259 = vshll.u32 %v1234, 16
        %v1261 = vrot.slane %v1259, 5
        %v1262 = vsel %vm624, %v1257, %v1261
        %v1264 = vshrl.u32 %v1235, 16
        %v1266 = vrot.slane %v1264, 4
        %v1267 = vshll.u32 %v1235, 16
        %v1269 = vrot.slane %v1267, 5
        %v1270 = vor.u32 %v1266, %v1269
        %v1271 = vrot.slane %v1270, 4
        %v1273 = vshll.u32 %v1236, 16
        %v1275 = vrot.slane %v1273, 5
        %v1276 = vsel %vm624, %v1271, %v1275
        %v1278 = vshrl.u32 %v1237, 16
        %v1280 = vrot.slane %v1278, 4
        %v1281 = vshll.u32 %v1237, 16
        %v1283 = vrot.slane %v1281, 5
        %v1284 = vor.u32 %v1280, %v1283
        %v1285 = vrot.slane %v1284, 4
        %v1287 = vshll.u32 %v1238, 16
        %v1289 = vrot.slane %v1287, 5
        %v1290 = vsel %vm624, %v1285, %v1289
        %v1292 = vshrl.u32 %v1239, 16
        %v1294 = vrot.slane %v1292, 4
        %v1295 = vshll.u32 %v1239, 16
        %v1297 = vrot.slane %v1295, 5
        %v1298 = vor.u32 %v1294, %v1297
        %v1299 = vrot.slane %v1298, 4
        %v1301 = vshll.u32 %v1240, 16
        %v1303 = vrot.slane %v1301, 5
        %v1304 = vsel %vm624, %v1299, %v1303
        %v1306 = vshrl.u32 %v1241, 16
        %v1308 = vrot.slane %v1306, 4
        %v1309 = vshll.u32 %v1241, 16
        %v1311 = vrot.slane %v1309, 5
        %v1312 = vor.u32 %v1308, %v1311
        %v1313 = vrot.slane %v1312, 4
        %v1315 = vshll.u32 %v1242, 16
        %v1317 = vrot.slane %v1315, 5
        %v1318 = vsel %vm624, %v1313, %v1317
        %v1320 = vshrl.u32 %v1243, 16
        %v1322 = vrot.slane %v1320, 4
        %v1323 = vshll.u32 %v1243, 16
        %v1325 = vrot.slane %v1323, 5
        %v1326 = vor.u32 %v1322, %v1325
        %v1327 = vrot.slane %v1326, 4
        %v1329 = vshll.u32 %v1244, 16
        %v1331 = vrot.slane %v1329, 5
        %v1332 = vsel %vm624, %v1327, %v1331
        %v1334 = vshrl.u32 %v1245, 16
        %v1336 = vrot.slane %v1334, 4
        %v1337 = vshll.u32 %v1245, 16
        %v1339 = vrot.slane %v1337, 5
        %v1340 = vor.u32 %v1336, %v1339
        %v1341 = vrot.slane %v1340, 4
        %v1343 = vshll.u32 %v1246, 16
        %v1345 = vrot.slane %v1343, 5
        %v1346 = vsel %vm624, %v1341, %v1345
        %v1348 = vshrl.u32 %v1247, 16
        %v1350 = vrot.slane %v1348, 4
        %v1351 = vshll.u32 %v1247, 16
        %v1353 = vrot.slane %v1351, 5
        %v1354 = vor.u32 %v1350, %v1353
        %v1355 = vrot.slane %v1354, 4
        %v1357 = vshll.u32 %v1248, 16
        %v1359 = vrot.slane %v1357, 5
        %v1360 = vsel %vm624, %v1355, %v1359
        %s1361 = scalar_lea.vmem [#allocation5], 320
        %v1362 = vld [vmem:[%s1361] sm:$0xf]
        %v1363 = vld [vmem:[%s1361 + $0x4] sm:$0xf]
        %v1364 = vld [vmem:[%s1361 + $0x8] sm:$0xf]
        %v1365 = vld [vmem:[%s1361 + $0xc] sm:$0xf]
        %v1366 = vld [vmem:[%s1361 + $0x10] sm:$0xf]
        %v1367 = vld [vmem:[%s1361 + $0x14] sm:$0xf]
        %v1368 = vld [vmem:[%s1361 + $0x18] sm:$0xf]
        %v1369 = vld [vmem:[%s1361 + $0x1c] sm:$0xf]
        %v1370 = vld [vmem:[%s1361 + $0x20] sm:$0xf]
        %v1371 = vld [vmem:[%s1361 + $0x24] sm:$0xf]
        %v1372 = vld [vmem:[%s1361 + $0x28] sm:$0xf]
        %v1373 = vld [vmem:[%s1361 + $0x2c] sm:$0xf]
        %v1374 = vld [vmem:[%s1361 + $0x30] sm:$0xf]
        %v1375 = vld [vmem:[%s1361 + $0x34] sm:$0xf]
        %v1376 = vld [vmem:[%s1361 + $0x38] sm:$0xf]
        %v1377 = vld [vmem:[%s1361 + $0x3c] sm:$0xf]
        %v1378 = vunpack.c.l.b16 %v1262
        %v1379 = vunpack.c.l.b16 %v1276
        %v1380 = vunpack.c.l.b16 %v1290
        %v1381 = vunpack.c.l.b16 %v1304
        %v1382 = vunpack.c.l.b16 %v1318
        %v1383 = vunpack.c.l.b16 %v1332
        %v1384 = vunpack.c.l.b16 %v1346
        %v1385 = vunpack.c.l.b16 %v1360
        %v1386 = vpack.c.b16 %v1379, %v1378
        %v1387 = vpack.c.b16 %v1381, %v1380
        %v1388 = vpack.c.b16 %v1383, %v1382
        %v1389 = vpack.c.b16 %v1385, %v1384
        %v1410 = vunpack.c.l.b16 %v1362
        %v1411 = vunpack.c.l.b16 %v1363
        %v1412 = vunpack.c.l.b16 %v1364
        %v1413 = vunpack.c.l.b16 %v1365
        %v1414 = vunpack.c.l.b16 %v1366
        %v1415 = vunpack.c.l.b16 %v1367
        %v1416 = vunpack.c.l.b16 %v1368
        %v1417 = vunpack.c.l.b16 %v1369
        %v1418 = vunpack.c.l.b16 %v1370
        %v1419 = vunpack.c.l.b16 %v1371
        %v1420 = vunpack.c.l.b16 %v1372
        %v1421 = vunpack.c.l.b16 %v1373
        %v1422 = vunpack.c.l.b16 %v1374
        %v1423 = vunpack.c.l.b16 %v1375
        %v1424 = vunpack.c.l.b16 %v1376
        %v1425 = vunpack.c.l.b16 %v1377
        %v1426 = vpack.c.b16 %v1411, %v1410
        %v1427 = vpack.c.b16 %v1413, %v1412
        %v1428 = vpack.c.b16 %v1415, %v1414
        %v1429 = vpack.c.b16 %v1417, %v1416
        %v1430 = vpack.c.b16 %v1419, %v1418
        %v1431 = vpack.c.b16 %v1421, %v1420
        %v1432 = vpack.c.b16 %v1423, %v1422
        %v1433 = vpack.c.b16 %v1425, %v1424
        %1442 = vmatprep.subr.bf16.mxu0 0
        %1443 = vmatpush1.bf16.msra.mxu0 %v1426
        %1444 = vmatprep.subr.bf16.mxu0 0
        %1445 = vmatpush1.bf16.msra.mxu0 %v1427
        %1446 = vmatprep.subr.bf16.mxu0 0
        %1447 = vmatpush1.bf16.msra.mxu0 %v1428
        %1448 = vmatprep.subr.bf16.mxu0 0
        %1449 = vmatpush1.bf16.msra.mxu0 %v1429
        %1450 = vmatprep.subr.bf16.mxu0 0
        %1451 = vmatpush1.bf16.msra.mxu0 %v1430
        %1452 = vmatprep.subr.bf16.mxu0 0
        %1453 = vmatpush1.bf16.msra.mxu0 %v1431
        %1454 = vmatprep.subr.bf16.mxu0 0
        %1455 = vmatpush1.bf16.msra.mxu0 %v1432
        %1456 = vmatprep.subr.bf16.mxu0 0
        %1457 = vmatpush1.bf16.msra.mxu0 %v1433
        %1458 = vmatprep.subr.bf16.mxu0 0
        %1459 = vmatpush1.bf16.msra.mxu0 0
        %1460 = vmatprep.subr.bf16.mxu0 0
        %1461 = vmatpush1.bf16.msra.mxu0 0
        %1462 = vmatprep.subr.bf16.mxu0 0
        %1463 = vmatpush1.bf16.msra.mxu0 0
        %1464 = vmatprep.subr.bf16.mxu0 0
        %1465 = vmatpush1.bf16.msra.mxu0 0
        %1466 = vmatprep.subr.bf16.mxu0 0
        %1467 = vmatpush1.bf16.msra.mxu0 0
        %1468 = vmatprep.subr.bf16.mxu0 0
        %1469 = vmatpush1.bf16.msra.mxu0 0
        %1470 = vmatprep.subr.bf16.mxu0 0
        %1471 = vmatpush1.bf16.msra.mxu0 0
        %1472 = vmatprep.subr.bf16.mxu0 0
        %1473 = vmatpush1.bf16.msra.mxu0 0
        %1474 = vmatprep.mubr.bf16.mxu0 0
        %1475 = vmatmul.mubr.bf16.gmra.mrb[0].mxu0 %v1386
        %v1476 = vpop.f32.mrb[0].mxu0
        %v1477 = vadd.f32 0.0, %v1476
        %v1478 = vpop.f32.mrb[0].mxu0
        %v1479 = vpop.f32.mrb[0].mxu0
        %v1480 = vadd.f32 0.0, %v1479
        %v1481 = vpop.f32.mrb[0].mxu0
        %1482 = vmatprep.mubr.bf16.mxu0 0
        %1483 = vmatmul.mubr.bf16.gmra.mrb[0].mxu0 %v1387
        %v1484 = vpop.f32.mrb[0].mxu0
        %v1485 = vadd.f32 0.0, %v1484
        %v1486 = vpop.f32.mrb[0].mxu0
        %v1487 = vpop.f32.mrb[0].mxu0
        %v1488 = vadd.f32 0.0, %v1487
        %v1489 = vpop.f32.mrb[0].mxu0
        %1490 = vmatprep.mubr.bf16.mxu0 0
        %1491 = vmatmul.mubr.bf16.gmra.mrb[0].mxu0 %v1388
        %v1492 = vpop.f32.mrb[0].mxu0
        %v1493 = vadd.f32 0.0, %v1492
        %v1494 = vpop.f32.mrb[0].mxu0
        %v1495 = vpop.f32.mrb[0].mxu0
        %v1496 = vadd.f32 0.0, %v1495
        %v1497 = vpop.f32.mrb[0].mxu0
        %1498 = vmatprep.mubr.bf16.mxu0 0
        %1499 = vmatmul.mubr.bf16.gmra.mrb[0].mxu0 %v1389
        %v1500 = vpop.f32.mrb[0].mxu0
        %v1501 = vadd.f32 0.0, %v1500
        %v1502 = vpop.f32.mrb[0].mxu0
        %v1503 = vpop.f32.mrb[0].mxu0
        %v1504 = vadd.f32 0.0, %v1503
        %v1505 = vpop.f32.mrb[0].mxu0
        %1506 = vdwg.mxu0
        %v1507 = vadd.f32 %v1225, %v1477
        %v1508 = vadd.f32 %v1226, %v1480
        %v1509 = vadd.f32 %v1227, %v1485
        %v1510 = vadd.f32 %v1228, %v1488
        %v1511 = vadd.f32 %v1229, %v1493
        %v1512 = vadd.f32 %v1230, %v1496
        %v1513 = vadd.f32 %v1231, %v1501
        %v1514 = vadd.f32 %v1232, %v1504
        %s1515 = scalar_lea.vmem %s244, 8 [#allocation2]
        %v1516 = vld [vmem:[%s1515] sm:$0xf]
        %v1517 = vld [vmem:[%s1515 + $0x8] sm:$0xf]
        %v1518 = vld [vmem:[%s1515 + $0x10] sm:$0xf]
        %v1519 = vld [vmem:[%s1515 + $0x18] sm:$0xf]
        %v1520 = vld [vmem:[%s1515 + $0x20] sm:$0xf]
        %v1521 = vld [vmem:[%s1515 + $0x28] sm:$0xf]
        %v1522 = vld [vmem:[%s1515 + $0x30] sm:$0xf]
        %v1523 = vld [vmem:[%s1515 + $0x38] sm:$0xf]
        %s1524 = scalar_lea.vmem [#allocation5], 384
        %v1525 = vld [vmem:[%s1524] sm:$0xf]
        %v1526 = vld [vmem:[%s1524 + $0x4] sm:$0xf]
        %v1527 = vld [vmem:[%s1524 + $0x8] sm:$0xf]
        %v1528 = vld [vmem:[%s1524 + $0xc] sm:$0xf]
        %v1529 = vld [vmem:[%s1524 + $0x10] sm:$0xf]
        %v1530 = vld [vmem:[%s1524 + $0x14] sm:$0xf]
        %v1531 = vld [vmem:[%s1524 + $0x18] sm:$0xf]
        %v1532 = vld [vmem:[%s1524 + $0x1c] sm:$0xf]
        %v1533 = vld [vmem:[%s1524 + $0x20] sm:$0xf]
        %v1534 = vld [vmem:[%s1524 + $0x24] sm:$0xf]
        %v1535 = vld [vmem:[%s1524 + $0x28] sm:$0xf]
        %v1536 = vld [vmem:[%s1524 + $0x2c] sm:$0xf]
        %v1537 = vld [vmem:[%s1524 + $0x30] sm:$0xf]
        %v1538 = vld [vmem:[%s1524 + $0x34] sm:$0xf]
        %v1539 = vld [vmem:[%s1524 + $0x38] sm:$0xf]
        %v1540 = vld [vmem:[%s1524 + $0x3c] sm:$0xf]
        %v1549 = vunpack.c.l.b16 %v1516
        %v1550 = vunpack.c.l.b16 %v1517
        %v1551 = vunpack.c.l.b16 %v1518
        %v1552 = vunpack.c.l.b16 %v1519
        %v1553 = vunpack.c.l.b16 %v1520
        %v1554 = vunpack.c.l.b16 %v1521
        %v1555 = vunpack.c.l.b16 %v1522
        %v1556 = vunpack.c.l.b16 %v1523
        %v1557 = vpack.c.b16 %v1550, %v1549
        %v1558 = vpack.c.b16 %v1552, %v1551
        %v1559 = vpack.c.b16 %v1554, %v1553
        %v1560 = vpack.c.b16 %v1556, %v1555
        %v1581 = vunpack.c.l.b16 %v1525
        %v1582 = vunpack.c.l.b16 %v1526
        %v1583 = vunpack.c.l.b16 %v1527
        %v1584 = vunpack.c.l.b16 %v1528
        %v1585 = vunpack.c.l.b16 %v1529
        %v1586 = vunpack.c.l.b16 %v1530
        %v1587 = vunpack.c.l.b16 %v1531
        %v1588 = vunpack.c.l.b16 %v1532
        %v1589 = vunpack.c.l.b16 %v1533
        %v1590 = vunpack.c.l.b16 %v1534
        %v1591 = vunpack.c.l.b16 %v1535
        %v1592 = vunpack.c.l.b16 %v1536
        %v1593 = vunpack.c.l.b16 %v1537
        %v1594 = vunpack.c.l.b16 %v1538
        %v1595 = vunpack.c.l.b16 %v1539
        %v1596 = vunpack.c.l.b16 %v1540
        %v1597 = vpack.c.b16 %v1582, %v1581
        %v1598 = vpack.c.b16 %v1584, %v1583
        %v1599 = vpack.c.b16 %v1586, %v1585
        %v1600 = vpack.c.b16 %v1588, %v1587
        %v1601 = vpack.c.b16 %v1590, %v1589
        %v1602 = vpack.c.b16 %v1592, %v1591
        %v1603 = vpack.c.b16 %v1594, %v1593
        %v1604 = vpack.c.b16 %v1596, %v1595
        %1613 = vmatprep.subr.bf16.mxu0 0
        %1614 = vmatpush1.bf16.msra.mxu0 %v1597
        %1615 = vmatprep.subr.bf16.mxu0 0
        %1616 = vmatpush1.bf16.msra.mxu0 %v1598
        %1617 = vmatprep.subr.bf16.mxu0 0
        %1618 = vmatpush1.bf16.msra.mxu0 %v1599
        %1619 = vmatprep.subr.bf16.mxu0 0
        %1620 = vmatpush1.bf16.msra.mxu0 %v1600
        %1621 = vmatprep.subr.bf16.mxu0 0
        %1622 = vmatpush1.bf16.msra.mxu0 %v1601
        %1623 = vmatprep.subr.bf16.mxu0 0
        %1624 = vmatpush1.bf16.msra.mxu0 %v1602
        %1625 = vmatprep.subr.bf16.mxu0 0
        %1626 = vmatpush1.bf16.msra.mxu0 %v1603
        %1627 = vmatprep.subr.bf16.mxu0 0
        %1628 = vmatpush1.bf16.msra.mxu0 %v1604
        %1629 = vmatprep.subr.bf16.mxu0 0
        %1630 = vmatpush1.bf16.msra.mxu0 0
        %1631 = vmatprep.subr.bf16.mxu0 0
        %1632 = vmatpush1.bf16.msra.mxu0 0
        %1633 = vmatprep.subr.bf16.mxu0 0
        %1634 = vmatpush1.bf16.msra.mxu0 0
        %1635 = vmatprep.subr.bf16.mxu0 0
        %1636 = vmatpush1.bf16.msra.mxu0 0
        %1637 = vmatprep.subr.bf16.mxu0 0
        %1638 = vmatpush1.bf16.msra.mxu0 0
        %1639 = vmatprep.subr.bf16.mxu0 0
        %1640 = vmatpush1.bf16.msra.mxu0 0
        %1641 = vmatprep.subr.bf16.mxu0 0
        %1642 = vmatpush1.bf16.msra.mxu0 0
        %1643 = vmatprep.subr.bf16.mxu0 0
        %1644 = vmatpush1.bf16.msra.mxu0 0
        %1645 = vmatprep.mubr.bf16.mxu0 0
        %1646 = vmatmul.mubr.bf16.gmra.mrb[0].mxu0 %v1557
        %v1647 = vpop.f32.mrb[0].mxu0
        %v1648 = vadd.f32 0.0, %v1647
        %v1649 = vpop.f32.mrb[0].mxu0
        %v1650 = vpop.f32.mrb[0].mxu0
        %v1651 = vadd.f32 0.0, %v1650
        %v1652 = vpop.f32.mrb[0].mxu0
        %1653 = vmatprep.mubr.bf16.mxu0 0
        %1654 = vmatmul.mubr.bf16.gmra.mrb[0].mxu0 %v1558
        %v1655 = vpop.f32.mrb[0].mxu0
        %v1656 = vadd.f32 0.0, %v1655
        %v1657 = vpop.f32.mrb[0].mxu0
        %v1658 = vpop.f32.mrb[0].mxu0
        %v1659 = vadd.f32 0.0, %v1658
        %v1660 = vpop.f32.mrb[0].mxu0
        %1661 = vmatprep.mubr.bf16.mxu0 0
        %1662 = vmatmul.mubr.bf16.gmra.mrb[0].mxu0 %v1559
        %v1663 = vpop.f32.mrb[0].mxu0
        %v1664 = vadd.f32 0.0, %v1663
        %v1665 = vpop.f32.mrb[0].mxu0
        %v1666 = vpop.f32.mrb[0].mxu0
        %v1667 = vadd.f32 0.0, %v1666
        %v1668 = vpop.f32.mrb[0].mxu0
        %1669 = vmatprep.mubr.bf16.mxu0 0
        %1670 = vmatmul.mubr.bf16.gmra.mrb[0].mxu0 %v1560
        %v1671 = vpop.f32.mrb[0].mxu0
        %v1672 = vadd.f32 0.0, %v1671
        %v1673 = vpop.f32.mrb[0].mxu0
        %v1674 = vpop.f32.mrb[0].mxu0
        %v1675 = vadd.f32 0.0, %v1674
        %v1676 = vpop.f32.mrb[0].mxu0
        %1677 = vdwg.mxu0
        %v1678 = vadd.f32 %v1507, %v1648
        %v1679 = vadd.f32 %v1508, %v1651
        %v1680 = vadd.f32 %v1509, %v1656
        %v1681 = vadd.f32 %v1510, %v1659
        %v1682 = vadd.f32 %v1511, %v1664
        %v1683 = vadd.f32 %v1512, %v1667
        %v1684 = vadd.f32 %v1513, %v1672
        %v1685 = vadd.f32 %v1514, %v1675
        %s1686 = scalar_lea.vmem %s244, 80 [#allocation2]
        %v1687 = vld [vmem:[%s1686] sm:$0xf]
        %v1688 = vld [vmem:[%s1686 + $0x8] sm:$0xf]
        %v1689 = vld [vmem:[%s1686 + $0x10] sm:$0xf]
        %v1690 = vld [vmem:[%s1686 + $0x18] sm:$0xf]
        %v1691 = vld [vmem:[%s1686 + $0x20] sm:$0xf]
        %v1692 = vld [vmem:[%s1686 + $0x28] sm:$0xf]
        %v1693 = vld [vmem:[%s1686 + $0x30] sm:$0xf]
        %v1694 = vld [vmem:[%s1686 + $0x38] sm:$0xf]
        %s1695 = scalar_lea.vmem [#allocation5], 448
        %v1696 = vld [vmem:[%s1695] sm:$0xf]
        %v1697 = vld [vmem:[%s1695 + $0x4] sm:$0xf]
        %v1698 = vld [vmem:[%s1695 + $0x8] sm:$0xf]
        %v1699 = vld [vmem:[%s1695 + $0xc] sm:$0xf]
        %v1700 = vld [vmem:[%s1695 + $0x10] sm:$0xf]
        %v1701 = vld [vmem:[%s1695 + $0x14] sm:$0xf]
        %v1702 = vld [vmem:[%s1695 + $0x18] sm:$0xf]
        %v1703 = vld [vmem:[%s1695 + $0x1c] sm:$0xf]
        %v1704 = vld [vmem:[%s1695 + $0x20] sm:$0xf]
        %v1705 = vld [vmem:[%s1695 + $0x24] sm:$0xf]
        %v1706 = vld [vmem:[%s1695 + $0x28] sm:$0xf]
        %v1707 = vld [vmem:[%s1695 + $0x2c] sm:$0xf]
        %v1708 = vld [vmem:[%s1695 + $0x30] sm:$0xf]
        %v1709 = vld [vmem:[%s1695 + $0x34] sm:$0xf]
        %v1710 = vld [vmem:[%s1695 + $0x38] sm:$0xf]
        %v1711 = vld [vmem:[%s1695 + $0x3c] sm:$0xf]
        %v1720 = vunpack.c.l.b16 %v1687
        %v1721 = vunpack.c.l.b16 %v1688
        %v1722 = vunpack.c.l.b16 %v1689
        %v1723 = vunpack.c.l.b16 %v1690
        %v1724 = vunpack.c.l.b16 %v1691
        %v1725 = vunpack.c.l.b16 %v1692
        %v1726 = vunpack.c.l.b16 %v1693
        %v1727 = vunpack.c.l.b16 %v1694
        %v1728 = vpack.c.b16 %v1721, %v1720
        %v1729 = vpack.c.b16 %v1723, %v1722
        %v1730 = vpack.c.b16 %v1725, %v1724
        %v1731 = vpack.c.b16 %v1727, %v1726
        %v1752 = vunpack.c.l.b16 %v1696
        %v1753 = vunpack.c.l.b16 %v1697
        %v1754 = vunpack.c.l.b16 %v1698
        %v1755 = vunpack.c.l.b16 %v1699
        %v1756 = vunpack.c.l.b16 %v1700
        %v1757 = vunpack.c.l.b16 %v1701
        %v1758 = vunpack.c.l.b16 %v1702
        %v1759 = vunpack.c.l.b16 %v1703
        %v1760 = vunpack.c.l.b16 %v1704
        %v1761 = vunpack.c.l.b16 %v1705
        %v1762 = vunpack.c.l.b16 %v1706
        %v1763 = vunpack.c.l.b16 %v1707
        %v1764 = vunpack.c.l.b16 %v1708
        %v1765 = vunpack.c.l.b16 %v1709
        %v1766 = vunpack.c.l.b16 %v1710
        %v1767 = vunpack.c.l.b16 %v1711
        %v1768 = vpack.c.b16 %v1753, %v1752
        %v1769 = vpack.c.b16 %v1755, %v1754
        %v1770 = vpack.c.b16 %v1757, %v1756
        %v1771 = vpack.c.b16 %v1759, %v1758
        %v1772 = vpack.c.b16 %v1761, %v1760
        %v1773 = vpack.c.b16 %v1763, %v1762
        %v1774 = vpack.c.b16 %v1765, %v1764
        %v1775 = vpack.c.b16 %v1767, %v1766
        %1784 = vmatprep.subr.bf16.mxu0 0
        %1785 = vmatpush1.bf16.msra.mxu0 %v1768
        %1786 = vmatprep.subr.bf16.mxu0 0
        %1787 = vmatpush1.bf16.msra.mxu0 %v1769
        %1788 = vmatprep.subr.bf16.mxu0 0
        %1789 = vmatpush1.bf16.msra.mxu0 %v1770
        %1790 = vmatprep.subr.bf16.mxu0 0
        %1791 = vmatpush1.bf16.msra.mxu0 %v1771
        %1792 = vmatprep.subr.bf16.mxu0 0
        %1793 = vmatpush1.bf16.msra.mxu0 %v1772
        %1794 = vmatprep.subr.bf16.mxu0 0
        %1795 = vmatpush1.bf16.msra.mxu0 %v1773
        %1796 = vmatprep.subr.bf16.mxu0 0
        %1797 = vmatpush1.bf16.msra.mxu0 %v1774
        %1798 = vmatprep.subr.bf16.mxu0 0
        %1799 = vmatpush1.bf16.msra.mxu0 %v1775
        %1800 = vmatprep.subr.bf16.mxu0 0
        %1801 = vmatpush1.bf16.msra.mxu0 0
        %1802 = vmatprep.subr.bf16.mxu0 0
        %1803 = vmatpush1.bf16.msra.mxu0 0
        %1804 = vmatprep.subr.bf16.mxu0 0
        %1805 = vmatpush1.bf16.msra.mxu0 0
        %1806 = vmatprep.subr.bf16.mxu0 0
        %1807 = vmatpush1.bf16.msra.mxu0 0
        %1808 = vmatprep.subr.bf16.mxu0 0
        %1809 = vmatpush1.bf16.msra.mxu0 0
        %1810 = vmatprep.subr.bf16.mxu0 0
        %1811 = vmatpush1.bf16.msra.mxu0 0
        %1812 = vmatprep.subr.bf16.mxu0 0
        %1813 = vmatpush1.bf16.msra.mxu0 0
        %1814 = vmatprep.subr.bf16.mxu0 0
        %1815 = vmatpush1.bf16.msra.mxu0 0
        %1816 = vmatprep.mubr.bf16.mxu0 0
        %1817 = vmatmul.mubr.bf16.gmra.mrb[0].mxu0 %v1728
        %v1818 = vpop.f32.mrb[0].mxu0
        %v1819 = vadd.f32 0.0, %v1818
        %v1820 = vpop.f32.mrb[0].mxu0
        %v1821 = vpop.f32.mrb[0].mxu0
        %v1822 = vadd.f32 0.0, %v1821
        %v1823 = vpop.f32.mrb[0].mxu0
        %1824 = vmatprep.mubr.bf16.mxu0 0
        %1825 = vmatmul.mubr.bf16.gmra.mrb[0].mxu0 %v1729
        %v1826 = vpop.f32.mrb[0].mxu0
        %v1827 = vadd.f32 0.0, %v1826
        %v1828 = vpop.f32.mrb[0].mxu0
        %v1829 = vpop.f32.mrb[0].mxu0
        %v1830 = vadd.f32 0.0, %v1829
        %v1831 = vpop.f32.mrb[0].mxu0
        %1832 = vmatprep.mubr.bf16.mxu0 0
        %1833 = vmatmul.mubr.bf16.gmra.mrb[0].mxu0 %v1730
        %v1834 = vpop.f32.mrb[0].mxu0
        %v1835 = vadd.f32 0.0, %v1834
        %v1836 = vpop.f32.mrb[0].mxu0
        %v1837 = vpop.f32.mrb[0].mxu0
        %v1838 = vadd.f32 0.0, %v1837
        %v1839 = vpop.f32.mrb[0].mxu0
        %1840 = vmatprep.mubr.bf16.mxu0 0
        %1841 = vmatmul.mubr.bf16.gmra.mrb[0].mxu0 %v1731
        %v1842 = vpop.f32.mrb[0].mxu0
        %v1843 = vadd.f32 0.0, %v1842
        %v1844 = vpop.f32.mrb[0].mxu0
        %v1845 = vpop.f32.mrb[0].mxu0
        %v1846 = vadd.f32 0.0, %v1845
        %v1847 = vpop.f32.mrb[0].mxu0
        %1848 = vdwg.mxu0
        %v1849 = vadd.f32 %v1678, %v1819
        %v1850 = vadd.f32 %v1679, %v1822
        %v1851 = vadd.f32 %v1680, %v1827
        %v1852 = vadd.f32 %v1681, %v1830
        %v1853 = vadd.f32 %v1682, %v1835
        %v1854 = vadd.f32 %v1683, %v1838
        %v1855 = vadd.f32 %v1684, %v1843
        %v1856 = vadd.f32 %v1685, %v1846
        %v1857 = vld [vmem:[%s1515] sm:$0xf]
        %v1858 = vld [vmem:[%s1515 + $0x4] sm:$0x1]
        %v1859 = vld [vmem:[%s1515 + $0x8] sm:$0xf]
        %v1860 = vld [vmem:[%s1515 + $0xc] sm:$0x1]
        %v1861 = vld [vmem:[%s1515 + $0x10] sm:$0xf]
        %v1862 = vld [vmem:[%s1515 + $0x14] sm:$0x1]
        %v1863 = vld [vmem:[%s1515 + $0x18] sm:$0xf]
        %v1864 = vld [vmem:[%s1515 + $0x1c] sm:$0x1]
        %v1865 = vld [vmem:[%s1515 + $0x20] sm:$0xf]
        %v1866 = vld [vmem:[%s1515 + $0x24] sm:$0x1]
        %v1867 = vld [vmem:[%s1515 + $0x28] sm:$0xf]
        %v1868 = vld [vmem:[%s1515 + $0x2c] sm:$0x1]
        %v1869 = vld [vmem:[%s1515 + $0x30] sm:$0xf]
        %v1870 = vld [vmem:[%s1515 + $0x34] sm:$0x1]
        %v1871 = vld [vmem:[%s1515 + $0x38] sm:$0xf]
        %v1872 = vld [vmem:[%s1515 + $0x3c] sm:$0x1]
        %v1874 = vshrl.u32 %v1857, 16
        %v1876 = vrot.slane %v1874, 4
        %v1877 = vshll.u32 %v1857, 16
        %v1879 = vrot.slane %v1877, 5
        %v1880 = vor.u32 %v1876, %v1879
        %v1881 = vrot.slane %v1880, 4
        %v1883 = vshll.u32 %v1858, 16
        %v1885 = vrot.slane %v1883, 5
        %v1886 = vsel %vm624, %v1881, %v1885
        %v1888 = vshrl.u32 %v1859, 16
        %v1890 = vrot.slane %v1888, 4
        %v1891 = vshll.u32 %v1859, 16
        %v1893 = vrot.slane %v1891, 5
        %v1894 = vor.u32 %v1890, %v1893
        %v1895 = vrot.slane %v1894, 4
        %v1897 = vshll.u32 %v1860, 16
        %v1899 = vrot.slane %v1897, 5
        %v1900 = vsel %vm624, %v1895, %v1899
        %v1902 = vshrl.u32 %v1861, 16
        %v1904 = vrot.slane %v1902, 4
        %v1905 = vshll.u32 %v1861, 16
        %v1907 = vrot.slane %v1905, 5
        %v1908 = vor.u32 %v1904, %v1907
        %v1909 = vrot.slane %v1908, 4
        %v1911 = vshll.u32 %v1862, 16
        %v1913 = vrot.slane %v1911, 5
        %v1914 = vsel %vm624, %v1909, %v1913
        %v1916 = vshrl.u32 %v1863, 16
        %v1918 = vrot.slane %v1916, 4
        %v1919 = vshll.u32 %v1863, 16
        %v1921 = vrot.slane %v1919, 5
        %v1922 = vor.u32 %v1918, %v1921
        %v1923 = vrot.slane %v1922, 4
        %v1925 = vshll.u32 %v1864, 16
        %v1927 = vrot.slane %v1925, 5
        %v1928 = vsel %vm624, %v1923, %v1927
        %v1930 = vshrl.u32 %v1865, 16
        %v1932 = vrot.slane %v1930, 4
        %v1933 = vshll.u32 %v1865, 16
        %v1935 = vrot.slane %v1933, 5
        %v1936 = vor.u32 %v1932, %v1935
        %v1937 = vrot.slane %v1936, 4
        %v1939 = vshll.u32 %v1866, 16
        %v1941 = vrot.slane %v1939, 5
        %v1942 = vsel %vm624, %v1937, %v1941
        %v1944 = vshrl.u32 %v1867, 16
        %v1946 = vrot.slane %v1944, 4
        %v1947 = vshll.u32 %v1867, 16
        %v1949 = vrot.slane %v1947, 5
        %v1950 = vor.u32 %v1946, %v1949
        %v1951 = vrot.slane %v1950, 4
        %v1953 = vshll.u32 %v1868, 16
        %v1955 = vrot.slane %v1953, 5
        %v1956 = vsel %vm624, %v1951, %v1955
        %v1958 = vshrl.u32 %v1869, 16
        %v1960 = vrot.slane %v1958, 4
        %v1961 = vshll.u32 %v1869, 16
        %v1963 = vrot.slane %v1961, 5
        %v1964 = vor.u32 %v1960, %v1963
        %v1965 = vrot.slane %v1964, 4
        %v1967 = vshll.u32 %v1870, 16
        %v1969 = vrot.slane %v1967, 5
        %v1970 = vsel %vm624, %v1965, %v1969
        %v1972 = vshrl.u32 %v1871, 16
        %v1974 = vrot.slane %v1972, 4
        %v1975 = vshll.u32 %v1871, 16
        %v1977 = vrot.slane %v1975, 5
        %v1978 = vor.u32 %v1974, %v1977
        %v1979 = vrot.slane %v1978, 4
        %v1981 = vshll.u32 %v1872, 16
        %v1983 = vrot.slane %v1981, 5
        %v1984 = vsel %vm624, %v1979, %v1983
        %s1985 = scalar_lea.vmem [#allocation5], 512
        %v1986 = vld [vmem:[%s1985] sm:$0xf]
        %v1987 = vld [vmem:[%s1985 + $0x4] sm:$0xf]
        %v1988 = vld [vmem:[%s1985 + $0x8] sm:$0xf]
        %v1989 = vld [vmem:[%s1985 + $0xc] sm:$0xf]
        %v1990 = vld [vmem:[%s1985 + $0x10] sm:$0xf]
        %v1991 = vld [vmem:[%s1985 + $0x14] sm:$0xf]
        %v1992 = vld [vmem:[%s1985 + $0x18] sm:$0xf]
        %v1993 = vld [vmem:[%s1985 + $0x1c] sm:$0xf]
        %v1994 = vld [vmem:[%s1985 + $0x20] sm:$0xf]
        %v1995 = vld [vmem:[%s1985 + $0x24] sm:$0xf]
        %v1996 = vld [vmem:[%s1985 + $0x28] sm:$0xf]
        %v1997 = vld [vmem:[%s1985 + $0x2c] sm:$0xf]
        %v1998 = vld [vmem:[%s1985 + $0x30] sm:$0xf]
        %v1999 = vld [vmem:[%s1985 + $0x34] sm:$0xf]
        %v2000 = vld [vmem:[%s1985 + $0x38] sm:$0xf]
        %v2001 = vld [vmem:[%s1985 + $0x3c] sm:$0xf]
        %v2002 = vunpack.c.l.b16 %v1886
        %v2003 = vunpack.c.l.b16 %v1900
        %v2004 = vunpack.c.l.b16 %v1914
        %v2005 = vunpack.c.l.b16 %v1928
        %v2006 = vunpack.c.l.b16 %v1942
        %v2007 = vunpack.c.l.b16 %v1956
        %v2008 = vunpack.c.l.b16 %v1970
        %v2009 = vunpack.c.l.b16 %v1984
        %v2010 = vpack.c.b16 %v2003, %v2002
        %v2011 = vpack.c.b16 %v2005, %v2004
        %v2012 = vpack.c.b16 %v2007, %v2006
        %v2013 = vpack.c.b16 %v2009, %v2008
        %v2034 = vunpack.c.l.b16 %v1986
        %v2035 = vunpack.c.l.b16 %v1987
        %v2036 = vunpack.c.l.b16 %v1988
        %v2037 = vunpack.c.l.b16 %v1989
        %v2038 = vunpack.c.l.b16 %v1990
        %v2039 = vunpack.c.l.b16 %v1991
        %v2040 = vunpack.c.l.b16 %v1992
        %v2041 = vunpack.c.l.b16 %v1993
        %v2042 = vunpack.c.l.b16 %v1994
        %v2043 = vunpack.c.l.b16 %v1995
        %v2044 = vunpack.c.l.b16 %v1996
        %v2045 = vunpack.c.l.b16 %v1997
        %v2046 = vunpack.c.l.b16 %v1998
        %v2047 = vunpack.c.l.b16 %v1999
        %v2048 = vunpack.c.l.b16 %v2000
        %v2049 = vunpack.c.l.b16 %v2001
        %v2050 = vpack.c.b16 %v2035, %v2034
        %v2051 = vpack.c.b16 %v2037, %v2036
        %v2052 = vpack.c.b16 %v2039, %v2038
        %v2053 = vpack.c.b16 %v2041, %v2040
        %v2054 = vpack.c.b16 %v2043, %v2042
        %v2055 = vpack.c.b16 %v2045, %v2044
        %v2056 = vpack.c.b16 %v2047, %v2046
        %v2057 = vpack.c.b16 %v2049, %v2048
        %2066 = vmatprep.subr.bf16.mxu0 0
        %2067 = vmatpush1.bf16.msra.mxu0 %v2050
        %2068 = vmatprep.subr.bf16.mxu0 0
        %2069 = vmatpush1.bf16.msra.mxu0 %v2051
        %2070 = vmatprep.subr.bf16.mxu0 0
        %2071 = vmatpush1.bf16.msra.mxu0 %v2052
        %2072 = vmatprep.subr.bf16.mxu0 0
        %2073 = vmatpush1.bf16.msra.mxu0 %v2053
        %2074 = vmatprep.subr.bf16.mxu0 0
        %2075 = vmatpush1.bf16.msra.mxu0 %v2054
        %2076 = vmatprep.subr.bf16.mxu0 0
        %2077 = vmatpush1.bf16.msra.mxu0 %v2055
        %2078 = vmatprep.subr.bf16.mxu0 0
        %2079 = vmatpush1.bf16.msra.mxu0 %v2056
        %2080 = vmatprep.subr.bf16.mxu0 0
        %2081 = vmatpush1.bf16.msra.mxu0 %v2057
        %2082 = vmatprep.subr.bf16.mxu0 0
        %2083 = vmatpush1.bf16.msra.mxu0 0
        %2084 = vmatprep.subr.bf16.mxu0 0
        %2085 = vmatpush1.bf16.msra.mxu0 0
        %2086 = vmatprep.subr.bf16.mxu0 0
        %2087 = vmatpush1.bf16.msra.mxu0 0
        %2088 = vmatprep.subr.bf16.mxu0 0
        %2089 = vmatpush1.bf16.msra.mxu0 0
        %2090 = vmatprep.subr.bf16.mxu0 0
        %2091 = vmatpush1.bf16.msra.mxu0 0
        %2092 = vmatprep.subr.bf16.mxu0 0
        %2093 = vmatpush1.bf16.msra.mxu0 0
        %2094 = vmatprep.subr.bf16.mxu0 0
        %2095 = vmatpush1.bf16.msra.mxu0 0
        %2096 = vmatprep.subr.bf16.mxu0 0
        %2097 = vmatpush1.bf16.msra.mxu0 0
        %2098 = vmatprep.mubr.bf16.mxu0 0
        %2099 = vmatmul.mubr.bf16.gmra.mrb[0].mxu0 %v2010
        %v2100 = vpop.f32.mrb[0].mxu0
        %v2101 = vadd.f32 0.0, %v2100
        %v2102 = vpop.f32.mrb[0].mxu0
        %v2103 = vpop.f32.mrb[0].mxu0
        %v2104 = vadd.f32 0.0, %v2103
        %v2105 = vpop.f32.mrb[0].mxu0
        %2106 = vmatprep.mubr.bf16.mxu0 0
        %2107 = vmatmul.mubr.bf16.gmra.mrb[0].mxu0 %v2011
        %v2108 = vpop.f32.mrb[0].mxu0
        %v2109 = vadd.f32 0.0, %v2108
        %v2110 = vpop.f32.mrb[0].mxu0
        %v2111 = vpop.f32.mrb[0].mxu0
        %v2112 = vadd.f32 0.0, %v2111
        %v2113 = vpop.f32.mrb[0].mxu0
        %2114 = vmatprep.mubr.bf16.mxu0 0
        %2115 = vmatmul.mubr.bf16.gmra.mrb[0].mxu0 %v2012
        %v2116 = vpop.f32.mrb[0].mxu0
        %v2117 = vadd.f32 0.0, %v2116
        %v2118 = vpop.f32.mrb[0].mxu0
        %v2119 = vpop.f32.mrb[0].mxu0
        %v2120 = vadd.f32 0.0, %v2119
        %v2121 = vpop.f32.mrb[0].mxu0
        %2122 = vmatprep.mubr.bf16.mxu0 0
        %2123 = vmatmul.mubr.bf16.gmra.mrb[0].mxu0 %v2013
        %v2124 = vpop.f32.mrb[0].mxu0
        %v2125 = vadd.f32 0.0, %v2124
        %v2126 = vpop.f32.mrb[0].mxu0
        %v2127 = vpop.f32.mrb[0].mxu0
        %v2128 = vadd.f32 0.0, %v2127
        %v2129 = vpop.f32.mrb[0].mxu0
        %2130 = vdwg.mxu0
        %v2131 = vadd.f32 %v1849, %v2101
        %v2132 = vadd.f32 %v1850, %v2104
        %v2133 = vadd.f32 %v1851, %v2109
        %v2134 = vadd.f32 %v1852, %v2112
        %v2135 = vadd.f32 %v1853, %v2117
        %v2136 = vadd.f32 %v1854, %v2120
        %v2137 = vadd.f32 %v1855, %v2125
        %v2138 = vadd.f32 %v1856, %v2128
        %v2139 = vld [vmem:[#allocation7] sm:$0x1]
        %v2141 = vlaneseq
        %v2142 = vshrl.u32 %v2141, 7
        %v2143 = vsub.s32 0, %v2142
        %v2144 = vrot.slane %v2139, %v2143
        %v2146 = vmul.f32 %v2131, %v2144
        %v2147 = vmul.f32 %v2132, %v2144
        %v2148 = vmul.f32 %v2133, %v2144
        %v2149 = vmul.f32 %v2134, %v2144
        %v2150 = vmul.f32 %v2135, %v2144
        %v2151 = vmul.f32 %v2136, %v2144
        %v2152 = vmul.f32 %v2137, %v2144
        %v2153 = vmul.f32 %v2138, %v2144
        %v2154 = vld [vmem:[#allocation8] sm:$0x1]
        %v2156 = vlaneseq
        %v2157 = vshrl.u32 %v2156, 7
        %v2158 = vsub.s32 0, %v2157
        %v2159 = vrot.slane %v2154, %v2158
        %v2161 = vadd.f32 %v2146, %v2159
        %v2162 = vadd.f32 %v2147, %v2159
        %v2163 = vadd.f32 %v2148, %v2159
        %v2164 = vadd.f32 %v2149, %v2159
        %v2165 = vadd.f32 %v2150, %v2159
        %v2166 = vadd.f32 %v2151, %v2159
        %v2167 = vadd.f32 %v2152, %v2159
        %v2168 = vadd.f32 %v2153, %v2159
        %v2169 = vmax.f32 %v2161, 0.0
        %v2170 = vmax.f32 %v2162, 0.0
        %v2171 = vmax.f32 %v2163, 0.0
        %v2172 = vmax.f32 %v2164, 0.0
        %v2173 = vmax.f32 %v2165, 0.0
        %v2174 = vmax.f32 %v2166, 0.0
        %v2175 = vmax.f32 %v2167, 0.0
        %v2176 = vmax.f32 %v2168, 0.0
        %v2177 = vpack.c.bf16 %v2170, %v2169
        %v2178 = vpack.c.bf16 %v2172, %v2171
        %v2179 = vpack.c.bf16 %v2174, %v2173
        %v2180 = vpack.c.bf16 %v2176, %v2175
        %v2185 = vunpack.c.l.b16 %v2177
        %v2186 = vunpack.c.h.b16 %v2177
        %v2187 = vunpack.c.l.b16 %v2178
        %v2188 = vunpack.c.h.b16 %v2178
        %v2189 = vunpack.c.l.b16 %v2179
        %v2190 = vunpack.c.h.b16 %v2179
        %v2191 = vunpack.c.l.b16 %v2180
        %v2192 = vunpack.c.h.b16 %v2180
        %v2193 = vpack.c.b16 %v2185, %v2185
        %v2194 = vpack.c.b16 %v2186, %v2186
        %v2195 = vpack.c.b16 %v2187, %v2187
        %v2196 = vpack.c.b16 %v2188, %v2188
        %v2197 = vpack.c.b16 %v2189, %v2189
        %v2198 = vpack.c.b16 %v2190, %v2190
        %v2199 = vpack.c.b16 %v2191, %v2191
        %v2200 = vpack.c.b16 %v2192, %v2192
        %2209 = vst [vmem:[%s280] sm:$0xf] %v2193
        %2210 = vst [vmem:[%s280 + $0x4] sm:$0xf] %v2194
        %2211 = vst [vmem:[%s280 + $0x8] sm:$0xf] %v2195
        %2212 = vst [vmem:[%s280 + $0xc] sm:$0xf] %v2196
        %2213 = vst [vmem:[%s280 + $0x10] sm:$0xf] %v2197
        %2214 = vst [vmem:[%s280 + $0x14] sm:$0xf] %v2198
        %2215 = vst [vmem:[%s280 + $0x18] sm:$0xf] %v2199
        %2216 = vst [vmem:[%s280 + $0x1c] sm:$0xf] %v2200
        %s2217 = sand.u32 %s120, 1
        %s2218 = scalar_lea.sflag [#allocation4], %s2217
        %s2219 = sand.u32 %s120, 1
        %s2220 = smul.addr %s2219, 32
        %s2221 = scalar_lea.vmem [#allocation10], %s2220
        // Predicated region
        $region53: #{bottleneck_forward.4} parent=35 // pred_check
          %p2222 = pneg %p130
        $region54: #{bottleneck_forward.4} parent=35 // pred_check_branch
          %2224 = sbr.rel (%p2222) target = $region56
        $region55: #{bottleneck_forward.4} parent=35 // pred_region
          %s2226 = ssub.s32 512, 512
          %2227 = vsyncadd %s2218, %s2226
          %s2228 = smul.addr %s23, 8
          %s2229 = smul.addr %s2228, 64
          %s2230 = scalar_lea.hbm %s4, %s2229
          %s2231 = sshll.u32 %s2221, 4
          %s2232 = int_to_ptr.vmem [resolvable:$true] %s2231
          %2237 = dma.vmem_to_hbm [thread:$0]  %s2232, 512, %s2230, %s2218, 64, 64, 4
        $region56: #{bottleneck_forward.4} parent=35 // pred_fallthru
          _
      $region36: #{bottleneck_forward.4} parent=5 // pred_fallthru
        _
      %p2238 = scmp.le.s32.totalorder 2, %s18
      // Predicated region
      $region57: #{bottleneck_forward.4} parent=5 // pred_check
        %p2239 = pneg %p2238
      $region58: #{bottleneck_forward.4} parent=5 // pred_check_branch
        %2241 = sbr.rel (%p2239) target = $region60
      $region59: #{bottleneck_forward.4} parent=5 // pred_region
        %s2242 = ssub.s32 %s18, 2
        // Predicated region
        $region61: #{bottleneck_forward.4} parent=59 // pred_check
          %p2243 = pneg %p136
        $region62: #{bottleneck_forward.4} parent=59 // pred_check_branch
          %2245 = sbr.rel (%p2243) target = $region64
        $region63: #{bottleneck_forward.4} parent=59 // pred_region
          %s2246 = sand.u32 %s121, 1
          %s2247 = scalar_lea.sflag [#allocation4], %s2246
          %s2248 = sand.u32 %s121, 1
          %s2249 = smul.addr %s2248, 32
          %s2250 = scalar_lea.vmem [#allocation10], %s2249
          %2251 = dma.done %s2247, 512
        $region64: #{bottleneck_forward.4} parent=59 // pred_fallthru
          _
      $region60: #{bottleneck_forward.4} parent=5 // pred_fallthru
        _
    $region6: #{bottleneck_forward.4} parent=1 // loop_footer
      %s22 = sadd.s32 1, %s18
    $region7: #{bottleneck_forward.4} parent=1 // loop_footer_branch
      %17 = sbr.rel target = $region3
    $region8: #{bottleneck_forward.4} parent=1 // loop_exit
      _
    %2252 = vsyncpa [#allocation3], 1
    %s2253 = scalar_lea.sflag [#allocation3], 1
    %2254 = vsyncpa %s2253, 1
    %2255 = vsyncpa [#allocation6], 1
    %2256 = vsyncpa [#allocation9], 1
    %2257 = vsyncpa [#allocation4], 1
    %s2258 = scalar_lea.sflag [#allocation4], 1
    %2259 = vsyncpa %s2258, 1

</llo_original>
